<compile_context>
chip_gen: v5e
topology: v5e:2x2
jax: 0.10.0
libtpu: 0.0.40
codegen_flags: <defaults>
</compile_context>

<pallas_src>
import functools
import math

import jax
import jax.numpy as jnp
from jax.experimental import pallas as pl
from jax.experimental.pallas import tpu as pltpu

_LN_EPS = 1e-5


# ----------------------------- in-kernel helpers -----------------------------

def _layernorm(x, gamma, beta, eps):
    # x: [R, H] f32; gamma/beta: [1, H] f32
    mu = jnp.mean(x, axis=-1, keepdims=True)
    var = jnp.mean(jnp.square(x - mu), axis=-1, keepdims=True)
    return (x - mu) * jax.lax.rsqrt(var + eps) * gamma + beta


def _gelu_tanh(x):
    # TODO(synk): PyTorch nn.GELU() default is the exact erf-based GELU; the
    # tanh approximation is used here (and in the reference) since erf has no
    # clean Pallas/Mosaic lowering. tanh runs on the EUP.
    c = math.sqrt(2.0 / math.pi)
    return 0.5 * x * (1.0 + jnp.tanh(c * (x + 0.044715 * x * x * x)))


def _softmax_rows(s):
    # Numerically stable softmax over the last (key) axis, f32.
    m = jnp.max(s, axis=-1, keepdims=True)
    e = jnp.exp(s - m)
    return e * pl.reciprocal(jnp.sum(e, axis=-1, keepdims=True), approx=True)


# ------------------------- fully fused transformer kernel --------------------

def _fused_transformer_kernel(
        tok_ref, ctx_ref,
        wq_s_ref, wk_s_ref, wv_s_ref,
        wq_c_ref, wk_c_ref, wv_c_ref,
        w1_ref, b1f_ref, w2_ref, b2f_ref,
        g1_ref, be1_ref, g2_ref, be2_ref, g3_ref, be3_ref,
        out_ref,
        *, s_real, eps, mxu_dtype):
    f32 = jnp.float32
    x0 = tok_ref[0].astype(f32)                                    # [T, H]

    # -------- stage 1: LayerNorm -> self-attention -> +residual --------------
    xn = _layernorm(x0, g1_ref[...], be1_ref[...], eps)
    xc = xn.astype(mxu_dtype)
    q = jnp.dot(xc, wq_s_ref[...], preferred_element_type=f32)     # [T, E] (scale folded)
    k = jnp.dot(xc, wk_s_ref[...], preferred_element_type=f32)     # [T, E]
    v = jnp.dot(xc, wv_s_ref[...], preferred_element_type=f32)     # [T, H]
    s = jax.lax.dot_general(q.astype(mxu_dtype), k.astype(mxu_dtype),
                            dimension_numbers=(((1,), (1,)), ((), ())),
                            preferred_element_type=f32)            # [T, T]
    attn = _softmax_rows(s)
    x = jnp.dot(attn.astype(mxu_dtype), v.astype(mxu_dtype),
                preferred_element_type=f32) + x0                   # [T, H]

    # -------- stage 2: LayerNorm -> cross-attention -> +residual -------------
    xn = _layernorm(x, g2_ref[...], be2_ref[...], eps)
    ctx = ctx_ref[0].astype(mxu_dtype)                             # [S_pad, Cs]
    q = jnp.dot(xn.astype(mxu_dtype), wq_c_ref[...],
                preferred_element_type=f32)                        # [T, E]
    k = jnp.dot(ctx, wk_c_ref[...], preferred_element_type=f32)    # [S_pad, E]
    v = jnp.dot(ctx, wv_c_ref[...], preferred_element_type=f32)    # [S_pad, H]
    s = jax.lax.dot_general(q.astype(mxu_dtype), k.astype(mxu_dtype),
                            dimension_numbers=(((1,), (1,)), ((), ())),
                            preferred_element_type=f32)            # [T, S_pad]
    s_pad = ctx_ref.shape[1]
    if s_real < s_pad:
        # -inf bias on zero-padded key columns (static -> constant-folded).
        key_idx = jax.lax.broadcasted_iota(jnp.int32, (1, s_pad), 1)
        s = s + jnp.where(key_idx < s_real, 0.0, -1e30).astype(f32)
    attn = _softmax_rows(s)
    x = jnp.dot(attn.astype(mxu_dtype), v.astype(mxu_dtype),
                preferred_element_type=f32) + x                    # [T, H]

    # -------- stage 3: LayerNorm -> Linear -> GELU -> Linear -> +residual ----
    xn = _layernorm(x, g3_ref[...], be3_ref[...], eps)
    h = jnp.dot(xn.astype(mxu_dtype), w1_ref[...],
                preferred_element_type=f32) + b1f_ref[...]         # [T, F_pad]
    h = _gelu_tanh(h)
    y = jnp.dot(h.astype(mxu_dtype), w2_ref[...],
                preferred_element_type=f32) + b2f_ref[...]         # [T, H]
    x = y + x

    # -------- outer SpatialTransformer residual (token layout == x_in) -------
    out_ref[0] = (x + x0).astype(out_ref.dtype)


# ---------------------------- SpatialTransformer ------------------------------

def _round_up(n, m):
    return ((n + m - 1) // m) * m


def spatial_transformer(x, context, params, *, mxu_dtype=jnp.bfloat16):
    """x: [B, C, H, W], context: [B, S, context_dim]."""
    B, C, Hh, Ww = x.shape
    T = Hh * Ww
    H = C
    E = C                       # TransformerBlock uses embed_dim == hidden_dim
    Bc, S, Cs = context.shape
    assert Bc == B
    assert T % 8 == 0, "token count must be a multiple of 8 (sublane)"
    p = params

    # rearrange 'b c h w -> b (h w) c'   (pure layout plumbing, wrapper-side)
    tokens = jnp.transpose(x, (0, 2, 3, 1)).reshape(B, T, H)

    # Lane-dense key axis: pad the context sequence length up to a multiple of
    # 128; padded keys are masked with a -inf score bias in-kernel.
    S_pad = _round_up(max(S, 128), 128)
    ctx_p = jnp.pad(context, ((0, 0), (0, S_pad - S), (0, 0)))

    # Fold the 1/sqrt(E) softmax scale into the query weights (host-side).
    scale = 1.0 / math.sqrt(E)
    wq_s = (p["wq_s"].T * scale).astype(mxu_dtype)     # [H, E]
    wk_s = p["wk_s"].T.astype(mxu_dtype)               # [H, E]
    wv_s = p["wv_s"].T.astype(mxu_dtype)               # [H, H]
    wq_c = (p["wq_c"].T * scale).astype(mxu_dtype)     # [H, E]
    wk_c = p["wk_c"].T.astype(mxu_dtype)               # [Cs, E]
    wv_c = p["wv_c"].T.astype(mxu_dtype)               # [Cs, H]

    # Lane-dense FFN hidden: zero-pad 3H up to a multiple of 128 (exact math:
    # gelu(0) = 0 and the corresponding w2 rows are zero).
    F = p["w1"].shape[0]
    F_pad = _round_up(F, 128)
    w1T = jnp.zeros((H, F_pad), mxu_dtype).at[:, :F].set(
        p["w1"].T.astype(mxu_dtype))
    b1f = jnp.zeros((1, F_pad), jnp.float32).at[:, :F].set(
        p["bias1"].astype(jnp.float32))
    w2T = jnp.zeros((F_pad, H), mxu_dtype).at[:F, :].set(
        p["w2"].T.astype(mxu_dtype))
    b2f = p["bias2"].reshape(1, H).astype(jnp.float32)

    g1 = p["g1"].reshape(1, H).astype(jnp.float32)
    be1 = p["b1"].reshape(1, H).astype(jnp.float32)
    g2 = p["g2"].reshape(1, H).astype(jnp.float32)
    be2 = p["b2"].reshape(1, H).astype(jnp.float32)
    g3 = p["g3"].reshape(1, H).astype(jnp.float32)
    be3 = p["b3"].reshape(1, H).astype(jnp.float32)

    kernel = functools.partial(_fused_transformer_kernel, s_real=S,
                               eps=_LN_EPS, mxu_dtype=mxu_dtype)

    def wspec(shape):
        return pl.BlockSpec(shape, lambda b: (0,) * len(shape))

    tokens_out = pl.pallas_call(
        kernel,
        out_shape=jax.ShapeDtypeStruct((B, T, H), x.dtype),
        grid_spec=pltpu.PrefetchScalarGridSpec(
            num_scalar_prefetch=0,
            grid=(B,),
            in_specs=[
                pl.BlockSpec((1, T, H), lambda b: (b, 0, 0)),       # tokens
                pl.BlockSpec((1, S_pad, Cs), lambda b: (b, 0, 0)),  # context
                wspec((H, E)), wspec((H, E)), wspec((H, H)),        # self-attn W
                wspec((H, E)), wspec((Cs, E)), wspec((Cs, H)),      # cross-attn W
                wspec((H, F_pad)), wspec((1, F_pad)),               # FFN in
                wspec((F_pad, H)), wspec((1, H)),                   # FFN out
                wspec((1, H)), wspec((1, H)),                       # LN1
                wspec((1, H)), wspec((1, H)),                       # LN2
                wspec((1, H)), wspec((1, H)),                       # LN3
            ],
            out_specs=pl.BlockSpec((1, T, H), lambda b: (b, 0, 0)),
        ),
        compiler_params=pltpu.CompilerParams(
            dimension_semantics=("parallel",),
            vmem_limit_bytes=32 * 1024 * 1024),
    )(tokens, ctx_p, wq_s, wk_s, wv_s, wq_c, wk_c, wv_c,
      w1T, b1f, w2T, b2f, g1, be1, g2, be2, g3, be3)

    # rearrange 'b (h w) c -> b c h w'; the outer residual was added in-kernel.
    return tokens_out.reshape(B, Hh, Ww, H).transpose(0, 3, 1, 2)


# --------------------------------- reference ----------------------------------

def _layernorm_ref(x, g, b, eps=_LN_EPS):
    mu = jnp.mean(x, axis=-1, keepdims=True)
    var = jnp.mean(jnp.square(x - mu), axis=-1, keepdims=True)
    return (x - mu) / jnp.sqrt(var + eps) * g + b


def _cross_attention_ref(q_in, kv_in, wq, wk, wv, embed_dim):
    Q = jnp.einsum("bth,eh->bte", q_in, wq)
    K = jnp.einsum("bsc,ec->bse", kv_in, wk)
    V = jnp.einsum("bsc,hc->bsh", kv_in, wv)
    scores = jnp.einsum("bte,bse->bts", Q, K) / math.sqrt(embed_dim)
    A = jax.nn.softmax(scores, axis=-1)
    return jnp.einsum("bts,bsh->bth", A, V)


def spatial_transformer_ref(x, context, p):
    B, C, Hh, Ww = x.shape
    t = jnp.transpose(x, (0, 2, 3, 1)).reshape(B, Hh * Ww, C)
    h1 = _layernorm_ref(t, p["g1"], p["b1"])
    t = _cross_attention_ref(h1, h1, p["wq_s"], p["wk_s"], p["wv_s"], C) + t
    h2 = _layernorm_ref(t, p["g2"], p["b2"])
    t = _cross_attention_ref(h2, context, p["wq_c"], p["wk_c"], p["wv_c"], C) + t
    h3 = _layernorm_ref(t, p["g3"], p["b3"])
    ff = _gelu_tanh(h3 @ p["w1"].T + p["bias1"]) @ p["w2"].T + p["bias2"]
    t = ff + t
    y = t.reshape(B, Hh, Ww, C).transpose(0, 3, 1, 2)
    return y + x


# ----------------------------------- test --------------------------------------

if __name__ == "__main__":
    B = 2
    hidden_dim = 32         # = channels
    context_dim = 16
    Hh = Ww = 16            # spatial -> T = 256 tokens
    S = 8                   # context sequence length

    key = jax.random.PRNGKey(0)
    ks = jax.random.split(key, 18)

    x = jax.random.normal(ks[0], (B, hidden_dim, Hh, Ww), dtype=jnp.float32)
    context = jax.random.normal(ks[1], (B, S, context_dim), dtype=jnp.float32)

    def w(k, shape, s=0.1):
        return s * jax.random.normal(k, shape, dtype=jnp.float32)

    params = {
        # self-attn: CrossAttention(hidden, hidden)  ->  E = hidden
        "wq_s": w(ks[2], (hidden_dim, hidden_dim)),
        "wk_s": w(ks[3], (hidden_dim, hidden_dim)),
        "wv_s": w(ks[4], (hidden_dim, hidden_dim)),
        # cross-attn: CrossAttention(hidden, hidden, context_dim)
        "wq_c": w(ks[5], (hidden_dim, hidden_dim)),
        "wk_c": w(ks[6], (hidden_dim, context_dim)),
        "wv_c": w(ks[7], (hidden_dim, context_dim)),
        # layernorm affine params
        "g1": 1.0 + w(ks[8], (hidden_dim,)),
        "b1": w(ks[9], (hidden_dim,)),
        "g2": 1.0 + w(ks[10], (hidden_dim,)),
        "b2": w(ks[11], (hidden_dim,)),
        "g3": 1.0 + w(ks[12], (hidden_dim,)),
        "b3": w(ks[13], (hidden_dim,)),
        # FFN
        "w1": w(ks[14], (3 * hidden_dim, hidden_dim)),
        "bias1": w(ks[15], (3 * hidden_dim,)),
        "w2": w(ks[16], (hidden_dim, 3 * hidden_dim)),
        "bias2": w(ks[17], (hidden_dim,)),
    }

    out = spatial_transformer(x, context, params)
    out = jax.block_until_ready(out)

    ref = spatial_transformer_ref(x, context, params)
    assert out.shape == x.shape
    # bf16 MXU inputs + approx reciprocal -> loosened tolerance vs f32 reference.
    assert jnp.allclose(out, ref, atol=3e-2, rtol=3e-2), (
        float(jnp.max(jnp.abs(out - ref))))

    print("KERNEL_OK")
</pallas_src>

<mosaic_0001>
module attributes {stable_mosaic.version = 11 : i64} {
  func.func @_fused_transformer_kernel(%arg0: i32, %arg1: memref<1x256x32xf32, #tpu.memory_space<vmem>>, %arg2: memref<1x128x16xf32, #tpu.memory_space<vmem>>, %arg3: memref<32x32xbf16, #tpu.memory_space<vmem>>, %arg4: memref<32x32xbf16, #tpu.memory_space<vmem>>, %arg5: memref<32x32xbf16, #tpu.memory_space<vmem>>, %arg6: memref<32x32xbf16, #tpu.memory_space<vmem>>, %arg7: memref<16x32xbf16, #tpu.memory_space<vmem>>, %arg8: memref<16x32xbf16, #tpu.memory_space<vmem>>, %arg9: memref<32x128xbf16, #tpu.memory_space<vmem>>, %arg10: memref<1x128xf32, #tpu.memory_space<vmem>>, %arg11: memref<128x32xbf16, #tpu.memory_space<vmem>>, %arg12: memref<1x32xf32, #tpu.memory_space<vmem>>, %arg13: memref<1x32xf32, #tpu.memory_space<vmem>>, %arg14: memref<1x32xf32, #tpu.memory_space<vmem>>, %arg15: memref<1x32xf32, #tpu.memory_space<vmem>>, %arg16: memref<1x32xf32, #tpu.memory_space<vmem>>, %arg17: memref<1x32xf32, #tpu.memory_space<vmem>>, %arg18: memref<1x32xf32, #tpu.memory_space<vmem>>, %arg19: memref<1x256x32xf32, #tpu.memory_space<vmem>>) attributes {dimension_semantics = [#tpu.dimension_semantics<parallel>], iteration_bounds = array<i64: 2>, scalar_prefetch = 0 : i64, scratch_operands = 0 : i64, tpu.core_type = #tpu.core_type<tc>, window_params = [{transform_indices = @transform_0, window_bounds = array<i64: 1, 256, 32>}, {transform_indices = @transform_1, window_bounds = array<i64: 1, 128, 16>}, {pipeline_mode = #tpu.pipeline_mode<synchronous>, transform_indices = @transform_2, window_bounds = array<i64: 32, 32>}, {pipeline_mode = #tpu.pipeline_mode<synchronous>, transform_indices = @transform_3, window_bounds = array<i64: 32, 32>}, {pipeline_mode = #tpu.pipeline_mode<synchronous>, transform_indices = @transform_4, window_bounds = array<i64: 32, 32>}, {pipeline_mode = #tpu.pipeline_mode<synchronous>, transform_indices = @transform_5, window_bounds = array<i64: 32, 32>}, {pipeline_mode = #tpu.pipeline_mode<synchronous>, transform_indices = @transform_6, window_bounds = array<i64: 16, 32>}, {pipeline_mode = #tpu.pipeline_mode<synchronous>, transform_indices = @transform_7, window_bounds = array<i64: 16, 32>}, {pipeline_mode = #tpu.pipeline_mode<synchronous>, transform_indices = @transform_8, window_bounds = array<i64: 32, 128>}, {pipeline_mode = #tpu.pipeline_mode<synchronous>, transform_indices = @transform_9, window_bounds = array<i64: 1, 128>}, {pipeline_mode = #tpu.pipeline_mode<synchronous>, transform_indices = @transform_10, window_bounds = array<i64: 128, 32>}, {pipeline_mode = #tpu.pipeline_mode<synchronous>, transform_indices = @transform_11, window_bounds = array<i64: 1, 32>}, {pipeline_mode = #tpu.pipeline_mode<synchronous>, transform_indices = @transform_12, window_bounds = array<i64: 1, 32>}, {pipeline_mode = #tpu.pipeline_mode<synchronous>, transform_indices = @transform_13, window_bounds = array<i64: 1, 32>}, {pipeline_mode = #tpu.pipeline_mode<synchronous>, transform_indices = @transform_14, window_bounds = array<i64: 1, 32>}, {pipeline_mode = #tpu.pipeline_mode<synchronous>, transform_indices = @transform_15, window_bounds = array<i64: 1, 32>}, {pipeline_mode = #tpu.pipeline_mode<synchronous>, transform_indices = @transform_16, window_bounds = array<i64: 1, 32>}, {pipeline_mode = #tpu.pipeline_mode<synchronous>, transform_indices = @transform_17, window_bounds = array<i64: 1, 32>}, {transform_indices = @transform_18, window_bounds = array<i64: 1, 256, 32>}]} {
    %c0 = arith.constant 0 : index
    %c0_0 = arith.constant 0 : index
    %c0_1 = arith.constant 0 : index
    %0 = vector.load %arg1[%c0, %c0_0, %c0_1] : memref<1x256x32xf32, #tpu.memory_space<vmem>>, vector<1x256x32xf32>
    %1 = vector.shape_cast %0 : vector<1x256x32xf32> to vector<256x32xf32>
    %c0_2 = arith.constant 0 : index
    %c0_3 = arith.constant 0 : index
    %2 = vector.load %arg13[%c0_2, %c0_3] : memref<1x32xf32, #tpu.memory_space<vmem>>, vector<1x32xf32>
    %c0_4 = arith.constant 0 : index
    %c0_5 = arith.constant 0 : index
    %3 = vector.load %arg14[%c0_4, %c0_5] : memref<1x32xf32, #tpu.memory_space<vmem>>, vector<1x32xf32>
    %cst = arith.constant dense<0.000000e+00> : vector<256xf32>
    %4 = vector.multi_reduction <add>, %1, %cst [1] : vector<256x32xf32> to vector<256xf32>
    %5 = vector.shape_cast %4 : vector<256xf32> to vector<256x1xf32>
    %cst_6 = arith.constant 3.200000e+01 : f32
    %6 = vector.broadcast %cst_6 : f32 to vector<256x1xf32>
    %7 = arith.divf %5, %6 : vector<256x1xf32>
    %8 = vector.broadcast %7 : vector<256x1xf32> to vector<256x32xf32>
    %9 = arith.subf %1, %8 : vector<256x32xf32>
    %10 = arith.mulf %9, %9 : vector<256x32xf32>
    %cst_7 = arith.constant dense<0.000000e+00> : vector<256xf32>
    %11 = vector.multi_reduction <add>, %10, %cst_7 [1] : vector<256x32xf32> to vector<256xf32>
    %12 = vector.shape_cast %11 : vector<256xf32> to vector<256x1xf32>
    %cst_8 = arith.constant 3.200000e+01 : f32
    %13 = vector.broadcast %cst_8 : f32 to vector<256x1xf32>
    %14 = arith.divf %12, %13 : vector<256x1xf32>
    %15 = vector.broadcast %7 : vector<256x1xf32> to vector<256x32xf32>
    %16 = arith.subf %1, %15 : vector<256x32xf32>
    %cst_9 = arith.constant 9.99999974E-6 : f32
    %17 = vector.broadcast %cst_9 : f32 to vector<256x1xf32>
    %18 = arith.addf %14, %17 : vector<256x1xf32>
    %19 = math.rsqrt %18 : vector<256x1xf32>
    %20 = vector.broadcast %19 : vector<256x1xf32> to vector<256x32xf32>
    %21 = arith.mulf %16, %20 : vector<256x32xf32>
    %22 = vector.broadcast %2 : vector<1x32xf32> to vector<256x32xf32>
    %23 = arith.mulf %21, %22 : vector<256x32xf32>
    %24 = vector.broadcast %3 : vector<1x32xf32> to vector<256x32xf32>
    %25 = arith.addf %23, %24 : vector<256x32xf32>
    %26 = arith.truncf %25 : vector<256x32xf32> to vector<256x32xbf16>
    %c0_10 = arith.constant 0 : index
    %c0_11 = arith.constant 0 : index
    %27 = vector.load %arg3[%c0_10, %c0_11] : memref<32x32xbf16, #tpu.memory_space<vmem>>, vector<32x32xbf16>
    %cst_12 = arith.constant dense<0.000000e+00> : vector<256x32xf32>
    %28 = tpu.matmul %26, %27, %cst_12 {dimension_numbers = #tpu.dot_dimension_numbers<[1], [0], [0], [1], [0, 0, 1, 1], [], []>} : vector<256x32xbf16>, vector<32x32xbf16>, vector<256x32xf32> -> vector<256x32xf32>
    %c0_13 = arith.constant 0 : index
    %c0_14 = arith.constant 0 : index
    %29 = vector.load %arg4[%c0_13, %c0_14] : memref<32x32xbf16, #tpu.memory_space<vmem>>, vector<32x32xbf16>
    %cst_15 = arith.constant dense<0.000000e+00> : vector<256x32xf32>
    %30 = tpu.matmul %26, %29, %cst_15 {dimension_numbers = #tpu.dot_dimension_numbers<[1], [0], [0], [1], [0, 0, 1, 1], [], []>} : vector<256x32xbf16>, vector<32x32xbf16>, vector<256x32xf32> -> vector<256x32xf32>
    %c0_16 = arith.constant 0 : index
    %c0_17 = arith.constant 0 : index
    %31 = vector.load %arg5[%c0_16, %c0_17] : memref<32x32xbf16, #tpu.memory_space<vmem>>, vector<32x32xbf16>
    %cst_18 = arith.constant dense<0.000000e+00> : vector<256x32xf32>
    %32 = tpu.matmul %26, %31, %cst_18 {dimension_numbers = #tpu.dot_dimension_numbers<[1], [0], [0], [1], [0, 0, 1, 1], [], []>} : vector<256x32xbf16>, vector<32x32xbf16>, vector<256x32xf32> -> vector<256x32xf32>
    %33 = arith.truncf %28 : vector<256x32xf32> to vector<256x32xbf16>
    %34 = arith.truncf %30 : vector<256x32xf32> to vector<256x32xbf16>
    %cst_19 = arith.constant dense<0.000000e+00> : vector<256x256xf32>
    %35 = tpu.matmul %33, %34, %cst_19 {dimension_numbers = #tpu.dot_dimension_numbers<[1], [1], [0], [0], [0, 0, 1, 0], [], []>} : vector<256x32xbf16>, vector<256x32xbf16>, vector<256x256xf32> -> vector<256x256xf32>
    %cst_20 = arith.constant dense<0xFF800000> : vector<256xf32>
    %36 = vector.multi_reduction <maximumf>, %35, %cst_20 [1] : vector<256x256xf32> to vector<256xf32>
    %37 = vector.shape_cast %36 : vector<256xf32> to vector<256x1xf32>
    %38 = vector.broadcast %37 : vector<256x1xf32> to vector<256x256xf32>
    %39 = arith.subf %35, %38 : vector<256x256xf32>
    %40 = math.exp %39 : vector<256x256xf32>
    %cst_21 = arith.constant dense<0.000000e+00> : vector<256xf32>
    %41 = vector.multi_reduction <add>, %40, %cst_21 [1] : vector<256x256xf32> to vector<256xf32>
    %42 = vector.shape_cast %41 : vector<256xf32> to vector<256x1xf32>
    %43 = tpu.reciprocal %42 {approx = true} : vector<256x1xf32> -> vector<256x1xf32>
    %44 = vector.broadcast %43 : vector<256x1xf32> to vector<256x256xf32>
    %45 = arith.mulf %40, %44 : vector<256x256xf32>
    %46 = arith.truncf %45 : vector<256x256xf32> to vector<256x256xbf16>
    %47 = arith.truncf %32 : vector<256x32xf32> to vector<256x32xbf16>
    %cst_22 = arith.constant dense<0.000000e+00> : vector<256x32xf32>
    %48 = tpu.matmul %46, %47, %cst_22 {dimension_numbers = #tpu.dot_dimension_numbers<[1], [0], [0], [1], [0, 0, 1, 1], [], []>} : vector<256x256xbf16>, vector<256x32xbf16>, vector<256x32xf32> -> vector<256x32xf32>
    %49 = arith.addf %48, %1 : vector<256x32xf32>
    %c0_23 = arith.constant 0 : index
    %c0_24 = arith.constant 0 : index
    %50 = vector.load %arg15[%c0_23, %c0_24] : memref<1x32xf32, #tpu.memory_space<vmem>>, vector<1x32xf32>
    %c0_25 = arith.constant 0 : index
    %c0_26 = arith.constant 0 : index
    %51 = vector.load %arg16[%c0_25, %c0_26] : memref<1x32xf32, #tpu.memory_space<vmem>>, vector<1x32xf32>
    %cst_27 = arith.constant dense<0.000000e+00> : vector<256xf32>
    %52 = vector.multi_reduction <add>, %49, %cst_27 [1] : vector<256x32xf32> to vector<256xf32>
    %53 = vector.shape_cast %52 : vector<256xf32> to vector<256x1xf32>
    %cst_28 = arith.constant 3.200000e+01 : f32
    %54 = vector.broadcast %cst_28 : f32 to vector<256x1xf32>
    %55 = arith.divf %53, %54 : vector<256x1xf32>
    %56 = vector.broadcast %55 : vector<256x1xf32> to vector<256x32xf32>
    %57 = arith.subf %49, %56 : vector<256x32xf32>
    %58 = arith.mulf %57, %57 : vector<256x32xf32>
    %cst_29 = arith.constant dense<0.000000e+00> : vector<256xf32>
    %59 = vector.multi_reduction <add>, %58, %cst_29 [1] : vector<256x32xf32> to vector<256xf32>
    %60 = vector.shape_cast %59 : vector<256xf32> to vector<256x1xf32>
    %cst_30 = arith.constant 3.200000e+01 : f32
    %61 = vector.broadcast %cst_30 : f32 to vector<256x1xf32>
    %62 = arith.divf %60, %61 : vector<256x1xf32>
    %63 = vector.broadcast %55 : vector<256x1xf32> to vector<256x32xf32>
    %64 = arith.subf %49, %63 : vector<256x32xf32>
    %cst_31 = arith.constant 9.99999974E-6 : f32
    %65 = vector.broadcast %cst_31 : f32 to vector<256x1xf32>
    %66 = arith.addf %62, %65 : vector<256x1xf32>
    %67 = math.rsqrt %66 : vector<256x1xf32>
    %68 = vector.broadcast %67 : vector<256x1xf32> to vector<256x32xf32>
    %69 = arith.mulf %64, %68 : vector<256x32xf32>
    %70 = vector.broadcast %50 : vector<1x32xf32> to vector<256x32xf32>
    %71 = arith.mulf %69, %70 : vector<256x32xf32>
    %72 = vector.broadcast %51 : vector<1x32xf32> to vector<256x32xf32>
    %73 = arith.addf %71, %72 : vector<256x32xf32>
    %c0_32 = arith.constant 0 : index
    %c0_33 = arith.constant 0 : index
    %c0_34 = arith.constant 0 : index
    %74 = vector.load %arg2[%c0_32, %c0_33, %c0_34] : memref<1x128x16xf32, #tpu.memory_space<vmem>>, vector<1x128x16xf32>
    %75 = vector.shape_cast %74 : vector<1x128x16xf32> to vector<128x16xf32>
    %76 = arith.truncf %75 : vector<128x16xf32> to vector<128x16xbf16>
    %77 = arith.truncf %73 : vector<256x32xf32> to vector<256x32xbf16>
    %c0_35 = arith.constant 0 : index
    %c0_36 = arith.constant 0 : index
    %78 = vector.load %arg6[%c0_35, %c0_36] : memref<32x32xbf16, #tpu.memory_space<vmem>>, vector<32x32xbf16>
    %cst_37 = arith.constant dense<0.000000e+00> : vector<256x32xf32>
    %79 = tpu.matmul %77, %78, %cst_37 {dimension_numbers = #tpu.dot_dimension_numbers<[1], [0], [0], [1], [0, 0, 1, 1], [], []>} : vector<256x32xbf16>, vector<32x32xbf16>, vector<256x32xf32> -> vector<256x32xf32>
    %c0_38 = arith.constant 0 : index
    %c0_39 = arith.constant 0 : index
    %80 = vector.load %arg7[%c0_38, %c0_39] : memref<16x32xbf16, #tpu.memory_space<vmem>>, vector<16x32xbf16>
    %cst_40 = arith.constant dense<0.000000e+00> : vector<128x32xf32>
    %81 = tpu.matmul %76, %80, %cst_40 {dimension_numbers = #tpu.dot_dimension_numbers<[1], [0], [0], [1], [0, 0, 1, 1], [], []>} : vector<128x16xbf16>, vector<16x32xbf16>, vector<128x32xf32> -> vector<128x32xf32>
    %c0_41 = arith.constant 0 : index
    %c0_42 = arith.constant 0 : index
    %82 = vector.load %arg8[%c0_41, %c0_42] : memref<16x32xbf16, #tpu.memory_space<vmem>>, vector<16x32xbf16>
    %cst_43 = arith.constant dense<0.000000e+00> : vector<128x32xf32>
    %83 = tpu.matmul %76, %82, %cst_43 {dimension_numbers = #tpu.dot_dimension_numbers<[1], [0], [0], [1], [0, 0, 1, 1], [], []>} : vector<128x16xbf16>, vector<16x32xbf16>, vector<128x32xf32> -> vector<128x32xf32>
    %84 = arith.truncf %79 : vector<256x32xf32> to vector<256x32xbf16>
    %85 = arith.truncf %81 : vector<128x32xf32> to vector<128x32xbf16>
    %cst_44 = arith.constant dense<0.000000e+00> : vector<256x128xf32>
    %86 = tpu.matmul %84, %85, %cst_44 {dimension_numbers = #tpu.dot_dimension_numbers<[1], [1], [0], [0], [0, 0, 1, 0], [], []>} : vector<256x32xbf16>, vector<128x32xbf16>, vector<256x128xf32> -> vector<256x128xf32>
    %87 = tpu.iota {dimensions = array<i32: 1>} : vector<1x128xi32>
    %c8_i32 = arith.constant 8 : i32
    %88 = vector.broadcast %c8_i32 : i32 to vector<1x128xi32>
    %89 = arith.cmpi slt, %87, %88 : vector<1x128xi32>
    %cst_45 = arith.constant 0.000000e+00 : f32
    %cst_46 = arith.constant -1.000000e+30 : f32
    %90 = vector.broadcast %cst_45 : f32 to vector<1x128xf32>
    %91 = vector.broadcast %cst_46 : f32 to vector<1x128xf32>
    %92 = arith.select %89, %90, %91 : vector<1x128xi1>, vector<1x128xf32>
    %93 = vector.broadcast %92 : vector<1x128xf32> to vector<256x128xf32>
    %94 = arith.addf %86, %93 : vector<256x128xf32>
    %cst_47 = arith.constant dense<0xFF800000> : vector<256xf32>
    %95 = vector.multi_reduction <maximumf>, %94, %cst_47 [1] : vector<256x128xf32> to vector<256xf32>
    %96 = vector.shape_cast %95 : vector<256xf32> to vector<256x1xf32>
    %97 = vector.broadcast %96 : vector<256x1xf32> to vector<256x128xf32>
    %98 = arith.subf %94, %97 : vector<256x128xf32>
    %99 = math.exp %98 : vector<256x128xf32>
    %cst_48 = arith.constant dense<0.000000e+00> : vector<256xf32>
    %100 = vector.multi_reduction <add>, %99, %cst_48 [1] : vector<256x128xf32> to vector<256xf32>
    %101 = vector.shape_cast %100 : vector<256xf32> to vector<256x1xf32>
    %102 = tpu.reciprocal %101 {approx = true} : vector<256x1xf32> -> vector<256x1xf32>
    %103 = vector.broadcast %102 : vector<256x1xf32> to vector<256x128xf32>
    %104 = arith.mulf %99, %103 : vector<256x128xf32>
    %105 = arith.truncf %104 : vector<256x128xf32> to vector<256x128xbf16>
    %106 = arith.truncf %83 : vector<128x32xf32> to vector<128x32xbf16>
    %cst_49 = arith.constant dense<0.000000e+00> : vector<256x32xf32>
    %107 = tpu.matmul %105, %106, %cst_49 {dimension_numbers = #tpu.dot_dimension_numbers<[1], [0], [0], [1], [0, 0, 1, 1], [], []>} : vector<256x128xbf16>, vector<128x32xbf16>, vector<256x32xf32> -> vector<256x32xf32>
    %108 = arith.addf %107, %49 : vector<256x32xf32>
    %c0_50 = arith.constant 0 : index
    %c0_51 = arith.constant 0 : index
    %109 = vector.load %arg17[%c0_50, %c0_51] : memref<1x32xf32, #tpu.memory_space<vmem>>, vector<1x32xf32>
    %c0_52 = arith.constant 0 : index
    %c0_53 = arith.constant 0 : index
    %110 = vector.load %arg18[%c0_52, %c0_53] : memref<1x32xf32, #tpu.memory_space<vmem>>, vector<1x32xf32>
    %cst_54 = arith.constant dense<0.000000e+00> : vector<256xf32>
    %111 = vector.multi_reduction <add>, %108, %cst_54 [1] : vector<256x32xf32> to vector<256xf32>
    %112 = vector.shape_cast %111 : vector<256xf32> to vector<256x1xf32>
    %cst_55 = arith.constant 3.200000e+01 : f32
    %113 = vector.broadcast %cst_55 : f32 to vector<256x1xf32>
    %114 = arith.divf %112, %113 : vector<256x1xf32>
    %115 = vector.broadcast %114 : vector<256x1xf32> to vector<256x32xf32>
    %116 = arith.subf %108, %115 : vector<256x32xf32>
    %117 = arith.mulf %116, %116 : vector<256x32xf32>
    %cst_56 = arith.constant dense<0.000000e+00> : vector<256xf32>
    %118 = vector.multi_reduction <add>, %117, %cst_56 [1] : vector<256x32xf32> to vector<256xf32>
    %119 = vector.shape_cast %118 : vector<256xf32> to vector<256x1xf32>
    %cst_57 = arith.constant 3.200000e+01 : f32
    %120 = vector.broadcast %cst_57 : f32 to vector<256x1xf32>
    %121 = arith.divf %119, %120 : vector<256x1xf32>
    %122 = vector.broadcast %114 : vector<256x1xf32> to vector<256x32xf32>
    %123 = arith.subf %108, %122 : vector<256x32xf32>
    %cst_58 = arith.constant 9.99999974E-6 : f32
    %124 = vector.broadcast %cst_58 : f32 to vector<256x1xf32>
    %125 = arith.addf %121, %124 : vector<256x1xf32>
    %126 = math.rsqrt %125 : vector<256x1xf32>
    %127 = vector.broadcast %126 : vector<256x1xf32> to vector<256x32xf32>
    %128 = arith.mulf %123, %127 : vector<256x32xf32>
    %129 = vector.broadcast %109 : vector<1x32xf32> to vector<256x32xf32>
    %130 = arith.mulf %128, %129 : vector<256x32xf32>
    %131 = vector.broadcast %110 : vector<1x32xf32> to vector<256x32xf32>
    %132 = arith.addf %130, %131 : vector<256x32xf32>
    %133 = arith.truncf %132 : vector<256x32xf32> to vector<256x32xbf16>
    %c0_59 = arith.constant 0 : index
    %c0_60 = arith.constant 0 : index
    %134 = vector.load %arg9[%c0_59, %c0_60] : memref<32x128xbf16, #tpu.memory_space<vmem>>, vector<32x128xbf16>
    %cst_61 = arith.constant dense<0.000000e+00> : vector<256x128xf32>
    %135 = tpu.matmul %133, %134, %cst_61 {dimension_numbers = #tpu.dot_dimension_numbers<[1], [0], [0], [1], [0, 0, 1, 1], [], []>} : vector<256x32xbf16>, vector<32x128xbf16>, vector<256x128xf32> -> vector<256x128xf32>
    %c0_62 = arith.constant 0 : index
    %c0_63 = arith.constant 0 : index
    %136 = vector.load %arg10[%c0_62, %c0_63] : memref<1x128xf32, #tpu.memory_space<vmem>>, vector<1x128xf32>
    %137 = vector.broadcast %136 : vector<1x128xf32> to vector<256x128xf32>
    %138 = arith.addf %135, %137 : vector<256x128xf32>
    %cst_64 = arith.constant 5.000000e-01 : f32
    %139 = vector.broadcast %cst_64 : f32 to vector<256x128xf32>
    %140 = arith.mulf %139, %138 : vector<256x128xf32>
    %cst_65 = arith.constant 4.471500e-02 : f32
    %141 = vector.broadcast %cst_65 : f32 to vector<256x128xf32>
    %142 = arith.mulf %141, %138 : vector<256x128xf32>
    %143 = arith.mulf %142, %138 : vector<256x128xf32>
    %144 = arith.mulf %143, %138 : vector<256x128xf32>
    %145 = arith.addf %138, %144 : vector<256x128xf32>
    %cst_66 = arith.constant 0.797884583 : f32
    %146 = vector.broadcast %cst_66 : f32 to vector<256x128xf32>
    %147 = arith.mulf %146, %145 : vector<256x128xf32>
    %148 = math.tanh %147 : vector<256x128xf32>
    %cst_67 = arith.constant 1.000000e+00 : f32
    %149 = vector.broadcast %cst_67 : f32 to vector<256x128xf32>
    %150 = arith.addf %149, %148 : vector<256x128xf32>
    %151 = arith.mulf %140, %150 : vector<256x128xf32>
    %152 = arith.truncf %151 : vector<256x128xf32> to vector<256x128xbf16>
    %c0_68 = arith.constant 0 : index
    %c0_69 = arith.constant 0 : index
    %153 = vector.load %arg11[%c0_68, %c0_69] : memref<128x32xbf16, #tpu.memory_space<vmem>>, vector<128x32xbf16>
    %cst_70 = arith.constant dense<0.000000e+00> : vector<256x32xf32>
    %154 = tpu.matmul %152, %153, %cst_70 {dimension_numbers = #tpu.dot_dimension_numbers<[1], [0], [0], [1], [0, 0, 1, 1], [], []>} : vector<256x128xbf16>, vector<128x32xbf16>, vector<256x32xf32> -> vector<256x32xf32>
    %c0_71 = arith.constant 0 : index
    %c0_72 = arith.constant 0 : index
    %155 = vector.load %arg12[%c0_71, %c0_72] : memref<1x32xf32, #tpu.memory_space<vmem>>, vector<1x32xf32>
    %156 = vector.broadcast %155 : vector<1x32xf32> to vector<256x32xf32>
    %157 = arith.addf %154, %156 : vector<256x32xf32>
    %158 = arith.addf %157, %108 : vector<256x32xf32>
    %159 = arith.addf %158, %1 : vector<256x32xf32>
    %c0_73 = arith.constant 0 : index
    %c0_74 = arith.constant 0 : index
    %c0_75 = arith.constant 0 : index
    %160 = vector.load %arg19[%c0_73, %c0_74, %c0_75] : memref<1x256x32xf32, #tpu.memory_space<vmem>>, vector<1x256x32xf32>
    %161 = vector.shape_cast %160 : vector<1x256x32xf32> to vector<256x32xf32>
    %162 = vector.shape_cast %159 : vector<256x32xf32> to vector<1x256x32xf32>
    tpu.vector_store %arg19[%c0_73, %c0_74, %c0_75], %162 {strides = array<i32>} : memref<1x256x32xf32, #tpu.memory_space<vmem>>, vector<1x256x32xf32>,
    return
  }
  func.func @transform_0(%arg0: i32) -> (i32, i32, i32) {
    %c0_i32 = arith.constant 0 : i32
    %c0_i32_0 = arith.constant 0 : i32
    %c0_i32_1 = arith.constant 0 : i32
    return %arg0, %c0_i32, %c0_i32_0 : i32, i32, i32
  }
  func.func @transform_1(%arg0: i32) -> (i32, i32, i32) {
    %c0_i32 = arith.constant 0 : i32
    %c0_i32_0 = arith.constant 0 : i32
    %c0_i32_1 = arith.constant 0 : i32
    return %arg0, %c0_i32, %c0_i32_0 : i32, i32, i32
  }
  func.func @transform_2(%arg0: i32) -> (i32, i32) {
    %c0_i32 = arith.constant 0 : i32
    %c0_i32_0 = arith.constant 0 : i32
    %c0_i32_1 = arith.constant 0 : i32
    return %c0_i32, %c0_i32_0 : i32, i32
  }
  func.func @transform_3(%arg0: i32) -> (i32, i32) {
    %c0_i32 = arith.constant 0 : i32
    %c0_i32_0 = arith.constant 0 : i32
    %c0_i32_1 = arith.constant 0 : i32
    return %c0_i32, %c0_i32_0 : i32, i32
  }
  func.func @transform_4(%arg0: i32) -> (i32, i32) {
    %c0_i32 = arith.constant 0 : i32
    %c0_i32_0 = arith.constant 0 : i32
    %c0_i32_1 = arith.constant 0 : i32
    return %c0_i32, %c0_i32_0 : i32, i32
  }
  func.func @transform_5(%arg0: i32) -> (i32, i32) {
    %c0_i32 = arith.constant 0 : i32
    %c0_i32_0 = arith.constant 0 : i32
    %c0_i32_1 = arith.constant 0 : i32
    return %c0_i32, %c0_i32_0 : i32, i32
  }
  func.func @transform_6(%arg0: i32) -> (i32, i32) {
    %c0_i32 = arith.constant 0 : i32
    %c0_i32_0 = arith.constant 0 : i32
    %c0_i32_1 = arith.constant 0 : i32
    return %c0_i32, %c0_i32_0 : i32, i32
  }
  func.func @transform_7(%arg0: i32) -> (i32, i32) {
    %c0_i32 = arith.constant 0 : i32
    %c0_i32_0 = arith.constant 0 : i32
    %c0_i32_1 = arith.constant 0 : i32
    return %c0_i32, %c0_i32_0 : i32, i32
  }
  func.func @transform_8(%arg0: i32) -> (i32, i32) {
    %c0_i32 = arith.constant 0 : i32
    %c0_i32_0 = arith.constant 0 : i32
    %c0_i32_1 = arith.constant 0 : i32
    return %c0_i32, %c0_i32_0 : i32, i32
  }
  func.func @transform_9(%arg0: i32) -> (i32, i32) {
    %c0_i32 = arith.constant 0 : i32
    %c0_i32_0 = arith.constant 0 : i32
    %c0_i32_1 = arith.constant 0 : i32
    return %c0_i32, %c0_i32_0 : i32, i32
  }
  func.func @transform_10(%arg0: i32) -> (i32, i32) {
    %c0_i32 = arith.constant 0 : i32
    %c0_i32_0 = arith.constant 0 : i32
    %c0_i32_1 = arith.constant 0 : i32
    return %c0_i32, %c0_i32_0 : i32, i32
  }
  func.func @transform_11(%arg0: i32) -> (i32, i32) {
    %c0_i32 = arith.constant 0 : i32
    %c0_i32_0 = arith.constant 0 : i32
    %c0_i32_1 = arith.constant 0 : i32
    return %c0_i32, %c0_i32_0 : i32, i32
  }
  func.func @transform_12(%arg0: i32) -> (i32, i32) {
    %c0_i32 = arith.constant 0 : i32
    %c0_i32_0 = arith.constant 0 : i32
    %c0_i32_1 = arith.constant 0 : i32
    return %c0_i32, %c0_i32_0 : i32, i32
  }
  func.func @transform_13(%arg0: i32) -> (i32, i32) {
    %c0_i32 = arith.constant 0 : i32
    %c0_i32_0 = arith.constant 0 : i32
    %c0_i32_1 = arith.constant 0 : i32
    return %c0_i32, %c0_i32_0 : i32, i32
  }
  func.func @transform_14(%arg0: i32) -> (i32, i32) {
    %c0_i32 = arith.constant 0 : i32
    %c0_i32_0 = arith.constant 0 : i32
    %c0_i32_1 = arith.constant 0 : i32
    return %c0_i32, %c0_i32_0 : i32, i32
  }
  func.func @transform_15(%arg0: i32) -> (i32, i32) {
    %c0_i32 = arith.constant 0 : i32
    %c0_i32_0 = arith.constant 0 : i32
    %c0_i32_1 = arith.constant 0 : i32
    return %c0_i32, %c0_i32_0 : i32, i32
  }
  func.func @transform_16(%arg0: i32) -> (i32, i32) {
    %c0_i32 = arith.constant 0 : i32
    %c0_i32_0 = arith.constant 0 : i32
    %c0_i32_1 = arith.constant 0 : i32
    return %c0_i32, %c0_i32_0 : i32, i32
  }
  func.func @transform_17(%arg0: i32) -> (i32, i32) {
    %c0_i32 = arith.constant 0 : i32
    %c0_i32_0 = arith.constant 0 : i32
    %c0_i32_1 = arith.constant 0 : i32
    return %c0_i32, %c0_i32_0 : i32, i32
  }
  func.func @transform_18(%arg0: i32) -> (i32, i32, i32) {
    %c0_i32 = arith.constant 0 : i32
    %c0_i32_0 = arith.constant 0 : i32
    %c0_i32_1 = arith.constant 0 : i32
    return %arg0, %c0_i32, %c0_i32_0 : i32, i32, i32
  }
}

</mosaic_0001>

<llo_original>
// kernel: tpu_custom_call.1
$region0: #{tpu_custom_call.1}
  #allocation0 [shape = 'u32[]', space=smem, size = 0x4, offset = 0x4, fixed_abs, tag = 'smem constant byte address 0x4 - core index']
  #allocation1 [shape = 'u32[72,128]{1,0:T(1,128)}', space=vmem, size = 0x9000, scoped, tag = 'internal scratch']
  %s0 = inlined_call_operand.vmem [shape: f32[2,256,32], index: 0, kind: input, shape index: {}]
  %s1 = inlined_call_operand.vmem [shape: f32[2,128,16], index: 1, kind: input, shape index: {}]
  %s2 = inlined_call_operand.vmem [shape: bf16[32,32], index: 2, kind: input, shape index: {}]
  %s3 = inlined_call_operand.vmem [shape: bf16[32,32], index: 3, kind: input, shape index: {}]
  %s4 = inlined_call_operand.vmem [shape: bf16[32,32], index: 4, kind: input, shape index: {}]
  %s5 = inlined_call_operand.vmem [shape: bf16[32,32], index: 5, kind: input, shape index: {}]
  %s6 = inlined_call_operand.vmem [shape: bf16[16,32], index: 6, kind: input, shape index: {}]
  %s7 = inlined_call_operand.vmem [shape: bf16[16,32], index: 7, kind: input, shape index: {}]
  %s8 = inlined_call_operand.vmem [shape: bf16[32,128], index: 8, kind: input, shape index: {}]
  %s9 = inlined_call_operand.vmem [shape: f32[1,128], index: 9, kind: input, shape index: {}]
  %s10 = inlined_call_operand.vmem [shape: bf16[128,32], index: 10, kind: input, shape index: {}]
  %s11 = inlined_call_operand.vmem [shape: f32[1,32], index: 11, kind: input, shape index: {}]
  %s12 = inlined_call_operand.vmem [shape: f32[1,32], index: 12, kind: input, shape index: {}]
  %s13 = inlined_call_operand.vmem [shape: f32[1,32], index: 13, kind: input, shape index: {}]
  %s14 = inlined_call_operand.vmem [shape: f32[1,32], index: 14, kind: input, shape index: {}]
  %s15 = inlined_call_operand.vmem [shape: f32[1,32], index: 15, kind: input, shape index: {}]
  %s16 = inlined_call_operand.vmem [shape: f32[1,32], index: 16, kind: input, shape index: {}]
  %s17 = inlined_call_operand.vmem [shape: f32[1,32], index: 17, kind: input, shape index: {}]
  %s18 = inlined_call_operand.vmem [shape: f32[2,256,32], index: 18, kind: output, shape index: {}]
  %s19 = sld [smem:[#allocation0]]
  $region105: #{tpu_custom_call.1} parent=0
    _
  %s21 = ssub.s32 1, %s19
  %s22 = scalar_select 0, %s21, %s19
  loop: start=0, step=1, limit=4
  $region2: #{tpu_custom_call.1} parent=0 // loop_pre_header
    _
  $region3: #{tpu_custom_call.1} parent=0 // loop_header
    %s24 = sphi 0, %s28
    %p25 = scmp.ge.s32.totalorder %s24, 4
    %s34 = sphi 0, %s36
    %s37 = sphi 0, %s34
    %s38 = sphi 0, %s37
    %s54 = sphi 0, %s38
    %s60 = sphi 0, %s62
    %s63 = sphi 0, %s60
    %s64 = sphi 0, %s63
    %s80 = sphi 0, %s64
    %s84 = sphi 0, %s84
    %s86 = sphi 0, %s84
    %s87 = sphi 0, %s86
    %s101 = sphi 0, %s87
    %s105 = sphi 0, %s105
    %s107 = sphi 0, %s105
    %s108 = sphi 0, %s107
    %s122 = sphi 0, %s108
    %s126 = sphi 0, %s126
    %s128 = sphi 0, %s126
    %s129 = sphi 0, %s128
    %s143 = sphi 0, %s129
    %s147 = sphi 0, %s147
    %s149 = sphi 0, %s147
    %s150 = sphi 0, %s149
    %s164 = sphi 0, %s150
    %s168 = sphi 0, %s168
    %s170 = sphi 0, %s168
    %s171 = sphi 0, %s170
    %s185 = sphi 0, %s171
    %s189 = sphi 0, %s189
    %s191 = sphi 0, %s189
    %s192 = sphi 0, %s191
    %s206 = sphi 0, %s192
    %s210 = sphi 0, %s210
    %s212 = sphi 0, %s210
    %s213 = sphi 0, %s212
    %s227 = sphi 0, %s213
    %s231 = sphi 0, %s231
    %s233 = sphi 0, %s231
    %s234 = sphi 0, %s233
    %s248 = sphi 0, %s234
    %s252 = sphi 0, %s252
    %s254 = sphi 0, %s252
    %s255 = sphi 0, %s254
    %s269 = sphi 0, %s255
    %s273 = sphi 0, %s273
    %s275 = sphi 0, %s273
    %s276 = sphi 0, %s275
    %s290 = sphi 0, %s276
    %s294 = sphi 0, %s294
    %s296 = sphi 0, %s294
    %s297 = sphi 0, %s296
    %s311 = sphi 0, %s297
    %s315 = sphi 0, %s315
    %s317 = sphi 0, %s315
    %s318 = sphi 0, %s317
    %s332 = sphi 0, %s318
    %s336 = sphi 0, %s336
    %s338 = sphi 0, %s336
    %s339 = sphi 0, %s338
    %s353 = sphi 0, %s339
    %s357 = sphi 0, %s357
    %s359 = sphi 0, %s357
    %s360 = sphi 0, %s359
    %s374 = sphi 0, %s360
    %s378 = sphi 0, %s378
    %s380 = sphi 0, %s378
    %s381 = sphi 0, %s380
    %s395 = sphi 0, %s381
    %s399 = sphi 0, %s399
    %s401 = sphi 0, %s399
    %s402 = sphi 0, %s401
    %s416 = sphi 0, %s402
    %s422 = sphi 0, %s424
    %s425 = sphi 0, %s422
    %s426 = sphi 0, %s425
    %s442 = sphi 0, %s426
  $region4: #{tpu_custom_call.1} parent=0 // loop_header_branch
    %27 = sbr.rel (%p25) target = $region8
  $region5: #{tpu_custom_call.1} parent=0 // loop_body
    %s29 = ssub.s32 %s24, 1
    %s30 = ssub.s32 %s24, 2
    %s31 = sadd.s32 %s24, 1
    %s32 = ssub.s32 %s24, %s31
    %p33 = scmp.eq.s32.totalorder %s32, 0
    %s35 = sadd.s32 %s34, 1
    %s36 = scalar_select %p33, %s34, %s35
    %p39 = pneg %p33
    %p40 = scmp.eq.s32.totalorder %s24, 1
    %p41 = por %p39, %p40
    %p42 = scmp.ne.s32.totalorder %s34, %s37
    %p43 = scmp.eq.s32.totalorder %s24, 0
    %p44 = por %p42, %p43
    %p45 = scmp.ne.s32.totalorder %s34, %s37
    %p46 = scmp.eq.s32.totalorder %s29, 1
    %p47 = por %p45, %p46
    %p48 = scmp.ne.s32.totalorder %s37, %s38
    %p49 = scmp.eq.s32.totalorder %s29, 0
    %p50 = por %p48, %p49
    %p51 = scmp.ne.s32.totalorder %s37, %s38
    %p52 = scmp.eq.s32.totalorder %s30, 1
    %p53 = por %p51, %p52
    %p55 = scmp.ne.s32.totalorder %s38, %s54
    %p56 = scmp.eq.s32.totalorder %s30, 0
    %p57 = por %p55, %p56
    %s58 = ssub.s32 %s24, %s31
    %p59 = scmp.eq.s32.totalorder %s58, 0
    %s61 = sadd.s32 %s60, 1
    %s62 = scalar_select %p59, %s60, %s61
    %p65 = pneg %p59
    %p66 = scmp.eq.s32.totalorder %s24, 1
    %p67 = por %p65, %p66
    %p68 = scmp.ne.s32.totalorder %s60, %s63
    %p69 = scmp.eq.s32.totalorder %s24, 0
    %p70 = por %p68, %p69
    %p71 = scmp.ne.s32.totalorder %s60, %s63
    %p72 = scmp.eq.s32.totalorder %s29, 1
    %p73 = por %p71, %p72
    %p74 = scmp.ne.s32.totalorder %s63, %s64
    %p75 = scmp.eq.s32.totalorder %s29, 0
    %p76 = por %p74, %p75
    %p77 = scmp.ne.s32.totalorder %s63, %s64
    %p78 = scmp.eq.s32.totalorder %s30, 1
    %p79 = por %p77, %p78
    %p81 = scmp.ne.s32.totalorder %s64, %s80
    %p82 = scmp.eq.s32.totalorder %s30, 0
    %p83 = por %p81, %p82
    %s85 = sadd.s32 %s84, 1
    %p88 = scmp.eq.s32.totalorder %s24, 1
    %p89 = scmp.ne.s32.totalorder %s84, %s86
    %p90 = scmp.eq.s32.totalorder %s24, 0
    %p91 = por %p89, %p90
    %p92 = scmp.ne.s32.totalorder %s84, %s86
    %p93 = scmp.eq.s32.totalorder %s29, 1
    %p94 = por %p92, %p93
    %p95 = scmp.ne.s32.totalorder %s86, %s87
    %p96 = scmp.eq.s32.totalorder %s29, 0
    %p97 = por %p95, %p96
    %p98 = scmp.ne.s32.totalorder %s86, %s87
    %p99 = scmp.eq.s32.totalorder %s30, 1
    %p100 = por %p98, %p99
    %p102 = scmp.ne.s32.totalorder %s87, %s101
    %p103 = scmp.eq.s32.totalorder %s30, 0
    %p104 = por %p102, %p103
    %s106 = sadd.s32 %s105, 1
    %p109 = scmp.eq.s32.totalorder %s24, 1
    %p110 = scmp.ne.s32.totalorder %s105, %s107
    %p111 = scmp.eq.s32.totalorder %s24, 0
    %p112 = por %p110, %p111
    %p113 = scmp.ne.s32.totalorder %s105, %s107
    %p114 = scmp.eq.s32.totalorder %s29, 1
    %p115 = por %p113, %p114
    %p116 = scmp.ne.s32.totalorder %s107, %s108
    %p117 = scmp.eq.s32.totalorder %s29, 0
    %p118 = por %p116, %p117
    %p119 = scmp.ne.s32.totalorder %s107, %s108
    %p120 = scmp.eq.s32.totalorder %s30, 1
    %p121 = por %p119, %p120
    %p123 = scmp.ne.s32.totalorder %s108, %s122
    %p124 = scmp.eq.s32.totalorder %s30, 0
    %p125 = por %p123, %p124
    %s127 = sadd.s32 %s126, 1
    %p130 = scmp.eq.s32.totalorder %s24, 1
    %p131 = scmp.ne.s32.totalorder %s126, %s128
    %p132 = scmp.eq.s32.totalorder %s24, 0
    %p133 = por %p131, %p132
    %p134 = scmp.ne.s32.totalorder %s126, %s128
    %p135 = scmp.eq.s32.totalorder %s29, 1
    %p136 = por %p134, %p135
    %p137 = scmp.ne.s32.totalorder %s128, %s129
    %p138 = scmp.eq.s32.totalorder %s29, 0
    %p139 = por %p137, %p138
    %p140 = scmp.ne.s32.totalorder %s128, %s129
    %p141 = scmp.eq.s32.totalorder %s30, 1
    %p142 = por %p140, %p141
    %p144 = scmp.ne.s32.totalorder %s129, %s143
    %p145 = scmp.eq.s32.totalorder %s30, 0
    %p146 = por %p144, %p145
    %s148 = sadd.s32 %s147, 1
    %p151 = scmp.eq.s32.totalorder %s24, 1
    %p152 = scmp.ne.s32.totalorder %s147, %s149
    %p153 = scmp.eq.s32.totalorder %s24, 0
    %p154 = por %p152, %p153
    %p155 = scmp.ne.s32.totalorder %s147, %s149
    %p156 = scmp.eq.s32.totalorder %s29, 1
    %p157 = por %p155, %p156
    %p158 = scmp.ne.s32.totalorder %s149, %s150
    %p159 = scmp.eq.s32.totalorder %s29, 0
    %p160 = por %p158, %p159
    %p161 = scmp.ne.s32.totalorder %s149, %s150
    %p162 = scmp.eq.s32.totalorder %s30, 1
    %p163 = por %p161, %p162
    %p165 = scmp.ne.s32.totalorder %s150, %s164
    %p166 = scmp.eq.s32.totalorder %s30, 0
    %p167 = por %p165, %p166
    %s169 = sadd.s32 %s168, 1
    %p172 = scmp.eq.s32.totalorder %s24, 1
    %p173 = scmp.ne.s32.totalorder %s168, %s170
    %p174 = scmp.eq.s32.totalorder %s24, 0
    %p175 = por %p173, %p174
    %p176 = scmp.ne.s32.totalorder %s168, %s170
    %p177 = scmp.eq.s32.totalorder %s29, 1
    %p178 = por %p176, %p177
    %p179 = scmp.ne.s32.totalorder %s170, %s171
    %p180 = scmp.eq.s32.totalorder %s29, 0
    %p181 = por %p179, %p180
    %p182 = scmp.ne.s32.totalorder %s170, %s171
    %p183 = scmp.eq.s32.totalorder %s30, 1
    %p184 = por %p182, %p183
    %p186 = scmp.ne.s32.totalorder %s171, %s185
    %p187 = scmp.eq.s32.totalorder %s30, 0
    %p188 = por %p186, %p187
    %s190 = sadd.s32 %s189, 1
    %p193 = scmp.eq.s32.totalorder %s24, 1
    %p194 = scmp.ne.s32.totalorder %s189, %s191
    %p195 = scmp.eq.s32.totalorder %s24, 0
    %p196 = por %p194, %p195
    %p197 = scmp.ne.s32.totalorder %s189, %s191
    %p198 = scmp.eq.s32.totalorder %s29, 1
    %p199 = por %p197, %p198
    %p200 = scmp.ne.s32.totalorder %s191, %s192
    %p201 = scmp.eq.s32.totalorder %s29, 0
    %p202 = por %p200, %p201
    %p203 = scmp.ne.s32.totalorder %s191, %s192
    %p204 = scmp.eq.s32.totalorder %s30, 1
    %p205 = por %p203, %p204
    %p207 = scmp.ne.s32.totalorder %s192, %s206
    %p208 = scmp.eq.s32.totalorder %s30, 0
    %p209 = por %p207, %p208
    %s211 = sadd.s32 %s210, 1
    %p214 = scmp.eq.s32.totalorder %s24, 1
    %p215 = scmp.ne.s32.totalorder %s210, %s212
    %p216 = scmp.eq.s32.totalorder %s24, 0
    %p217 = por %p215, %p216
    %p218 = scmp.ne.s32.totalorder %s210, %s212
    %p219 = scmp.eq.s32.totalorder %s29, 1
    %p220 = por %p218, %p219
    %p221 = scmp.ne.s32.totalorder %s212, %s213
    %p222 = scmp.eq.s32.totalorder %s29, 0
    %p223 = por %p221, %p222
    %p224 = scmp.ne.s32.totalorder %s212, %s213
    %p225 = scmp.eq.s32.totalorder %s30, 1
    %p226 = por %p224, %p225
    %p228 = scmp.ne.s32.totalorder %s213, %s227
    %p229 = scmp.eq.s32.totalorder %s30, 0
    %p230 = por %p228, %p229
    %s232 = sadd.s32 %s231, 1
    %p235 = scmp.eq.s32.totalorder %s24, 1
    %p236 = scmp.ne.s32.totalorder %s231, %s233
    %p237 = scmp.eq.s32.totalorder %s24, 0
    %p238 = por %p236, %p237
    %p239 = scmp.ne.s32.totalorder %s231, %s233
    %p240 = scmp.eq.s32.totalorder %s29, 1
    %p241 = por %p239, %p240
    %p242 = scmp.ne.s32.totalorder %s233, %s234
    %p243 = scmp.eq.s32.totalorder %s29, 0
    %p244 = por %p242, %p243
    %p245 = scmp.ne.s32.totalorder %s233, %s234
    %p246 = scmp.eq.s32.totalorder %s30, 1
    %p247 = por %p245, %p246
    %p249 = scmp.ne.s32.totalorder %s234, %s248
    %p250 = scmp.eq.s32.totalorder %s30, 0
    %p251 = por %p249, %p250
    %s253 = sadd.s32 %s252, 1
    %p256 = scmp.eq.s32.totalorder %s24, 1
    %p257 = scmp.ne.s32.totalorder %s252, %s254
    %p258 = scmp.eq.s32.totalorder %s24, 0
    %p259 = por %p257, %p258
    %p260 = scmp.ne.s32.totalorder %s252, %s254
    %p261 = scmp.eq.s32.totalorder %s29, 1
    %p262 = por %p260, %p261
    %p263 = scmp.ne.s32.totalorder %s254, %s255
    %p264 = scmp.eq.s32.totalorder %s29, 0
    %p265 = por %p263, %p264
    %p266 = scmp.ne.s32.totalorder %s254, %s255
    %p267 = scmp.eq.s32.totalorder %s30, 1
    %p268 = por %p266, %p267
    %p270 = scmp.ne.s32.totalorder %s255, %s269
    %p271 = scmp.eq.s32.totalorder %s30, 0
    %p272 = por %p270, %p271
    %s274 = sadd.s32 %s273, 1
    %p277 = scmp.eq.s32.totalorder %s24, 1
    %p278 = scmp.ne.s32.totalorder %s273, %s275
    %p279 = scmp.eq.s32.totalorder %s24, 0
    %p280 = por %p278, %p279
    %p281 = scmp.ne.s32.totalorder %s273, %s275
    %p282 = scmp.eq.s32.totalorder %s29, 1
    %p283 = por %p281, %p282
    %p284 = scmp.ne.s32.totalorder %s275, %s276
    %p285 = scmp.eq.s32.totalorder %s29, 0
    %p286 = por %p284, %p285
    %p287 = scmp.ne.s32.totalorder %s275, %s276
    %p288 = scmp.eq.s32.totalorder %s30, 1
    %p289 = por %p287, %p288
    %p291 = scmp.ne.s32.totalorder %s276, %s290
    %p292 = scmp.eq.s32.totalorder %s30, 0
    %p293 = por %p291, %p292
    %s295 = sadd.s32 %s294, 1
    %p298 = scmp.eq.s32.totalorder %s24, 1
    %p299 = scmp.ne.s32.totalorder %s294, %s296
    %p300 = scmp.eq.s32.totalorder %s24, 0
    %p301 = por %p299, %p300
    %p302 = scmp.ne.s32.totalorder %s294, %s296
    %p303 = scmp.eq.s32.totalorder %s29, 1
    %p304 = por %p302, %p303
    %p305 = scmp.ne.s32.totalorder %s296, %s297
    %p306 = scmp.eq.s32.totalorder %s29, 0
    %p307 = por %p305, %p306
    %p308 = scmp.ne.s32.totalorder %s296, %s297
    %p309 = scmp.eq.s32.totalorder %s30, 1
    %p310 = por %p308, %p309
    %p312 = scmp.ne.s32.totalorder %s297, %s311
    %p313 = scmp.eq.s32.totalorder %s30, 0
    %p314 = por %p312, %p313
    %s316 = sadd.s32 %s315, 1
    %p319 = scmp.eq.s32.totalorder %s24, 1
    %p320 = scmp.ne.s32.totalorder %s315, %s317
    %p321 = scmp.eq.s32.totalorder %s24, 0
    %p322 = por %p320, %p321
    %p323 = scmp.ne.s32.totalorder %s315, %s317
    %p324 = scmp.eq.s32.totalorder %s29, 1
    %p325 = por %p323, %p324
    %p326 = scmp.ne.s32.totalorder %s317, %s318
    %p327 = scmp.eq.s32.totalorder %s29, 0
    %p328 = por %p326, %p327
    %p329 = scmp.ne.s32.totalorder %s317, %s318
    %p330 = scmp.eq.s32.totalorder %s30, 1
    %p331 = por %p329, %p330
    %p333 = scmp.ne.s32.totalorder %s318, %s332
    %p334 = scmp.eq.s32.totalorder %s30, 0
    %p335 = por %p333, %p334
    %s337 = sadd.s32 %s336, 1
    %p340 = scmp.eq.s32.totalorder %s24, 1
    %p341 = scmp.ne.s32.totalorder %s336, %s338
    %p342 = scmp.eq.s32.totalorder %s24, 0
    %p343 = por %p341, %p342
    %p344 = scmp.ne.s32.totalorder %s336, %s338
    %p345 = scmp.eq.s32.totalorder %s29, 1
    %p346 = por %p344, %p345
    %p347 = scmp.ne.s32.totalorder %s338, %s339
    %p348 = scmp.eq.s32.totalorder %s29, 0
    %p349 = por %p347, %p348
    %p350 = scmp.ne.s32.totalorder %s338, %s339
    %p351 = scmp.eq.s32.totalorder %s30, 1
    %p352 = por %p350, %p351
    %p354 = scmp.ne.s32.totalorder %s339, %s353
    %p355 = scmp.eq.s32.totalorder %s30, 0
    %p356 = por %p354, %p355
    %s358 = sadd.s32 %s357, 1
    %p361 = scmp.eq.s32.totalorder %s24, 1
    %p362 = scmp.ne.s32.totalorder %s357, %s359
    %p363 = scmp.eq.s32.totalorder %s24, 0
    %p364 = por %p362, %p363
    %p365 = scmp.ne.s32.totalorder %s357, %s359
    %p366 = scmp.eq.s32.totalorder %s29, 1
    %p367 = por %p365, %p366
    %p368 = scmp.ne.s32.totalorder %s359, %s360
    %p369 = scmp.eq.s32.totalorder %s29, 0
    %p370 = por %p368, %p369
    %p371 = scmp.ne.s32.totalorder %s359, %s360
    %p372 = scmp.eq.s32.totalorder %s30, 1
    %p373 = por %p371, %p372
    %p375 = scmp.ne.s32.totalorder %s360, %s374
    %p376 = scmp.eq.s32.totalorder %s30, 0
    %p377 = por %p375, %p376
    %s379 = sadd.s32 %s378, 1
    %p382 = scmp.eq.s32.totalorder %s24, 1
    %p383 = scmp.ne.s32.totalorder %s378, %s380
    %p384 = scmp.eq.s32.totalorder %s24, 0
    %p385 = por %p383, %p384
    %p386 = scmp.ne.s32.totalorder %s378, %s380
    %p387 = scmp.eq.s32.totalorder %s29, 1
    %p388 = por %p386, %p387
    %p389 = scmp.ne.s32.totalorder %s380, %s381
    %p390 = scmp.eq.s32.totalorder %s29, 0
    %p391 = por %p389, %p390
    %p392 = scmp.ne.s32.totalorder %s380, %s381
    %p393 = scmp.eq.s32.totalorder %s30, 1
    %p394 = por %p392, %p393
    %p396 = scmp.ne.s32.totalorder %s381, %s395
    %p397 = scmp.eq.s32.totalorder %s30, 0
    %p398 = por %p396, %p397
    %s400 = sadd.s32 %s399, 1
    %p403 = scmp.eq.s32.totalorder %s24, 1
    %p404 = scmp.ne.s32.totalorder %s399, %s401
    %p405 = scmp.eq.s32.totalorder %s24, 0
    %p406 = por %p404, %p405
    %p407 = scmp.ne.s32.totalorder %s399, %s401
    %p408 = scmp.eq.s32.totalorder %s29, 1
    %p409 = por %p407, %p408
    %p410 = scmp.ne.s32.totalorder %s401, %s402
    %p411 = scmp.eq.s32.totalorder %s29, 0
    %p412 = por %p410, %p411
    %p413 = scmp.ne.s32.totalorder %s401, %s402
    %p414 = scmp.eq.s32.totalorder %s30, 1
    %p415 = por %p413, %p414
    %p417 = scmp.ne.s32.totalorder %s402, %s416
    %p418 = scmp.eq.s32.totalorder %s30, 0
    %p419 = por %p417, %p418
    %s420 = ssub.s32 %s24, %s31
    %p421 = scmp.eq.s32.totalorder %s420, 0
    %s423 = sadd.s32 %s422, 1
    %s424 = scalar_select %p421, %s422, %s423
    %p427 = pneg %p421
    %p428 = scmp.eq.s32.totalorder %s24, 1
    %p429 = por %p427, %p428
    %p430 = scmp.ne.s32.totalorder %s422, %s425
    %p431 = scmp.eq.s32.totalorder %s24, 0
    %p432 = por %p430, %p431
    %p433 = scmp.ne.s32.totalorder %s422, %s425
    %p434 = scmp.eq.s32.totalorder %s29, 1
    %p435 = por %p433, %p434
    %p436 = scmp.ne.s32.totalorder %s425, %s426
    %p437 = scmp.eq.s32.totalorder %s29, 0
    %p438 = por %p436, %p437
    %p439 = scmp.ne.s32.totalorder %s425, %s426
    %p440 = scmp.eq.s32.totalorder %s30, 1
    %p441 = por %p439, %p440
    %p443 = scmp.ne.s32.totalorder %s426, %s442
    %p444 = scmp.eq.s32.totalorder %s30, 0
    %p445 = por %p443, %p444
    %p446 = scmp.le.s32.totalorder 1, %s24
    %p447 = scmp.lt.s32.totalorder %s24, 3
    %p448 = pnand %p446, %p447
    %p449 = pneg %p448
    // Predicated region
    $region9: #{tpu_custom_call.1} parent=5 // pred_check
      _
    $region10: #{tpu_custom_call.1} parent=5 // pred_check_branch
      %451 = sbr.rel (%p448) target = $region12
    $region11: #{tpu_custom_call.1} parent=5 // pred_region
      %s452 = ssub.s32 %s24, 1
      // Predicated region
      $region13: #{tpu_custom_call.1} parent=11 // pred_check
        %p453 = pneg %p97
      $region14: #{tpu_custom_call.1} parent=11 // pred_check_branch
        %455 = sbr.rel (%p453) target = $region16
      $region15: #{tpu_custom_call.1} parent=11 // pred_region
        _
      $region16: #{tpu_custom_call.1} parent=11 // pred_fallthru
        _
      // Predicated region
      $region17: #{tpu_custom_call.1} parent=11 // pred_check
        %p456 = pneg %p118
      $region18: #{tpu_custom_call.1} parent=11 // pred_check_branch
        %458 = sbr.rel (%p456) target = $region20
      $region19: #{tpu_custom_call.1} parent=11 // pred_region
        _
      $region20: #{tpu_custom_call.1} parent=11 // pred_fallthru
        _
      // Predicated region
      $region21: #{tpu_custom_call.1} parent=11 // pred_check
        %p459 = pneg %p139
      $region22: #{tpu_custom_call.1} parent=11 // pred_check_branch
        %461 = sbr.rel (%p459) target = $region24
      $region23: #{tpu_custom_call.1} parent=11 // pred_region
        _
      $region24: #{tpu_custom_call.1} parent=11 // pred_fallthru
        _
      // Predicated region
      $region25: #{tpu_custom_call.1} parent=11 // pred_check
        %p462 = pneg %p160
      $region26: #{tpu_custom_call.1} parent=11 // pred_check_branch
        %464 = sbr.rel (%p462) target = $region28
      $region27: #{tpu_custom_call.1} parent=11 // pred_region
        _
      $region28: #{tpu_custom_call.1} parent=11 // pred_fallthru
        _
      // Predicated region
      $region29: #{tpu_custom_call.1} parent=11 // pred_check
        %p465 = pneg %p181
      $region30: #{tpu_custom_call.1} parent=11 // pred_check_branch
        %467 = sbr.rel (%p465) target = $region32
      $region31: #{tpu_custom_call.1} parent=11 // pred_region
        _
      $region32: #{tpu_custom_call.1} parent=11 // pred_fallthru
        _
      // Predicated region
      $region33: #{tpu_custom_call.1} parent=11 // pred_check
        %p468 = pneg %p202
      $region34: #{tpu_custom_call.1} parent=11 // pred_check_branch
        %470 = sbr.rel (%p468) target = $region36
      $region35: #{tpu_custom_call.1} parent=11 // pred_region
        _
      $region36: #{tpu_custom_call.1} parent=11 // pred_fallthru
        _
      // Predicated region
      $region37: #{tpu_custom_call.1} parent=11 // pred_check
        %p471 = pneg %p223
      $region38: #{tpu_custom_call.1} parent=11 // pred_check_branch
        %473 = sbr.rel (%p471) target = $region40
      $region39: #{tpu_custom_call.1} parent=11 // pred_region
        _
      $region40: #{tpu_custom_call.1} parent=11 // pred_fallthru
        _
      // Predicated region
      $region41: #{tpu_custom_call.1} parent=11 // pred_check
        %p474 = pneg %p244
      $region42: #{tpu_custom_call.1} parent=11 // pred_check_branch
        %476 = sbr.rel (%p474) target = $region44
      $region43: #{tpu_custom_call.1} parent=11 // pred_region
        _
      $region44: #{tpu_custom_call.1} parent=11 // pred_fallthru
        _
      // Predicated region
      $region45: #{tpu_custom_call.1} parent=11 // pred_check
        %p477 = pneg %p265
      $region46: #{tpu_custom_call.1} parent=11 // pred_check_branch
        %479 = sbr.rel (%p477) target = $region48
      $region47: #{tpu_custom_call.1} parent=11 // pred_region
        _
      $region48: #{tpu_custom_call.1} parent=11 // pred_fallthru
        _
      // Predicated region
      $region49: #{tpu_custom_call.1} parent=11 // pred_check
        %p480 = pneg %p286
      $region50: #{tpu_custom_call.1} parent=11 // pred_check_branch
        %482 = sbr.rel (%p480) target = $region52
      $region51: #{tpu_custom_call.1} parent=11 // pred_region
        _
      $region52: #{tpu_custom_call.1} parent=11 // pred_fallthru
        _
      // Predicated region
      $region53: #{tpu_custom_call.1} parent=11 // pred_check
        %p483 = pneg %p307
      $region54: #{tpu_custom_call.1} parent=11 // pred_check_branch
        %485 = sbr.rel (%p483) target = $region56
      $region55: #{tpu_custom_call.1} parent=11 // pred_region
        _
      $region56: #{tpu_custom_call.1} parent=11 // pred_fallthru
        _
      // Predicated region
      $region57: #{tpu_custom_call.1} parent=11 // pred_check
        %p486 = pneg %p328
      $region58: #{tpu_custom_call.1} parent=11 // pred_check_branch
        %488 = sbr.rel (%p486) target = $region60
      $region59: #{tpu_custom_call.1} parent=11 // pred_region
        _
      $region60: #{tpu_custom_call.1} parent=11 // pred_fallthru
        _
      // Predicated region
      $region61: #{tpu_custom_call.1} parent=11 // pred_check
        %p489 = pneg %p349
      $region62: #{tpu_custom_call.1} parent=11 // pred_check_branch
        %491 = sbr.rel (%p489) target = $region64
      $region63: #{tpu_custom_call.1} parent=11 // pred_region
        _
      $region64: #{tpu_custom_call.1} parent=11 // pred_fallthru
        _
      // Predicated region
      $region65: #{tpu_custom_call.1} parent=11 // pred_check
        %p492 = pneg %p370
      $region66: #{tpu_custom_call.1} parent=11 // pred_check_branch
        %494 = sbr.rel (%p492) target = $region68
      $region67: #{tpu_custom_call.1} parent=11 // pred_region
        _
      $region68: #{tpu_custom_call.1} parent=11 // pred_fallthru
        _
      // Predicated region
      $region69: #{tpu_custom_call.1} parent=11 // pred_check
        %p495 = pneg %p391
      $region70: #{tpu_custom_call.1} parent=11 // pred_check_branch
        %497 = sbr.rel (%p495) target = $region72
      $region71: #{tpu_custom_call.1} parent=11 // pred_region
        _
      $region72: #{tpu_custom_call.1} parent=11 // pred_fallthru
        _
      // Predicated region
      $region73: #{tpu_custom_call.1} parent=11 // pred_check
        %p498 = pneg %p412
      $region74: #{tpu_custom_call.1} parent=11 // pred_check_branch
        %500 = sbr.rel (%p498) target = $region76
      $region75: #{tpu_custom_call.1} parent=11 // pred_region
        _
      $region76: #{tpu_custom_call.1} parent=11 // pred_fallthru
        _
    $region12: #{tpu_custom_call.1} parent=5 // pred_fallthru
      _
    %p501 = scmp.lt.s32.totalorder %s24, 2
    // Predicated region
    $region77: #{tpu_custom_call.1} parent=5 // pred_check
      %p502 = pneg %p501
    $region78: #{tpu_custom_call.1} parent=5 // pred_check_branch
      %504 = sbr.rel (%p502) target = $region80
    $region79: #{tpu_custom_call.1} parent=5 // pred_region
      // Predicated region
      $region81: #{tpu_custom_call.1} parent=79 // pred_check
        %p505 = pneg %p44
      $region82: #{tpu_custom_call.1} parent=79 // pred_check_branch
        %507 = sbr.rel (%p505) target = $region84
      $region83: #{tpu_custom_call.1} parent=79 // pred_region
        %p508 = scmp.lt.s32.totalorder %s24, 1
        %s509 = scalar_select %p508, %s24, 1
        %s510 = smul.addr %s509, 32
        %s511 = smul.addr %s510, 8
        %s512 = scalar_lea.vmem %s0, %s511
      $region84: #{tpu_custom_call.1} parent=79 // pred_fallthru
        _
      // Predicated region
      $region85: #{tpu_custom_call.1} parent=79 // pred_check
        %p513 = pneg %p70
      $region86: #{tpu_custom_call.1} parent=79 // pred_check_branch
        %515 = sbr.rel (%p513) target = $region88
      $region87: #{tpu_custom_call.1} parent=79 // pred_region
        %p516 = scmp.lt.s32.totalorder %s24, 1
        %s517 = scalar_select %p516, %s24, 1
        %s518 = smul.addr %s517, 16
        %s519 = smul.addr %s518, 8
        %s520 = scalar_lea.vmem %s1, %s519
      $region88: #{tpu_custom_call.1} parent=79 // pred_fallthru
        _
    $region80: #{tpu_custom_call.1} parent=5 // pred_fallthru
      _
    %p521 = scmp.le.s32.totalorder 1, %s24
    %p522 = scmp.lt.s32.totalorder %s24, 3
    %p523 = pnand %p521, %p522
    %p524 = pneg %p523
    // Predicated region
    $region89: #{tpu_custom_call.1} parent=5 // pred_check
      _
    $region90: #{tpu_custom_call.1} parent=5 // pred_check_branch
      %526 = sbr.rel (%p523) target = $region92
    $region91: #{tpu_custom_call.1} parent=5 // pred_region
      %s527 = ssub.s32 %s24, 1
      %p528 = scmp.lt.s32.totalorder %s29, 1
      %s529 = scalar_select %p528, %s29, 1
      %s530 = smul.addr %s529, 32
      %s531 = smul.addr %s530, 8
      %s532 = scalar_lea.vmem %s0, %s531
      %p533 = pneg %p50
      %p534 = pneg %p47
      %p535 = scmp.lt.s32.totalorder %s29, 1
      %s536 = scalar_select %p535, %s29, 1
      %s537 = smul.addr %s536, 16
      %s538 = smul.addr %s537, 8
      %s539 = scalar_lea.vmem %s1, %s538
      %p540 = pneg %p76
      %p541 = pneg %p73
      %p542 = pneg %p97
      %p543 = pneg %p94
      %p544 = pneg %p118
      %p545 = pneg %p115
      %p546 = pneg %p139
      %p547 = pneg %p136
      %p548 = pneg %p160
      %p549 = pneg %p157
      %p550 = pneg %p181
      %p551 = pneg %p178
      %p552 = pneg %p202
      %p553 = pneg %p199
      %p554 = pneg %p223
      %p555 = pneg %p220
      %p556 = pneg %p244
      %p557 = pneg %p241
      %p558 = pneg %p265
      %p559 = pneg %p262
      %p560 = pneg %p286
      %p561 = pneg %p283
      %p562 = pneg %p307
      %p563 = pneg %p304
      %p564 = pneg %p328
      %p565 = pneg %p325
      %p566 = pneg %p349
      %p567 = pneg %p346
      %p568 = pneg %p370
      %p569 = pneg %p367
      %p570 = pneg %p391
      %p571 = pneg %p388
      %p572 = pneg %p412
      %p573 = pneg %p409
      %p574 = pneg %p438
      %p575 = pneg %p435
      %p576 = scmp.lt.s32.totalorder %s29, 1
      %s577 = scalar_select %p576, %s29, 1
      %s578 = smul.addr %s577, 32
      %s579 = smul.addr %s578, 8
      %s580 = scalar_lea.vmem %s18, %s579
      %p581 = scmp.lt.s32.totalorder %s29, 1
      %s582 = scalar_select %p581, %s29, 1
      %s583 = smul.addr %s582, 32
      %s584 = smul.addr %s583, 8
      %s585 = scalar_lea.vmem %s0, %s584
      %p586 = scmp.lt.s32.totalorder %s29, 1
      %s587 = scalar_select %p586, %s29, 1
      %s588 = smul.addr %s587, 16
      %s589 = smul.addr %s588, 8
      %s590 = scalar_lea.vmem %s1, %s589
      %p591 = scmp.lt.s32.totalorder %s29, 1
      %s592 = scalar_select %p591, %s29, 1
      %s593 = smul.addr %s592, 32
      %s594 = smul.addr %s593, 8
      %s595 = scalar_lea.vmem %s18, %s594
      %v597 = vld [vmem:[%s585] sm:$0xff]
      %v598 = vld [vmem:[%s585 + $0x8] sm:$0xff]
      %v599 = vld [vmem:[%s585 + $0x10] sm:$0xff]
      %v600 = vld [vmem:[%s585 + $0x18] sm:$0xff]
      %v601 = vld [vmem:[%s585 + $0x20] sm:$0xff]
      %v602 = vld [vmem:[%s585 + $0x28] sm:$0xff]
      %v603 = vld [vmem:[%s585 + $0x30] sm:$0xff]
      %v604 = vld [vmem:[%s585 + $0x38] sm:$0xff]
      %v605 = vld [vmem:[%s585 + $0x40] sm:$0xff]
      %v606 = vld [vmem:[%s585 + $0x48] sm:$0xff]
      %v607 = vld [vmem:[%s585 + $0x50] sm:$0xff]
      %v608 = vld [vmem:[%s585 + $0x58] sm:$0xff]
      %v609 = vld [vmem:[%s585 + $0x60] sm:$0xff]
      %v610 = vld [vmem:[%s585 + $0x68] sm:$0xff]
      %v611 = vld [vmem:[%s585 + $0x70] sm:$0xff]
      %v612 = vld [vmem:[%s585 + $0x78] sm:$0xff]
      %v613 = vld [vmem:[%s585 + $0x80] sm:$0xff]
      %v614 = vld [vmem:[%s585 + $0x88] sm:$0xff]
      %v615 = vld [vmem:[%s585 + $0x90] sm:$0xff]
      %v616 = vld [vmem:[%s585 + $0x98] sm:$0xff]
      %v617 = vld [vmem:[%s585 + $0xa0] sm:$0xff]
      %v618 = vld [vmem:[%s585 + $0xa8] sm:$0xff]
      %v619 = vld [vmem:[%s585 + $0xb0] sm:$0xff]
      %v620 = vld [vmem:[%s585 + $0xb8] sm:$0xff]
      %v621 = vld [vmem:[%s585 + $0xc0] sm:$0xff]
      %v622 = vld [vmem:[%s585 + $0xc8] sm:$0xff]
      %v623 = vld [vmem:[%s585 + $0xd0] sm:$0xff]
      %v624 = vld [vmem:[%s585 + $0xd8] sm:$0xff]
      %v625 = vld [vmem:[%s585 + $0xe0] sm:$0xff]
      %v626 = vld [vmem:[%s585 + $0xe8] sm:$0xff]
      %v627 = vld [vmem:[%s585 + $0xf0] sm:$0xff]
      %v628 = vld [vmem:[%s585 + $0xf8] sm:$0xff]
      %v629 = vld [vmem:[%s12] sm:$0x1]
      %v630 = vld [vmem:[%s13] sm:$0x1]
      %vm631 = vcmask 261120
      %v632 = vsel %vm631, %v597, 0.0
      %633 = vadd.xlane.f32.xlu0 %v632
      %v634 = vpop.xlane.xlu0 %633
      %v635 = vsel %vm631, %v598, 0.0
      %636 = vadd.xlane.f32.xlu0 %v635
      %v637 = vpop.xlane.xlu0 %636
      %v638 = vsel %vm631, %v599, 0.0
      %639 = vadd.xlane.f32.xlu0 %v638
      %v640 = vpop.xlane.xlu0 %639
      %v641 = vsel %vm631, %v600, 0.0
      %642 = vadd.xlane.f32.xlu0 %v641
      %v643 = vpop.xlane.xlu0 %642
      %v644 = vsel %vm631, %v601, 0.0
      %645 = vadd.xlane.f32.xlu0 %v644
      %v646 = vpop.xlane.xlu0 %645
      %v647 = vsel %vm631, %v602, 0.0
      %648 = vadd.xlane.f32.xlu0 %v647
      %v649 = vpop.xlane.xlu0 %648
      %v650 = vsel %vm631, %v603, 0.0
      %651 = vadd.xlane.f32.xlu0 %v650
      %v652 = vpop.xlane.xlu0 %651
      %v653 = vsel %vm631, %v604, 0.0
      %654 = vadd.xlane.f32.xlu0 %v653
      %v655 = vpop.xlane.xlu0 %654
      %v656 = vsel %vm631, %v605, 0.0
      %657 = vadd.xlane.f32.xlu0 %v656
      %v658 = vpop.xlane.xlu0 %657
      %v659 = vsel %vm631, %v606, 0.0
      %660 = vadd.xlane.f32.xlu0 %v659
      %v661 = vpop.xlane.xlu0 %660
      %v662 = vsel %vm631, %v607, 0.0
      %663 = vadd.xlane.f32.xlu0 %v662
      %v664 = vpop.xlane.xlu0 %663
      %v665 = vsel %vm631, %v608, 0.0
      %666 = vadd.xlane.f32.xlu0 %v665
      %v667 = vpop.xlane.xlu0 %666
      %v668 = vsel %vm631, %v609, 0.0
      %669 = vadd.xlane.f32.xlu0 %v668
      %v670 = vpop.xlane.xlu0 %669
      %v671 = vsel %vm631, %v610, 0.0
      %672 = vadd.xlane.f32.xlu0 %v671
      %v673 = vpop.xlane.xlu0 %672
      %v674 = vsel %vm631, %v611, 0.0
      %675 = vadd.xlane.f32.xlu0 %v674
      %v676 = vpop.xlane.xlu0 %675
      %v677 = vsel %vm631, %v612, 0.0
      %678 = vadd.xlane.f32.xlu0 %v677
      %v679 = vpop.xlane.xlu0 %678
      %v680 = vsel %vm631, %v613, 0.0
      %681 = vadd.xlane.f32.xlu0 %v680
      %v682 = vpop.xlane.xlu0 %681
      %v683 = vsel %vm631, %v614, 0.0
      %684 = vadd.xlane.f32.xlu0 %v683
      %v685 = vpop.xlane.xlu0 %684
      %v686 = vsel %vm631, %v615, 0.0
      %687 = vadd.xlane.f32.xlu0 %v686
      %v688 = vpop.xlane.xlu0 %687
      %v689 = vsel %vm631, %v616, 0.0
      %690 = vadd.xlane.f32.xlu0 %v689
      %v691 = vpop.xlane.xlu0 %690
      %v692 = vsel %vm631, %v617, 0.0
      %693 = vadd.xlane.f32.xlu0 %v692
      %v694 = vpop.xlane.xlu0 %693
      %v695 = vsel %vm631, %v618, 0.0
      %696 = vadd.xlane.f32.xlu0 %v695
      %v697 = vpop.xlane.xlu0 %696
      %v698 = vsel %vm631, %v619, 0.0
      %699 = vadd.xlane.f32.xlu0 %v698
      %v700 = vpop.xlane.xlu0 %699
      %v701 = vsel %vm631, %v620, 0.0
      %702 = vadd.xlane.f32.xlu0 %v701
      %v703 = vpop.xlane.xlu0 %702
      %v704 = vsel %vm631, %v621, 0.0
      %705 = vadd.xlane.f32.xlu0 %v704
      %v706 = vpop.xlane.xlu0 %705
      %v707 = vsel %vm631, %v622, 0.0
      %708 = vadd.xlane.f32.xlu0 %v707
      %v709 = vpop.xlane.xlu0 %708
      %v710 = vsel %vm631, %v623, 0.0
      %711 = vadd.xlane.f32.xlu0 %v710
      %v712 = vpop.xlane.xlu0 %711
      %v713 = vsel %vm631, %v624, 0.0
      %714 = vadd.xlane.f32.xlu0 %v713
      %v715 = vpop.xlane.xlu0 %714
      %v716 = vsel %vm631, %v625, 0.0
      %717 = vadd.xlane.f32.xlu0 %v716
      %v718 = vpop.xlane.xlu0 %717
      %v719 = vsel %vm631, %v626, 0.0
      %720 = vadd.xlane.f32.xlu0 %v719
      %v721 = vpop.xlane.xlu0 %720
      %v722 = vsel %vm631, %v627, 0.0
      %723 = vadd.xlane.f32.xlu0 %v722
      %v724 = vpop.xlane.xlu0 %723
      %v725 = vsel %vm631, %v628, 0.0
      %726 = vadd.xlane.f32.xlu0 %v725
      %v727 = vpop.xlane.xlu0 %726
      %v728 = vrcp.pop 32.0
      %v729 = vmul.f32 32.0, %v728
      %v730 = vsub.f32 1.0, %v729
      %v731 = vmul.f32 %v728, %v730
      %v732 = vadd.f32 %v728, %v731
      %vm733 = vweird.f32 %v728
      %v734 = vsel %vm733, %v728, %v732
      %v735 = vmul.f32 %v634, %v734
      %v736 = vmul.f32 %v637, %v734
      %v737 = vmul.f32 %v640, %v734
      %v738 = vmul.f32 %v643, %v734
      %v739 = vmul.f32 %v646, %v734
      %v740 = vmul.f32 %v649, %v734
      %v741 = vmul.f32 %v652, %v734
      %v742 = vmul.f32 %v655, %v734
      %v743 = vmul.f32 %v658, %v734
      %v744 = vmul.f32 %v661, %v734
      %v745 = vmul.f32 %v664, %v734
      %v746 = vmul.f32 %v667, %v734
      %v747 = vmul.f32 %v670, %v734
      %v748 = vmul.f32 %v673, %v734
      %v749 = vmul.f32 %v676, %v734
      %v750 = vmul.f32 %v679, %v734
      %v751 = vmul.f32 %v682, %v734
      %v752 = vmul.f32 %v685, %v734
      %v753 = vmul.f32 %v688, %v734
      %v754 = vmul.f32 %v691, %v734
      %v755 = vmul.f32 %v694, %v734
      %v756 = vmul.f32 %v697, %v734
      %v757 = vmul.f32 %v700, %v734
      %v758 = vmul.f32 %v703, %v734
      %v759 = vmul.f32 %v706, %v734
      %v760 = vmul.f32 %v709, %v734
      %v761 = vmul.f32 %v712, %v734
      %v762 = vmul.f32 %v715, %v734
      %v763 = vmul.f32 %v718, %v734
      %v764 = vmul.f32 %v721, %v734
      %v765 = vmul.f32 %v724, %v734
      %v766 = vmul.f32 %v727, %v734
      %v767 = vsub.f32 %v597, %v735
      %v768 = vsub.f32 %v598, %v736
      %v769 = vsub.f32 %v599, %v737
      %v770 = vsub.f32 %v600, %v738
      %v771 = vsub.f32 %v601, %v739
      %v772 = vsub.f32 %v602, %v740
      %v773 = vsub.f32 %v603, %v741
      %v774 = vsub.f32 %v604, %v742
      %v775 = vsub.f32 %v605, %v743
      %v776 = vsub.f32 %v606, %v744
      %v777 = vsub.f32 %v607, %v745
      %v778 = vsub.f32 %v608, %v746
      %v779 = vsub.f32 %v609, %v747
      %v780 = vsub.f32 %v610, %v748
      %v781 = vsub.f32 %v611, %v749
      %v782 = vsub.f32 %v612, %v750
      %v783 = vsub.f32 %v613, %v751
      %v784 = vsub.f32 %v614, %v752
      %v785 = vsub.f32 %v615, %v753
      %v786 = vsub.f32 %v616, %v754
      %v787 = vsub.f32 %v617, %v755
      %v788 = vsub.f32 %v618, %v756
      %v789 = vsub.f32 %v619, %v757
      %v790 = vsub.f32 %v620, %v758
      %v791 = vsub.f32 %v621, %v759
      %v792 = vsub.f32 %v622, %v760
      %v793 = vsub.f32 %v623, %v761
      %v794 = vsub.f32 %v624, %v762
      %v795 = vsub.f32 %v625, %v763
      %v796 = vsub.f32 %v626, %v764
      %v797 = vsub.f32 %v627, %v765
      %v798 = vsub.f32 %v628, %v766
      %v799 = vmul.f32 %v767, %v767
      %v800 = vmul.f32 %v768, %v768
      %v801 = vmul.f32 %v769, %v769
      %v802 = vmul.f32 %v770, %v770
      %v803 = vmul.f32 %v771, %v771
      %v804 = vmul.f32 %v772, %v772
      %v805 = vmul.f32 %v773, %v773
      %v806 = vmul.f32 %v774, %v774
      %v807 = vmul.f32 %v775, %v775
      %v808 = vmul.f32 %v776, %v776
      %v809 = vmul.f32 %v777, %v777
      %v810 = vmul.f32 %v778, %v778
      %v811 = vmul.f32 %v779, %v779
      %v812 = vmul.f32 %v780, %v780
      %v813 = vmul.f32 %v781, %v781
      %v814 = vmul.f32 %v782, %v782
      %v815 = vmul.f32 %v783, %v783
      %v816 = vmul.f32 %v784, %v784
      %v817 = vmul.f32 %v785, %v785
      %v818 = vmul.f32 %v786, %v786
      %v819 = vmul.f32 %v787, %v787
      %v820 = vmul.f32 %v788, %v788
      %v821 = vmul.f32 %v789, %v789
      %v822 = vmul.f32 %v790, %v790
      %v823 = vmul.f32 %v791, %v791
      %v824 = vmul.f32 %v792, %v792
      %v825 = vmul.f32 %v793, %v793
      %v826 = vmul.f32 %v794, %v794
      %v827 = vmul.f32 %v795, %v795
      %v828 = vmul.f32 %v796, %v796
      %v829 = vmul.f32 %v797, %v797
      %v830 = vmul.f32 %v798, %v798
      %v831 = vsel %vm631, %v799, 0.0
      %832 = vadd.xlane.f32.xlu0 %v831
      %v833 = vpop.xlane.xlu0 %832
      %v834 = vsel %vm631, %v800, 0.0
      %835 = vadd.xlane.f32.xlu0 %v834
      %v836 = vpop.xlane.xlu0 %835
      %v837 = vsel %vm631, %v801, 0.0
      %838 = vadd.xlane.f32.xlu0 %v837
      %v839 = vpop.xlane.xlu0 %838
      %v840 = vsel %vm631, %v802, 0.0
      %841 = vadd.xlane.f32.xlu0 %v840
      %v842 = vpop.xlane.xlu0 %841
      %v843 = vsel %vm631, %v803, 0.0
      %844 = vadd.xlane.f32.xlu0 %v843
      %v845 = vpop.xlane.xlu0 %844
      %v846 = vsel %vm631, %v804, 0.0
      %847 = vadd.xlane.f32.xlu0 %v846
      %v848 = vpop.xlane.xlu0 %847
      %v849 = vsel %vm631, %v805, 0.0
      %850 = vadd.xlane.f32.xlu0 %v849
      %v851 = vpop.xlane.xlu0 %850
      %v852 = vsel %vm631, %v806, 0.0
      %853 = vadd.xlane.f32.xlu0 %v852
      %v854 = vpop.xlane.xlu0 %853
      %v855 = vsel %vm631, %v807, 0.0
      %856 = vadd.xlane.f32.xlu0 %v855
      %v857 = vpop.xlane.xlu0 %856
      %v858 = vsel %vm631, %v808, 0.0
      %859 = vadd.xlane.f32.xlu0 %v858
      %v860 = vpop.xlane.xlu0 %859
      %v861 = vsel %vm631, %v809, 0.0
      %862 = vadd.xlane.f32.xlu0 %v861
      %v863 = vpop.xlane.xlu0 %862
      %v864 = vsel %vm631, %v810, 0.0
      %865 = vadd.xlane.f32.xlu0 %v864
      %v866 = vpop.xlane.xlu0 %865
      %v867 = vsel %vm631, %v811, 0.0
      %868 = vadd.xlane.f32.xlu0 %v867
      %v869 = vpop.xlane.xlu0 %868
      %v870 = vsel %vm631, %v812, 0.0
      %871 = vadd.xlane.f32.xlu0 %v870
      %v872 = vpop.xlane.xlu0 %871
      %v873 = vsel %vm631, %v813, 0.0
      %874 = vadd.xlane.f32.xlu0 %v873
      %v875 = vpop.xlane.xlu0 %874
      %v876 = vsel %vm631, %v814, 0.0
      %877 = vadd.xlane.f32.xlu0 %v876
      %v878 = vpop.xlane.xlu0 %877
      %v879 = vsel %vm631, %v815, 0.0
      %880 = vadd.xlane.f32.xlu0 %v879
      %v881 = vpop.xlane.xlu0 %880
      %v882 = vsel %vm631, %v816, 0.0
      %883 = vadd.xlane.f32.xlu0 %v882
      %v884 = vpop.xlane.xlu0 %883
      %v885 = vsel %vm631, %v817, 0.0
      %886 = vadd.xlane.f32.xlu0 %v885
      %v887 = vpop.xlane.xlu0 %886
      %v888 = vsel %vm631, %v818, 0.0
      %889 = vadd.xlane.f32.xlu0 %v888
      %v890 = vpop.xlane.xlu0 %889
      %v891 = vsel %vm631, %v819, 0.0
      %892 = vadd.xlane.f32.xlu0 %v891
      %v893 = vpop.xlane.xlu0 %892
      %v894 = vsel %vm631, %v820, 0.0
      %895 = vadd.xlane.f32.xlu0 %v894
      %v896 = vpop.xlane.xlu0 %895
      %v897 = vsel %vm631, %v821, 0.0
      %898 = vadd.xlane.f32.xlu0 %v897
      %v899 = vpop.xlane.xlu0 %898
      %v900 = vsel %vm631, %v822, 0.0
      %901 = vadd.xlane.f32.xlu0 %v900
      %v902 = vpop.xlane.xlu0 %901
      %v903 = vsel %vm631, %v823, 0.0
      %904 = vadd.xlane.f32.xlu0 %v903
      %v905 = vpop.xlane.xlu0 %904
      %v906 = vsel %vm631, %v824, 0.0
      %907 = vadd.xlane.f32.xlu0 %v906
      %v908 = vpop.xlane.xlu0 %907
      %v909 = vsel %vm631, %v825, 0.0
      %910 = vadd.xlane.f32.xlu0 %v909
      %v911 = vpop.xlane.xlu0 %910
      %v912 = vsel %vm631, %v826, 0.0
      %913 = vadd.xlane.f32.xlu0 %v912
      %v914 = vpop.xlane.xlu0 %913
      %v915 = vsel %vm631, %v827, 0.0
      %916 = vadd.xlane.f32.xlu0 %v915
      %v917 = vpop.xlane.xlu0 %916
      %v918 = vsel %vm631, %v828, 0.0
      %919 = vadd.xlane.f32.xlu0 %v918
      %v920 = vpop.xlane.xlu0 %919
      %v921 = vsel %vm631, %v829, 0.0
      %922 = vadd.xlane.f32.xlu0 %v921
      %v923 = vpop.xlane.xlu0 %922
      %v924 = vsel %vm631, %v830, 0.0
      %925 = vadd.xlane.f32.xlu0 %v924
      %v926 = vpop.xlane.xlu0 %925
      %v927 = vmul.f32 %v833, %v734
      %v928 = vmul.f32 %v836, %v734
      %v929 = vmul.f32 %v839, %v734
      %v930 = vmul.f32 %v842, %v734
      %v931 = vmul.f32 %v845, %v734
      %v932 = vmul.f32 %v848, %v734
      %v933 = vmul.f32 %v851, %v734
      %v934 = vmul.f32 %v854, %v734
      %v935 = vmul.f32 %v857, %v734
      %v936 = vmul.f32 %v860, %v734
      %v937 = vmul.f32 %v863, %v734
      %v938 = vmul.f32 %v866, %v734
      %v939 = vmul.f32 %v869, %v734
      %v940 = vmul.f32 %v872, %v734
      %v941 = vmul.f32 %v875, %v734
      %v942 = vmul.f32 %v878, %v734
      %v943 = vmul.f32 %v881, %v734
      %v944 = vmul.f32 %v884, %v734
      %v945 = vmul.f32 %v887, %v734
      %v946 = vmul.f32 %v890, %v734
      %v947 = vmul.f32 %v893, %v734
      %v948 = vmul.f32 %v896, %v734
      %v949 = vmul.f32 %v899, %v734
      %v950 = vmul.f32 %v902, %v734
      %v951 = vmul.f32 %v905, %v734
      %v952 = vmul.f32 %v908, %v734
      %v953 = vmul.f32 %v911, %v734
      %v954 = vmul.f32 %v914, %v734
      %v955 = vmul.f32 %v917, %v734
      %v956 = vmul.f32 %v920, %v734
      %v957 = vmul.f32 %v923, %v734
      %v958 = vmul.f32 %v926, %v734
      %v959 = vadd.f32 %v927, 1e-05
      %v960 = vadd.f32 %v928, 1e-05
      %v961 = vadd.f32 %v929, 1e-05
      %v962 = vadd.f32 %v930, 1e-05
      %v963 = vadd.f32 %v931, 1e-05
      %v964 = vadd.f32 %v932, 1e-05
      %v965 = vadd.f32 %v933, 1e-05
      %v966 = vadd.f32 %v934, 1e-05
      %v967 = vadd.f32 %v935, 1e-05
      %v968 = vadd.f32 %v936, 1e-05
      %v969 = vadd.f32 %v937, 1e-05
      %v970 = vadd.f32 %v938, 1e-05
      %v971 = vadd.f32 %v939, 1e-05
      %v972 = vadd.f32 %v940, 1e-05
      %v973 = vadd.f32 %v941, 1e-05
      %v974 = vadd.f32 %v942, 1e-05
      %v975 = vadd.f32 %v943, 1e-05
      %v976 = vadd.f32 %v944, 1e-05
      %v977 = vadd.f32 %v945, 1e-05
      %v978 = vadd.f32 %v946, 1e-05
      %v979 = vadd.f32 %v947, 1e-05
      %v980 = vadd.f32 %v948, 1e-05
      %v981 = vadd.f32 %v949, 1e-05
      %v982 = vadd.f32 %v950, 1e-05
      %v983 = vadd.f32 %v951, 1e-05
      %v984 = vadd.f32 %v952, 1e-05
      %v985 = vadd.f32 %v953, 1e-05
      %v986 = vadd.f32 %v954, 1e-05
      %v987 = vadd.f32 %v955, 1e-05
      %v988 = vadd.f32 %v956, 1e-05
      %v989 = vadd.f32 %v957, 1e-05
      %v990 = vadd.f32 %v958, 1e-05
      %v991 = vrsqrt.pop %v959
      %v992 = vmul.f32 %v991, %v959
      %v993 = vmul.f32 %v992, %v991
      %v994 = vmul.f32 0.5, %v993
      %v995 = vsub.f32 1.5, %v994
      %v996 = vmul.f32 %v991, %v995
      %vm997 = vweird.f32 %v959
      %vm998 = vweird.f32 %v991
      %vm999 = vmor %vm997, %vm998
      %v1000 = vsel %vm999, %v991, %v996
      %v1001 = vrsqrt.pop %v960
      %v1002 = vmul.f32 %v1001, %v960
      %v1003 = vmul.f32 %v1002, %v1001
      %v1004 = vmul.f32 0.5, %v1003
      %v1005 = vsub.f32 1.5, %v1004
      %v1006 = vmul.f32 %v1001, %v1005
      %vm1007 = vweird.f32 %v960
      %vm1008 = vweird.f32 %v1001
      %vm1009 = vmor %vm1007, %vm1008
      %v1010 = vsel %vm1009, %v1001, %v1006
      %v1011 = vrsqrt.pop %v961
      %v1012 = vmul.f32 %v1011, %v961
      %v1013 = vmul.f32 %v1012, %v1011
      %v1014 = vmul.f32 0.5, %v1013
      %v1015 = vsub.f32 1.5, %v1014
      %v1016 = vmul.f32 %v1011, %v1015
      %vm1017 = vweird.f32 %v961
      %vm1018 = vweird.f32 %v1011
      %vm1019 = vmor %vm1017, %vm1018
      %v1020 = vsel %vm1019, %v1011, %v1016
      %v1021 = vrsqrt.pop %v962
      %v1022 = vmul.f32 %v1021, %v962
      %v1023 = vmul.f32 %v1022, %v1021
      %v1024 = vmul.f32 0.5, %v1023
      %v1025 = vsub.f32 1.5, %v1024
      %v1026 = vmul.f32 %v1021, %v1025
      %vm1027 = vweird.f32 %v962
      %vm1028 = vweird.f32 %v1021
      %vm1029 = vmor %vm1027, %vm1028
      %v1030 = vsel %vm1029, %v1021, %v1026
      %v1031 = vrsqrt.pop %v963
      %v1032 = vmul.f32 %v1031, %v963
      %v1033 = vmul.f32 %v1032, %v1031
      %v1034 = vmul.f32 0.5, %v1033
      %v1035 = vsub.f32 1.5, %v1034
      %v1036 = vmul.f32 %v1031, %v1035
      %vm1037 = vweird.f32 %v963
      %vm1038 = vweird.f32 %v1031
      %vm1039 = vmor %vm1037, %vm1038
      %v1040 = vsel %vm1039, %v1031, %v1036
      %v1041 = vrsqrt.pop %v964
      %v1042 = vmul.f32 %v1041, %v964
      %v1043 = vmul.f32 %v1042, %v1041
      %v1044 = vmul.f32 0.5, %v1043
      %v1045 = vsub.f32 1.5, %v1044
      %v1046 = vmul.f32 %v1041, %v1045
      %vm1047 = vweird.f32 %v964
      %vm1048 = vweird.f32 %v1041
      %vm1049 = vmor %vm1047, %vm1048
      %v1050 = vsel %vm1049, %v1041, %v1046
      %v1051 = vrsqrt.pop %v965
      %v1052 = vmul.f32 %v1051, %v965
      %v1053 = vmul.f32 %v1052, %v1051
      %v1054 = vmul.f32 0.5, %v1053
      %v1055 = vsub.f32 1.5, %v1054
      %v1056 = vmul.f32 %v1051, %v1055
      %vm1057 = vweird.f32 %v965
      %vm1058 = vweird.f32 %v1051
      %vm1059 = vmor %vm1057, %vm1058
      %v1060 = vsel %vm1059, %v1051, %v1056
      %v1061 = vrsqrt.pop %v966
      %v1062 = vmul.f32 %v1061, %v966
      %v1063 = vmul.f32 %v1062, %v1061
      %v1064 = vmul.f32 0.5, %v1063
      %v1065 = vsub.f32 1.5, %v1064
      %v1066 = vmul.f32 %v1061, %v1065
      %vm1067 = vweird.f32 %v966
      %vm1068 = vweird.f32 %v1061
      %vm1069 = vmor %vm1067, %vm1068
      %v1070 = vsel %vm1069, %v1061, %v1066
      %v1071 = vrsqrt.pop %v967
      %v1072 = vmul.f32 %v1071, %v967
      %v1073 = vmul.f32 %v1072, %v1071
      %v1074 = vmul.f32 0.5, %v1073
      %v1075 = vsub.f32 1.5, %v1074
      %v1076 = vmul.f32 %v1071, %v1075
      %vm1077 = vweird.f32 %v967
      %vm1078 = vweird.f32 %v1071
      %vm1079 = vmor %vm1077, %vm1078
      %v1080 = vsel %vm1079, %v1071, %v1076
      %v1081 = vrsqrt.pop %v968
      %v1082 = vmul.f32 %v1081, %v968
      %v1083 = vmul.f32 %v1082, %v1081
      %v1084 = vmul.f32 0.5, %v1083
      %v1085 = vsub.f32 1.5, %v1084
      %v1086 = vmul.f32 %v1081, %v1085
      %vm1087 = vweird.f32 %v968
      %vm1088 = vweird.f32 %v1081
      %vm1089 = vmor %vm1087, %vm1088
      %v1090 = vsel %vm1089, %v1081, %v1086
      %v1091 = vrsqrt.pop %v969
      %v1092 = vmul.f32 %v1091, %v969
      %v1093 = vmul.f32 %v1092, %v1091
      %v1094 = vmul.f32 0.5, %v1093
      %v1095 = vsub.f32 1.5, %v1094
      %v1096 = vmul.f32 %v1091, %v1095
      %vm1097 = vweird.f32 %v969
      %vm1098 = vweird.f32 %v1091
      %vm1099 = vmor %vm1097, %vm1098
      %v1100 = vsel %vm1099, %v1091, %v1096
      %v1101 = vrsqrt.pop %v970
      %v1102 = vmul.f32 %v1101, %v970
      %v1103 = vmul.f32 %v1102, %v1101
      %v1104 = vmul.f32 0.5, %v1103
      %v1105 = vsub.f32 1.5, %v1104
      %v1106 = vmul.f32 %v1101, %v1105
      %vm1107 = vweird.f32 %v970
      %vm1108 = vweird.f32 %v1101
      %vm1109 = vmor %vm1107, %vm1108
      %v1110 = vsel %vm1109, %v1101, %v1106
      %v1111 = vrsqrt.pop %v971
      %v1112 = vmul.f32 %v1111, %v971
      %v1113 = vmul.f32 %v1112, %v1111
      %v1114 = vmul.f32 0.5, %v1113
      %v1115 = vsub.f32 1.5, %v1114
      %v1116 = vmul.f32 %v1111, %v1115
      %vm1117 = vweird.f32 %v971
      %vm1118 = vweird.f32 %v1111
      %vm1119 = vmor %vm1117, %vm1118
      %v1120 = vsel %vm1119, %v1111, %v1116
      %v1121 = vrsqrt.pop %v972
      %v1122 = vmul.f32 %v1121, %v972
      %v1123 = vmul.f32 %v1122, %v1121
      %v1124 = vmul.f32 0.5, %v1123
      %v1125 = vsub.f32 1.5, %v1124
      %v1126 = vmul.f32 %v1121, %v1125
      %vm1127 = vweird.f32 %v972
      %vm1128 = vweird.f32 %v1121
      %vm1129 = vmor %vm1127, %vm1128
      %v1130 = vsel %vm1129, %v1121, %v1126
      %v1131 = vrsqrt.pop %v973
      %v1132 = vmul.f32 %v1131, %v973
      %v1133 = vmul.f32 %v1132, %v1131
      %v1134 = vmul.f32 0.5, %v1133
      %v1135 = vsub.f32 1.5, %v1134
      %v1136 = vmul.f32 %v1131, %v1135
      %vm1137 = vweird.f32 %v973
      %vm1138 = vweird.f32 %v1131
      %vm1139 = vmor %vm1137, %vm1138
      %v1140 = vsel %vm1139, %v1131, %v1136
      %v1141 = vrsqrt.pop %v974
      %v1142 = vmul.f32 %v1141, %v974
      %v1143 = vmul.f32 %v1142, %v1141
      %v1144 = vmul.f32 0.5, %v1143
      %v1145 = vsub.f32 1.5, %v1144
      %v1146 = vmul.f32 %v1141, %v1145
      %vm1147 = vweird.f32 %v974
      %vm1148 = vweird.f32 %v1141
      %vm1149 = vmor %vm1147, %vm1148
      %v1150 = vsel %vm1149, %v1141, %v1146
      %v1151 = vrsqrt.pop %v975
      %v1152 = vmul.f32 %v1151, %v975
      %v1153 = vmul.f32 %v1152, %v1151
      %v1154 = vmul.f32 0.5, %v1153
      %v1155 = vsub.f32 1.5, %v1154
      %v1156 = vmul.f32 %v1151, %v1155
      %vm1157 = vweird.f32 %v975
      %vm1158 = vweird.f32 %v1151
      %vm1159 = vmor %vm1157, %vm1158
      %v1160 = vsel %vm1159, %v1151, %v1156
      %v1161 = vrsqrt.pop %v976
      %v1162 = vmul.f32 %v1161, %v976
      %v1163 = vmul.f32 %v1162, %v1161
      %v1164 = vmul.f32 0.5, %v1163
      %v1165 = vsub.f32 1.5, %v1164
      %v1166 = vmul.f32 %v1161, %v1165
      %vm1167 = vweird.f32 %v976
      %vm1168 = vweird.f32 %v1161
      %vm1169 = vmor %vm1167, %vm1168
      %v1170 = vsel %vm1169, %v1161, %v1166
      %v1171 = vrsqrt.pop %v977
      %v1172 = vmul.f32 %v1171, %v977
      %v1173 = vmul.f32 %v1172, %v1171
      %v1174 = vmul.f32 0.5, %v1173
      %v1175 = vsub.f32 1.5, %v1174
      %v1176 = vmul.f32 %v1171, %v1175
      %vm1177 = vweird.f32 %v977
      %vm1178 = vweird.f32 %v1171
      %vm1179 = vmor %vm1177, %vm1178
      %v1180 = vsel %vm1179, %v1171, %v1176
      %v1181 = vrsqrt.pop %v978
      %v1182 = vmul.f32 %v1181, %v978
      %v1183 = vmul.f32 %v1182, %v1181
      %v1184 = vmul.f32 0.5, %v1183
      %v1185 = vsub.f32 1.5, %v1184
      %v1186 = vmul.f32 %v1181, %v1185
      %vm1187 = vweird.f32 %v978
      %vm1188 = vweird.f32 %v1181
      %vm1189 = vmor %vm1187, %vm1188
      %v1190 = vsel %vm1189, %v1181, %v1186
      %v1191 = vrsqrt.pop %v979
      %v1192 = vmul.f32 %v1191, %v979
      %v1193 = vmul.f32 %v1192, %v1191
      %v1194 = vmul.f32 0.5, %v1193
      %v1195 = vsub.f32 1.5, %v1194
      %v1196 = vmul.f32 %v1191, %v1195
      %vm1197 = vweird.f32 %v979
      %vm1198 = vweird.f32 %v1191
      %vm1199 = vmor %vm1197, %vm1198
      %v1200 = vsel %vm1199, %v1191, %v1196
      %v1201 = vrsqrt.pop %v980
      %v1202 = vmul.f32 %v1201, %v980
      %v1203 = vmul.f32 %v1202, %v1201
      %v1204 = vmul.f32 0.5, %v1203
      %v1205 = vsub.f32 1.5, %v1204
      %v1206 = vmul.f32 %v1201, %v1205
      %vm1207 = vweird.f32 %v980
      %vm1208 = vweird.f32 %v1201
      %vm1209 = vmor %vm1207, %vm1208
      %v1210 = vsel %vm1209, %v1201, %v1206
      %v1211 = vrsqrt.pop %v981
      %v1212 = vmul.f32 %v1211, %v981
      %v1213 = vmul.f32 %v1212, %v1211
      %v1214 = vmul.f32 0.5, %v1213
      %v1215 = vsub.f32 1.5, %v1214
      %v1216 = vmul.f32 %v1211, %v1215
      %vm1217 = vweird.f32 %v981
      %vm1218 = vweird.f32 %v1211
      %vm1219 = vmor %vm1217, %vm1218
      %v1220 = vsel %vm1219, %v1211, %v1216
      %v1221 = vrsqrt.pop %v982
      %v1222 = vmul.f32 %v1221, %v982
      %v1223 = vmul.f32 %v1222, %v1221
      %v1224 = vmul.f32 0.5, %v1223
      %v1225 = vsub.f32 1.5, %v1224
      %v1226 = vmul.f32 %v1221, %v1225
      %vm1227 = vweird.f32 %v982
      %vm1228 = vweird.f32 %v1221
      %vm1229 = vmor %vm1227, %vm1228
      %v1230 = vsel %vm1229, %v1221, %v1226
      %v1231 = vrsqrt.pop %v983
      %v1232 = vmul.f32 %v1231, %v983
      %v1233 = vmul.f32 %v1232, %v1231
      %v1234 = vmul.f32 0.5, %v1233
      %v1235 = vsub.f32 1.5, %v1234
      %v1236 = vmul.f32 %v1231, %v1235
      %vm1237 = vweird.f32 %v983
      %vm1238 = vweird.f32 %v1231
      %vm1239 = vmor %vm1237, %vm1238
      %v1240 = vsel %vm1239, %v1231, %v1236
      %v1241 = vrsqrt.pop %v984
      %v1242 = vmul.f32 %v1241, %v984
      %v1243 = vmul.f32 %v1242, %v1241
      %v1244 = vmul.f32 0.5, %v1243
      %v1245 = vsub.f32 1.5, %v1244
      %v1246 = vmul.f32 %v1241, %v1245
      %vm1247 = vweird.f32 %v984
      %vm1248 = vweird.f32 %v1241
      %vm1249 = vmor %vm1247, %vm1248
      %v1250 = vsel %vm1249, %v1241, %v1246
      %v1251 = vrsqrt.pop %v985
      %v1252 = vmul.f32 %v1251, %v985
      %v1253 = vmul.f32 %v1252, %v1251
      %v1254 = vmul.f32 0.5, %v1253
      %v1255 = vsub.f32 1.5, %v1254
      %v1256 = vmul.f32 %v1251, %v1255
      %vm1257 = vweird.f32 %v985
      %vm1258 = vweird.f32 %v1251
      %vm1259 = vmor %vm1257, %vm1258
      %v1260 = vsel %vm1259, %v1251, %v1256
      %v1261 = vrsqrt.pop %v986
      %v1262 = vmul.f32 %v1261, %v986
      %v1263 = vmul.f32 %v1262, %v1261
      %v1264 = vmul.f32 0.5, %v1263
      %v1265 = vsub.f32 1.5, %v1264
      %v1266 = vmul.f32 %v1261, %v1265
      %vm1267 = vweird.f32 %v986
      %vm1268 = vweird.f32 %v1261
      %vm1269 = vmor %vm1267, %vm1268
      %v1270 = vsel %vm1269, %v1261, %v1266
      %v1271 = vrsqrt.pop %v987
      %v1272 = vmul.f32 %v1271, %v987
      %v1273 = vmul.f32 %v1272, %v1271
      %v1274 = vmul.f32 0.5, %v1273
      %v1275 = vsub.f32 1.5, %v1274
      %v1276 = vmul.f32 %v1271, %v1275
      %vm1277 = vweird.f32 %v987
      %vm1278 = vweird.f32 %v1271
      %vm1279 = vmor %vm1277, %vm1278
      %v1280 = vsel %vm1279, %v1271, %v1276
      %v1281 = vrsqrt.pop %v988
      %v1282 = vmul.f32 %v1281, %v988
      %v1283 = vmul.f32 %v1282, %v1281
      %v1284 = vmul.f32 0.5, %v1283
      %v1285 = vsub.f32 1.5, %v1284
      %v1286 = vmul.f32 %v1281, %v1285
      %vm1287 = vweird.f32 %v988
      %vm1288 = vweird.f32 %v1281
      %vm1289 = vmor %vm1287, %vm1288
      %v1290 = vsel %vm1289, %v1281, %v1286
      %v1291 = vrsqrt.pop %v989
      %v1292 = vmul.f32 %v1291, %v989
      %v1293 = vmul.f32 %v1292, %v1291
      %v1294 = vmul.f32 0.5, %v1293
      %v1295 = vsub.f32 1.5, %v1294
      %v1296 = vmul.f32 %v1291, %v1295
      %vm1297 = vweird.f32 %v989
      %vm1298 = vweird.f32 %v1291
      %vm1299 = vmor %vm1297, %vm1298
      %v1300 = vsel %vm1299, %v1291, %v1296
      %v1301 = vrsqrt.pop %v990
      %v1302 = vmul.f32 %v1301, %v990
      %v1303 = vmul.f32 %v1302, %v1301
      %v1304 = vmul.f32 0.5, %v1303
      %v1305 = vsub.f32 1.5, %v1304
      %v1306 = vmul.f32 %v1301, %v1305
      %vm1307 = vweird.f32 %v990
      %vm1308 = vweird.f32 %v1301
      %vm1309 = vmor %vm1307, %vm1308
      %v1310 = vsel %vm1309, %v1301, %v1306
      %v1311 = vmul.f32 %v767, %v1000
      %v1312 = vmul.f32 %v768, %v1010
      %v1313 = vmul.f32 %v769, %v1020
      %v1314 = vmul.f32 %v770, %v1030
      %v1315 = vmul.f32 %v771, %v1040
      %v1316 = vmul.f32 %v772, %v1050
      %v1317 = vmul.f32 %v773, %v1060
      %v1318 = vmul.f32 %v774, %v1070
      %v1319 = vmul.f32 %v775, %v1080
      %v1320 = vmul.f32 %v776, %v1090
      %v1321 = vmul.f32 %v777, %v1100
      %v1322 = vmul.f32 %v778, %v1110
      %v1323 = vmul.f32 %v779, %v1120
      %v1324 = vmul.f32 %v780, %v1130
      %v1325 = vmul.f32 %v781, %v1140
      %v1326 = vmul.f32 %v782, %v1150
      %v1327 = vmul.f32 %v783, %v1160
      %v1328 = vmul.f32 %v784, %v1170
      %v1329 = vmul.f32 %v785, %v1180
      %v1330 = vmul.f32 %v786, %v1190
      %v1331 = vmul.f32 %v787, %v1200
      %v1332 = vmul.f32 %v788, %v1210
      %v1333 = vmul.f32 %v789, %v1220
      %v1334 = vmul.f32 %v790, %v1230
      %v1335 = vmul.f32 %v791, %v1240
      %v1336 = vmul.f32 %v792, %v1250
      %v1337 = vmul.f32 %v793, %v1260
      %v1338 = vmul.f32 %v794, %v1270
      %v1339 = vmul.f32 %v795, %v1280
      %v1340 = vmul.f32 %v796, %v1290
      %v1341 = vmul.f32 %v797, %v1300
      %v1342 = vmul.f32 %v798, %v1310
      %v1344 = vperm.slane %v629, 0
      %v1346 = vmul.f32 %v1311, %v1344
      %v1347 = vmul.f32 %v1312, %v1344
      %v1348 = vmul.f32 %v1313, %v1344
      %v1349 = vmul.f32 %v1314, %v1344
      %v1350 = vmul.f32 %v1315, %v1344
      %v1351 = vmul.f32 %v1316, %v1344
      %v1352 = vmul.f32 %v1317, %v1344
      %v1353 = vmul.f32 %v1318, %v1344
      %v1354 = vmul.f32 %v1319, %v1344
      %v1355 = vmul.f32 %v1320, %v1344
      %v1356 = vmul.f32 %v1321, %v1344
      %v1357 = vmul.f32 %v1322, %v1344
      %v1358 = vmul.f32 %v1323, %v1344
      %v1359 = vmul.f32 %v1324, %v1344
      %v1360 = vmul.f32 %v1325, %v1344
      %v1361 = vmul.f32 %v1326, %v1344
      %v1362 = vmul.f32 %v1327, %v1344
      %v1363 = vmul.f32 %v1328, %v1344
      %v1364 = vmul.f32 %v1329, %v1344
      %v1365 = vmul.f32 %v1330, %v1344
      %v1366 = vmul.f32 %v1331, %v1344
      %v1367 = vmul.f32 %v1332, %v1344
      %v1368 = vmul.f32 %v1333, %v1344
      %v1369 = vmul.f32 %v1334, %v1344
      %v1370 = vmul.f32 %v1335, %v1344
      %v1371 = vmul.f32 %v1336, %v1344
      %v1372 = vmul.f32 %v1337, %v1344
      %v1373 = vmul.f32 %v1338, %v1344
      %v1374 = vmul.f32 %v1339, %v1344
      %v1375 = vmul.f32 %v1340, %v1344
      %v1376 = vmul.f32 %v1341, %v1344
      %v1377 = vmul.f32 %v1342, %v1344
      %v1379 = vperm.slane %v630, 0
      %v1381 = vadd.f32 %v1346, %v1379
      %v1382 = vadd.f32 %v1347, %v1379
      %v1383 = vadd.f32 %v1348, %v1379
      %v1384 = vadd.f32 %v1349, %v1379
      %v1385 = vadd.f32 %v1350, %v1379
      %v1386 = vadd.f32 %v1351, %v1379
      %v1387 = vadd.f32 %v1352, %v1379
      %v1388 = vadd.f32 %v1353, %v1379
      %v1389 = vadd.f32 %v1354, %v1379
      %v1390 = vadd.f32 %v1355, %v1379
      %v1391 = vadd.f32 %v1356, %v1379
      %v1392 = vadd.f32 %v1357, %v1379
      %v1393 = vadd.f32 %v1358, %v1379
      %v1394 = vadd.f32 %v1359, %v1379
      %v1395 = vadd.f32 %v1360, %v1379
      %v1396 = vadd.f32 %v1361, %v1379
      %v1397 = vadd.f32 %v1362, %v1379
      %v1398 = vadd.f32 %v1363, %v1379
      %v1399 = vadd.f32 %v1364, %v1379
      %v1400 = vadd.f32 %v1365, %v1379
      %v1401 = vadd.f32 %v1366, %v1379
      %v1402 = vadd.f32 %v1367, %v1379
      %v1403 = vadd.f32 %v1368, %v1379
      %v1404 = vadd.f32 %v1369, %v1379
      %v1405 = vadd.f32 %v1370, %v1379
      %v1406 = vadd.f32 %v1371, %v1379
      %v1407 = vadd.f32 %v1372, %v1379
      %v1408 = vadd.f32 %v1373, %v1379
      %v1409 = vadd.f32 %v1374, %v1379
      %v1410 = vadd.f32 %v1375, %v1379
      %v1411 = vadd.f32 %v1376, %v1379
      %v1412 = vadd.f32 %v1377, %v1379
      %v1413 = vpack.c.bf16 %v1382, %v1381
      %v1414 = vpack.c.bf16 %v1384, %v1383
      %v1415 = vpack.c.bf16 %v1386, %v1385
      %v1416 = vpack.c.bf16 %v1388, %v1387
      %v1417 = vpack.c.bf16 %v1390, %v1389
      %v1418 = vpack.c.bf16 %v1392, %v1391
      %v1419 = vpack.c.bf16 %v1394, %v1393
      %v1420 = vpack.c.bf16 %v1396, %v1395
      %v1421 = vpack.c.bf16 %v1398, %v1397
      %v1422 = vpack.c.bf16 %v1400, %v1399
      %v1423 = vpack.c.bf16 %v1402, %v1401
      %v1424 = vpack.c.bf16 %v1404, %v1403
      %v1425 = vpack.c.bf16 %v1406, %v1405
      %v1426 = vpack.c.bf16 %v1408, %v1407
      %v1427 = vpack.c.bf16 %v1410, %v1409
      %v1428 = vpack.c.bf16 %v1412, %v1411
      %v1429 = vld [vmem:[%s2] sm:$0xf]
      %v1430 = vld [vmem:[%s2 + $0x4] sm:$0xf]
      %v1431 = vld [vmem:[%s2 + $0x8] sm:$0xf]
      %v1432 = vld [vmem:[%s2 + $0xc] sm:$0xf]
      %v1437 = vunpack.c.l.b16 %v1429
      %v1438 = vunpack.c.l.b16 %v1430
      %v1439 = vunpack.c.l.b16 %v1431
      %v1440 = vunpack.c.l.b16 %v1432
      %v1441 = vpack.c.b16 %v1438, %v1437
      %v1442 = vpack.c.b16 %v1440, %v1439
      %v1446 = vsel %vm631, %v1413, 0
      %v1449 = vsel %vm631, %v1414, 0
      %v1452 = vsel %vm631, %v1415, 0
      %v1455 = vsel %vm631, %v1416, 0
      %v1458 = vsel %vm631, %v1417, 0
      %v1461 = vsel %vm631, %v1418, 0
      %v1464 = vsel %vm631, %v1419, 0
      %v1467 = vsel %vm631, %v1420, 0
      %v1470 = vsel %vm631, %v1421, 0
      %v1473 = vsel %vm631, %v1422, 0
      %v1476 = vsel %vm631, %v1423, 0
      %v1479 = vsel %vm631, %v1424, 0
      %v1482 = vsel %vm631, %v1425, 0
      %v1485 = vsel %vm631, %v1426, 0
      %v1488 = vsel %vm631, %v1427, 0
      %v1491 = vsel %vm631, %v1428, 0
      %1493 = vmatpush.bf16.msra.mxu0 0
      %1494 = vmatpush.bf16.msra.mxu0 0
      %1495 = vmatpush.bf16.msra.mxu0 0
      %1496 = vmatpush.bf16.msra.mxu0 0
      %1497 = vmatpush.bf16.msra.mxu0 0
      %1498 = vmatpush.bf16.msra.mxu0 0
      %1499 = vmatpush.bf16.msra.mxu0 %v1442
      %1500 = vmatpush.bf16.msra.mxu0 %v1441
      %1501 = vmatmul.bf16.gmra.mxu0 %v1446
      %v1502 = vpop.f32.mrf.mxu0
      %v1503 = vadd.f32 0.0, %v1502
      %v1504 = vpop.f32.mrf.mxu0
      %v1505 = vadd.f32 0.0, %v1504
      %1506 = vmatmul.bf16.gmra.mxu0 %v1449
      %v1507 = vpop.f32.mrf.mxu0
      %v1508 = vadd.f32 0.0, %v1507
      %v1509 = vpop.f32.mrf.mxu0
      %v1510 = vadd.f32 0.0, %v1509
      %1511 = vmatmul.bf16.gmra.mxu0 %v1452
      %v1512 = vpop.f32.mrf.mxu0
      %v1513 = vadd.f32 0.0, %v1512
      %v1514 = vpop.f32.mrf.mxu0
      %v1515 = vadd.f32 0.0, %v1514
      %1516 = vmatmul.bf16.gmra.mxu0 %v1455
      %v1517 = vpop.f32.mrf.mxu0
      %v1518 = vadd.f32 0.0, %v1517
      %v1519 = vpop.f32.mrf.mxu0
      %v1520 = vadd.f32 0.0, %v1519
      %1521 = vmatmul.bf16.gmra.mxu0 %v1458
      %v1522 = vpop.f32.mrf.mxu0
      %v1523 = vadd.f32 0.0, %v1522
      %v1524 = vpop.f32.mrf.mxu0
      %v1525 = vadd.f32 0.0, %v1524
      %1526 = vmatmul.bf16.gmra.mxu0 %v1461
      %v1527 = vpop.f32.mrf.mxu0
      %v1528 = vadd.f32 0.0, %v1527
      %v1529 = vpop.f32.mrf.mxu0
      %v1530 = vadd.f32 0.0, %v1529
      %1531 = vmatmul.bf16.gmra.mxu0 %v1464
      %v1532 = vpop.f32.mrf.mxu0
      %v1533 = vadd.f32 0.0, %v1532
      %v1534 = vpop.f32.mrf.mxu0
      %v1535 = vadd.f32 0.0, %v1534
      %1536 = vmatmul.bf16.gmra.mxu0 %v1467
      %v1537 = vpop.f32.mrf.mxu0
      %v1538 = vadd.f32 0.0, %v1537
      %v1539 = vpop.f32.mrf.mxu0
      %v1540 = vadd.f32 0.0, %v1539
      %1541 = vmatmul.bf16.gmra.mxu0 %v1470
      %v1542 = vpop.f32.mrf.mxu0
      %v1543 = vadd.f32 0.0, %v1542
      %v1544 = vpop.f32.mrf.mxu0
      %v1545 = vadd.f32 0.0, %v1544
      %1546 = vmatmul.bf16.gmra.mxu0 %v1473
      %v1547 = vpop.f32.mrf.mxu0
      %v1548 = vadd.f32 0.0, %v1547
      %v1549 = vpop.f32.mrf.mxu0
      %v1550 = vadd.f32 0.0, %v1549
      %1551 = vmatmul.bf16.gmra.mxu0 %v1476
      %v1552 = vpop.f32.mrf.mxu0
      %v1553 = vadd.f32 0.0, %v1552
      %v1554 = vpop.f32.mrf.mxu0
      %v1555 = vadd.f32 0.0, %v1554
      %1556 = vmatmul.bf16.gmra.mxu0 %v1479
      %v1557 = vpop.f32.mrf.mxu0
      %v1558 = vadd.f32 0.0, %v1557
      %v1559 = vpop.f32.mrf.mxu0
      %v1560 = vadd.f32 0.0, %v1559
      %1561 = vmatmul.bf16.gmra.mxu0 %v1482
      %v1562 = vpop.f32.mrf.mxu0
      %v1563 = vadd.f32 0.0, %v1562
      %v1564 = vpop.f32.mrf.mxu0
      %v1565 = vadd.f32 0.0, %v1564
      %1566 = vmatmul.bf16.gmra.mxu0 %v1485
      %v1567 = vpop.f32.mrf.mxu0
      %v1568 = vadd.f32 0.0, %v1567
      %v1569 = vpop.f32.mrf.mxu0
      %v1570 = vadd.f32 0.0, %v1569
      %1571 = vmatmul.bf16.gmra.mxu0 %v1488
      %v1572 = vpop.f32.mrf.mxu0
      %v1573 = vadd.f32 0.0, %v1572
      %v1574 = vpop.f32.mrf.mxu0
      %v1575 = vadd.f32 0.0, %v1574
      %1576 = vmatmul.bf16.gmra.mxu0 %v1491
      %v1577 = vpop.f32.mrf.mxu0
      %v1578 = vadd.f32 0.0, %v1577
      %v1579 = vpop.f32.mrf.mxu0
      %v1580 = vadd.f32 0.0, %v1579
      %1581 = vdwg.mxu0
      %v1582 = vld [vmem:[%s3] sm:$0xf]
      %v1583 = vld [vmem:[%s3 + $0x4] sm:$0xf]
      %v1584 = vld [vmem:[%s3 + $0x8] sm:$0xf]
      %v1585 = vld [vmem:[%s3 + $0xc] sm:$0xf]
      %v1590 = vunpack.c.l.b16 %v1582
      %v1591 = vunpack.c.l.b16 %v1583
      %v1592 = vunpack.c.l.b16 %v1584
      %v1593 = vunpack.c.l.b16 %v1585
      %v1594 = vpack.c.b16 %v1591, %v1590
      %v1595 = vpack.c.b16 %v1593, %v1592
      %1598 = vmatpush.bf16.msra.mxu0 0
      %1599 = vmatpush.bf16.msra.mxu0 0
      %1600 = vmatpush.bf16.msra.mxu0 0
      %1601 = vmatpush.bf16.msra.mxu0 0
      %1602 = vmatpush.bf16.msra.mxu0 0
      %1603 = vmatpush.bf16.msra.mxu0 0
      %1604 = vmatpush.bf16.msra.mxu0 %v1595
      %1605 = vmatpush.bf16.msra.mxu0 %v1594
      %1606 = vmatmul.bf16.gmra.mxu0 %v1446
      %v1607 = vpop.f32.mrf.mxu0
      %v1608 = vadd.f32 0.0, %v1607
      %v1609 = vpop.f32.mrf.mxu0
      %v1610 = vadd.f32 0.0, %v1609
      %1611 = vmatmul.bf16.gmra.mxu0 %v1449
      %v1612 = vpop.f32.mrf.mxu0
      %v1613 = vadd.f32 0.0, %v1612
      %v1614 = vpop.f32.mrf.mxu0
      %v1615 = vadd.f32 0.0, %v1614
      %1616 = vmatmul.bf16.gmra.mxu0 %v1452
      %v1617 = vpop.f32.mrf.mxu0
      %v1618 = vadd.f32 0.0, %v1617
      %v1619 = vpop.f32.mrf.mxu0
      %v1620 = vadd.f32 0.0, %v1619
      %1621 = vmatmul.bf16.gmra.mxu0 %v1455
      %v1622 = vpop.f32.mrf.mxu0
      %v1623 = vadd.f32 0.0, %v1622
      %v1624 = vpop.f32.mrf.mxu0
      %v1625 = vadd.f32 0.0, %v1624
      %1626 = vmatmul.bf16.gmra.mxu0 %v1458
      %v1627 = vpop.f32.mrf.mxu0
      %v1628 = vadd.f32 0.0, %v1627
      %v1629 = vpop.f32.mrf.mxu0
      %v1630 = vadd.f32 0.0, %v1629
      %1631 = vmatmul.bf16.gmra.mxu0 %v1461
      %v1632 = vpop.f32.mrf.mxu0
      %v1633 = vadd.f32 0.0, %v1632
      %v1634 = vpop.f32.mrf.mxu0
      %v1635 = vadd.f32 0.0, %v1634
      %1636 = vmatmul.bf16.gmra.mxu0 %v1464
      %v1637 = vpop.f32.mrf.mxu0
      %v1638 = vadd.f32 0.0, %v1637
      %v1639 = vpop.f32.mrf.mxu0
      %v1640 = vadd.f32 0.0, %v1639
      %1641 = vmatmul.bf16.gmra.mxu0 %v1467
      %v1642 = vpop.f32.mrf.mxu0
      %v1643 = vadd.f32 0.0, %v1642
      %v1644 = vpop.f32.mrf.mxu0
      %v1645 = vadd.f32 0.0, %v1644
      %1646 = vmatmul.bf16.gmra.mxu0 %v1470
      %v1647 = vpop.f32.mrf.mxu0
      %v1648 = vadd.f32 0.0, %v1647
      %v1649 = vpop.f32.mrf.mxu0
      %v1650 = vadd.f32 0.0, %v1649
      %1651 = vmatmul.bf16.gmra.mxu0 %v1473
      %v1652 = vpop.f32.mrf.mxu0
      %v1653 = vadd.f32 0.0, %v1652
      %v1654 = vpop.f32.mrf.mxu0
      %v1655 = vadd.f32 0.0, %v1654
      %1656 = vmatmul.bf16.gmra.mxu0 %v1476
      %v1657 = vpop.f32.mrf.mxu0
      %v1658 = vadd.f32 0.0, %v1657
      %v1659 = vpop.f32.mrf.mxu0
      %v1660 = vadd.f32 0.0, %v1659
      %1661 = vmatmul.bf16.gmra.mxu0 %v1479
      %v1662 = vpop.f32.mrf.mxu0
      %v1663 = vadd.f32 0.0, %v1662
      %v1664 = vpop.f32.mrf.mxu0
      %v1665 = vadd.f32 0.0, %v1664
      %1666 = vmatmul.bf16.gmra.mxu0 %v1482
      %v1667 = vpop.f32.mrf.mxu0
      %v1668 = vadd.f32 0.0, %v1667
      %v1669 = vpop.f32.mrf.mxu0
      %v1670 = vadd.f32 0.0, %v1669
      %1671 = vmatmul.bf16.gmra.mxu0 %v1485
      %v1672 = vpop.f32.mrf.mxu0
      %v1673 = vadd.f32 0.0, %v1672
      %v1674 = vpop.f32.mrf.mxu0
      %v1675 = vadd.f32 0.0, %v1674
      %1676 = vmatmul.bf16.gmra.mxu0 %v1488
      %v1677 = vpop.f32.mrf.mxu0
      %v1678 = vadd.f32 0.0, %v1677
      %v1679 = vpop.f32.mrf.mxu0
      %v1680 = vadd.f32 0.0, %v1679
      %1681 = vmatmul.bf16.gmra.mxu0 %v1491
      %v1682 = vpop.f32.mrf.mxu0
      %v1683 = vadd.f32 0.0, %v1682
      %v1684 = vpop.f32.mrf.mxu0
      %v1685 = vadd.f32 0.0, %v1684
      %1686 = vdwg.mxu0
      %v1687 = vld [vmem:[%s4] sm:$0xf]
      %v1688 = vld [vmem:[%s4 + $0x4] sm:$0xf]
      %v1689 = vld [vmem:[%s4 + $0x8] sm:$0xf]
      %v1690 = vld [vmem:[%s4 + $0xc] sm:$0xf]
      %v1695 = vunpack.c.l.b16 %v1687
      %v1696 = vunpack.c.l.b16 %v1688
      %v1697 = vunpack.c.l.b16 %v1689
      %v1698 = vunpack.c.l.b16 %v1690
      %v1699 = vpack.c.b16 %v1696, %v1695
      %v1700 = vpack.c.b16 %v1698, %v1697
      %1703 = vmatpush.bf16.msra.mxu0 0
      %1704 = vmatpush.bf16.msra.mxu0 0
      %1705 = vmatpush.bf16.msra.mxu0 0
      %1706 = vmatpush.bf16.msra.mxu0 0
      %1707 = vmatpush.bf16.msra.mxu0 0
      %1708 = vmatpush.bf16.msra.mxu0 0
      %1709 = vmatpush.bf16.msra.mxu0 %v1700
      %1710 = vmatpush.bf16.msra.mxu0 %v1699
      %1711 = vmatmul.bf16.gmra.mxu0 %v1446
      %v1712 = vpop.f32.mrf.mxu0
      %v1713 = vadd.f32 0.0, %v1712
      %v1714 = vpop.f32.mrf.mxu0
      %v1715 = vadd.f32 0.0, %v1714
      %1716 = vmatmul.bf16.gmra.mxu0 %v1449
      %v1717 = vpop.f32.mrf.mxu0
      %v1718 = vadd.f32 0.0, %v1717
      %v1719 = vpop.f32.mrf.mxu0
      %v1720 = vadd.f32 0.0, %v1719
      %1721 = vmatmul.bf16.gmra.mxu0 %v1452
      %v1722 = vpop.f32.mrf.mxu0
      %v1723 = vadd.f32 0.0, %v1722
      %v1724 = vpop.f32.mrf.mxu0
      %v1725 = vadd.f32 0.0, %v1724
      %1726 = vmatmul.bf16.gmra.mxu0 %v1455
      %v1727 = vpop.f32.mrf.mxu0
      %v1728 = vadd.f32 0.0, %v1727
      %v1729 = vpop.f32.mrf.mxu0
      %v1730 = vadd.f32 0.0, %v1729
      %1731 = vmatmul.bf16.gmra.mxu0 %v1458
      %v1732 = vpop.f32.mrf.mxu0
      %v1733 = vadd.f32 0.0, %v1732
      %v1734 = vpop.f32.mrf.mxu0
      %v1735 = vadd.f32 0.0, %v1734
      %1736 = vmatmul.bf16.gmra.mxu0 %v1461
      %v1737 = vpop.f32.mrf.mxu0
      %v1738 = vadd.f32 0.0, %v1737
      %v1739 = vpop.f32.mrf.mxu0
      %v1740 = vadd.f32 0.0, %v1739
      %1741 = vmatmul.bf16.gmra.mxu0 %v1464
      %v1742 = vpop.f32.mrf.mxu0
      %v1743 = vadd.f32 0.0, %v1742
      %v1744 = vpop.f32.mrf.mxu0
      %v1745 = vadd.f32 0.0, %v1744
      %1746 = vmatmul.bf16.gmra.mxu0 %v1467
      %v1747 = vpop.f32.mrf.mxu0
      %v1748 = vadd.f32 0.0, %v1747
      %v1749 = vpop.f32.mrf.mxu0
      %v1750 = vadd.f32 0.0, %v1749
      %1751 = vmatmul.bf16.gmra.mxu0 %v1470
      %v1752 = vpop.f32.mrf.mxu0
      %v1753 = vadd.f32 0.0, %v1752
      %v1754 = vpop.f32.mrf.mxu0
      %v1755 = vadd.f32 0.0, %v1754
      %1756 = vmatmul.bf16.gmra.mxu0 %v1473
      %v1757 = vpop.f32.mrf.mxu0
      %v1758 = vadd.f32 0.0, %v1757
      %v1759 = vpop.f32.mrf.mxu0
      %v1760 = vadd.f32 0.0, %v1759
      %1761 = vmatmul.bf16.gmra.mxu0 %v1476
      %v1762 = vpop.f32.mrf.mxu0
      %v1763 = vadd.f32 0.0, %v1762
      %v1764 = vpop.f32.mrf.mxu0
      %v1765 = vadd.f32 0.0, %v1764
      %1766 = vmatmul.bf16.gmra.mxu0 %v1479
      %v1767 = vpop.f32.mrf.mxu0
      %v1768 = vadd.f32 0.0, %v1767
      %v1769 = vpop.f32.mrf.mxu0
      %v1770 = vadd.f32 0.0, %v1769
      %1771 = vmatmul.bf16.gmra.mxu0 %v1482
      %v1772 = vpop.f32.mrf.mxu0
      %v1773 = vadd.f32 0.0, %v1772
      %v1774 = vpop.f32.mrf.mxu0
      %v1775 = vadd.f32 0.0, %v1774
      %1776 = vmatmul.bf16.gmra.mxu0 %v1485
      %v1777 = vpop.f32.mrf.mxu0
      %v1778 = vadd.f32 0.0, %v1777
      %v1779 = vpop.f32.mrf.mxu0
      %v1780 = vadd.f32 0.0, %v1779
      %1781 = vmatmul.bf16.gmra.mxu0 %v1488
      %v1782 = vpop.f32.mrf.mxu0
      %v1783 = vadd.f32 0.0, %v1782
      %v1784 = vpop.f32.mrf.mxu0
      %v1785 = vadd.f32 0.0, %v1784
      %1786 = vmatmul.bf16.gmra.mxu0 %v1491
      %v1787 = vpop.f32.mrf.mxu0
      %v1788 = vadd.f32 0.0, %v1787
      %v1789 = vpop.f32.mrf.mxu0
      %v1790 = vadd.f32 0.0, %v1789
      %1791 = vdwg.mxu0
      %v1792 = vpack.c.bf16 %v1505, %v1503
      %v1793 = vpack.c.bf16 %v1510, %v1508
      %v1794 = vpack.c.bf16 %v1515, %v1513
      %v1795 = vpack.c.bf16 %v1520, %v1518
      %v1796 = vpack.c.bf16 %v1525, %v1523
      %v1797 = vpack.c.bf16 %v1530, %v1528
      %v1798 = vpack.c.bf16 %v1535, %v1533
      %v1799 = vpack.c.bf16 %v1540, %v1538
      %v1800 = vpack.c.bf16 %v1545, %v1543
      %v1801 = vpack.c.bf16 %v1550, %v1548
      %v1802 = vpack.c.bf16 %v1555, %v1553
      %v1803 = vpack.c.bf16 %v1560, %v1558
      %v1804 = vpack.c.bf16 %v1565, %v1563
      %v1805 = vpack.c.bf16 %v1570, %v1568
      %v1806 = vpack.c.bf16 %v1575, %v1573
      %v1807 = vpack.c.bf16 %v1580, %v1578
      %v1808 = vpack.c.bf16 %v1610, %v1608
      %v1809 = vpack.c.bf16 %v1615, %v1613
      %v1810 = vpack.c.bf16 %v1620, %v1618
      %v1811 = vpack.c.bf16 %v1625, %v1623
      %v1812 = vpack.c.bf16 %v1630, %v1628
      %v1813 = vpack.c.bf16 %v1635, %v1633
      %v1814 = vpack.c.bf16 %v1640, %v1638
      %v1815 = vpack.c.bf16 %v1645, %v1643
      %v1816 = vpack.c.bf16 %v1650, %v1648
      %v1817 = vpack.c.bf16 %v1655, %v1653
      %v1818 = vpack.c.bf16 %v1660, %v1658
      %v1819 = vpack.c.bf16 %v1665, %v1663
      %v1820 = vpack.c.bf16 %v1670, %v1668
      %v1821 = vpack.c.bf16 %v1675, %v1673
      %v1822 = vpack.c.bf16 %v1680, %v1678
      %v1823 = vpack.c.bf16 %v1685, %v1683
      %v1825 = vsel %vm631, %v1792, 0
      %v1828 = vsel %vm631, %v1793, 0
      %v1831 = vsel %vm631, %v1794, 0
      %v1834 = vsel %vm631, %v1795, 0
      %v1837 = vsel %vm631, %v1796, 0
      %v1840 = vsel %vm631, %v1797, 0
      %v1843 = vsel %vm631, %v1798, 0
      %v1846 = vsel %vm631, %v1799, 0
      %v1849 = vsel %vm631, %v1800, 0
      %v1852 = vsel %vm631, %v1801, 0
      %v1855 = vsel %vm631, %v1802, 0
      %v1858 = vsel %vm631, %v1803, 0
      %v1861 = vsel %vm631, %v1804, 0
      %v1864 = vsel %vm631, %v1805, 0
      %v1867 = vsel %vm631, %v1806, 0
      %v1870 = vsel %vm631, %v1807, 0
      %v1873 = vsel %vm631, %v1808, 0
      %v1876 = vsel %vm631, %v1809, 0
      %v1879 = vsel %vm631, %v1810, 0
      %v1882 = vsel %vm631, %v1811, 0
      %v1885 = vsel %vm631, %v1812, 0
      %v1888 = vsel %vm631, %v1813, 0
      %v1891 = vsel %vm631, %v1814, 0
      %v1894 = vsel %vm631, %v1815, 0
      %v1897 = vsel %vm631, %v1816, 0
      %v1900 = vsel %vm631, %v1817, 0
      %v1903 = vsel %vm631, %v1818, 0
      %v1906 = vsel %vm631, %v1819, 0
      %v1909 = vsel %vm631, %v1820, 0
      %v1912 = vsel %vm631, %v1821, 0
      %v1915 = vsel %vm631, %v1822, 0
      %v1918 = vsel %vm631, %v1823, 0
      %1920 = vmatpush.bf16.xpose.msra.mxu0 %v1894
      %1921 = vmatpush.bf16.xpose.msra.mxu0 %v1891
      %1922 = vmatpush.bf16.xpose.msra.mxu0 %v1888
      %1923 = vmatpush.bf16.xpose.msra.mxu0 %v1885
      %1924 = vmatpush.bf16.xpose.msra.mxu0 %v1882
      %1925 = vmatpush.bf16.xpose.msra.mxu0 %v1879
      %1926 = vmatpush.bf16.xpose.msra.mxu0 %v1876
      %1927 = vmatpush.bf16.xpose.msra.mxu0 %v1873
      %1928 = vmatmul.bf16.gmra.mxu0 %v1825
      %v1929 = vpop.f32.mrf.mxu0
      %v1930 = vadd.f32 0.0, %v1929
      %v1931 = vpop.f32.mrf.mxu0
      %v1932 = vadd.f32 0.0, %v1931
      %1933 = vmatmul.bf16.gmra.mxu0 %v1828
      %v1934 = vpop.f32.mrf.mxu0
      %v1935 = vadd.f32 0.0, %v1934
      %v1936 = vpop.f32.mrf.mxu0
      %v1937 = vadd.f32 0.0, %v1936
      %1938 = vmatmul.bf16.gmra.mxu0 %v1831
      %v1939 = vpop.f32.mrf.mxu0
      %v1940 = vadd.f32 0.0, %v1939
      %v1941 = vpop.f32.mrf.mxu0
      %v1942 = vadd.f32 0.0, %v1941
      %1943 = vmatmul.bf16.gmra.mxu0 %v1834
      %v1944 = vpop.f32.mrf.mxu0
      %v1945 = vadd.f32 0.0, %v1944
      %v1946 = vpop.f32.mrf.mxu0
      %v1947 = vadd.f32 0.0, %v1946
      %1948 = vmatmul.bf16.gmra.mxu0 %v1837
      %v1949 = vpop.f32.mrf.mxu0
      %v1950 = vadd.f32 0.0, %v1949
      %v1951 = vpop.f32.mrf.mxu0
      %v1952 = vadd.f32 0.0, %v1951
      %1953 = vmatmul.bf16.gmra.mxu0 %v1840
      %v1954 = vpop.f32.mrf.mxu0
      %v1955 = vadd.f32 0.0, %v1954
      %v1956 = vpop.f32.mrf.mxu0
      %v1957 = vadd.f32 0.0, %v1956
      %1958 = vmatmul.bf16.gmra.mxu0 %v1843
      %v1959 = vpop.f32.mrf.mxu0
      %v1960 = vadd.f32 0.0, %v1959
      %v1961 = vpop.f32.mrf.mxu0
      %v1962 = vadd.f32 0.0, %v1961
      %1963 = vmatmul.bf16.gmra.mxu0 %v1846
      %v1964 = vpop.f32.mrf.mxu0
      %v1965 = vadd.f32 0.0, %v1964
      %v1966 = vpop.f32.mrf.mxu0
      %v1967 = vadd.f32 0.0, %v1966
      %1968 = vmatmul.bf16.gmra.mxu0 %v1849
      %v1969 = vpop.f32.mrf.mxu0
      %v1970 = vadd.f32 0.0, %v1969
      %v1971 = vpop.f32.mrf.mxu0
      %v1972 = vadd.f32 0.0, %v1971
      %1973 = vmatmul.bf16.gmra.mxu0 %v1852
      %v1974 = vpop.f32.mrf.mxu0
      %v1975 = vadd.f32 0.0, %v1974
      %v1976 = vpop.f32.mrf.mxu0
      %v1977 = vadd.f32 0.0, %v1976
      %1978 = vmatmul.bf16.gmra.mxu0 %v1855
      %v1979 = vpop.f32.mrf.mxu0
      %v1980 = vadd.f32 0.0, %v1979
      %v1981 = vpop.f32.mrf.mxu0
      %v1982 = vadd.f32 0.0, %v1981
      %1983 = vmatmul.bf16.gmra.mxu0 %v1858
      %v1984 = vpop.f32.mrf.mxu0
      %v1985 = vadd.f32 0.0, %v1984
      %v1986 = vpop.f32.mrf.mxu0
      %v1987 = vadd.f32 0.0, %v1986
      %1988 = vmatmul.bf16.gmra.mxu0 %v1861
      %v1989 = vpop.f32.mrf.mxu0
      %v1990 = vadd.f32 0.0, %v1989
      %v1991 = vpop.f32.mrf.mxu0
      %v1992 = vadd.f32 0.0, %v1991
      %1993 = vmatmul.bf16.gmra.mxu0 %v1864
      %v1994 = vpop.f32.mrf.mxu0
      %v1995 = vadd.f32 0.0, %v1994
      %v1996 = vpop.f32.mrf.mxu0
      %v1997 = vadd.f32 0.0, %v1996
      %1998 = vmatmul.bf16.gmra.mxu0 %v1867
      %v1999 = vpop.f32.mrf.mxu0
      %v2000 = vadd.f32 0.0, %v1999
      %v2001 = vpop.f32.mrf.mxu0
      %v2002 = vadd.f32 0.0, %v2001
      %2003 = vmatmul.bf16.gmra.mxu0 %v1870
      %v2004 = vpop.f32.mrf.mxu0
      %v2005 = vadd.f32 0.0, %v2004
      %v2006 = vpop.f32.mrf.mxu0
      %v2007 = vadd.f32 0.0, %v2006
      %2008 = vdwg.mxu0
      %2009 = vmatpush.bf16.xpose.msra.mxu0 %v1918
      %2010 = vmatpush.bf16.xpose.msra.mxu0 %v1915
      %2011 = vmatpush.bf16.xpose.msra.mxu0 %v1912
      %2012 = vmatpush.bf16.xpose.msra.mxu0 %v1909
      %2013 = vmatpush.bf16.xpose.msra.mxu0 %v1906
      %2014 = vmatpush.bf16.xpose.msra.mxu0 %v1903
      %2015 = vmatpush.bf16.xpose.msra.mxu0 %v1900
      %2016 = vmatpush.bf16.xpose.msra.mxu0 %v1897
      %2017 = vmatmul.bf16.gmra.mxu0 %v1825
      %v2018 = vpop.f32.mrf.mxu0
      %v2019 = vadd.f32 0.0, %v2018
      %v2020 = vpop.f32.mrf.mxu0
      %v2021 = vadd.f32 0.0, %v2020
      %2022 = vmatmul.bf16.gmra.mxu0 %v1828
      %v2023 = vpop.f32.mrf.mxu0
      %v2024 = vadd.f32 0.0, %v2023
      %v2025 = vpop.f32.mrf.mxu0
      %v2026 = vadd.f32 0.0, %v2025
      %2027 = vmatmul.bf16.gmra.mxu0 %v1831
      %v2028 = vpop.f32.mrf.mxu0
      %v2029 = vadd.f32 0.0, %v2028
      %v2030 = vpop.f32.mrf.mxu0
      %v2031 = vadd.f32 0.0, %v2030
      %2032 = vmatmul.bf16.gmra.mxu0 %v1834
      %v2033 = vpop.f32.mrf.mxu0
      %v2034 = vadd.f32 0.0, %v2033
      %v2035 = vpop.f32.mrf.mxu0
      %v2036 = vadd.f32 0.0, %v2035
      %2037 = vmatmul.bf16.gmra.mxu0 %v1837
      %v2038 = vpop.f32.mrf.mxu0
      %v2039 = vadd.f32 0.0, %v2038
      %v2040 = vpop.f32.mrf.mxu0
      %v2041 = vadd.f32 0.0, %v2040
      %2042 = vmatmul.bf16.gmra.mxu0 %v1840
      %v2043 = vpop.f32.mrf.mxu0
      %v2044 = vadd.f32 0.0, %v2043
      %v2045 = vpop.f32.mrf.mxu0
      %v2046 = vadd.f32 0.0, %v2045
      %2047 = vmatmul.bf16.gmra.mxu0 %v1843
      %v2048 = vpop.f32.mrf.mxu0
      %v2049 = vadd.f32 0.0, %v2048
      %v2050 = vpop.f32.mrf.mxu0
      %v2051 = vadd.f32 0.0, %v2050
      %2052 = vmatmul.bf16.gmra.mxu0 %v1846
      %v2053 = vpop.f32.mrf.mxu0
      %v2054 = vadd.f32 0.0, %v2053
      %v2055 = vpop.f32.mrf.mxu0
      %v2056 = vadd.f32 0.0, %v2055
      %2057 = vmatmul.bf16.gmra.mxu0 %v1849
      %v2058 = vpop.f32.mrf.mxu0
      %v2059 = vadd.f32 0.0, %v2058
      %v2060 = vpop.f32.mrf.mxu0
      %v2061 = vadd.f32 0.0, %v2060
      %2062 = vmatmul.bf16.gmra.mxu0 %v1852
      %v2063 = vpop.f32.mrf.mxu0
      %v2064 = vadd.f32 0.0, %v2063
      %v2065 = vpop.f32.mrf.mxu0
      %v2066 = vadd.f32 0.0, %v2065
      %2067 = vmatmul.bf16.gmra.mxu0 %v1855
      %v2068 = vpop.f32.mrf.mxu0
      %v2069 = vadd.f32 0.0, %v2068
      %v2070 = vpop.f32.mrf.mxu0
      %v2071 = vadd.f32 0.0, %v2070
      %2072 = vmatmul.bf16.gmra.mxu0 %v1858
      %v2073 = vpop.f32.mrf.mxu0
      %v2074 = vadd.f32 0.0, %v2073
      %v2075 = vpop.f32.mrf.mxu0
      %v2076 = vadd.f32 0.0, %v2075
      %2077 = vmatmul.bf16.gmra.mxu0 %v1861
      %v2078 = vpop.f32.mrf.mxu0
      %v2079 = vadd.f32 0.0, %v2078
      %v2080 = vpop.f32.mrf.mxu0
      %v2081 = vadd.f32 0.0, %v2080
      %2082 = vmatmul.bf16.gmra.mxu0 %v1864
      %v2083 = vpop.f32.mrf.mxu0
      %v2084 = vadd.f32 0.0, %v2083
      %v2085 = vpop.f32.mrf.mxu0
      %v2086 = vadd.f32 0.0, %v2085
      %2087 = vmatmul.bf16.gmra.mxu0 %v1867
      %v2088 = vpop.f32.mrf.mxu0
      %v2089 = vadd.f32 0.0, %v2088
      %v2090 = vpop.f32.mrf.mxu0
      %v2091 = vadd.f32 0.0, %v2090
      %2092 = vmatmul.bf16.gmra.mxu0 %v1870
      %v2093 = vpop.f32.mrf.mxu0
      %v2094 = vadd.f32 0.0, %v2093
      %v2095 = vpop.f32.mrf.mxu0
      %v2096 = vadd.f32 0.0, %v2095
      %2097 = vdwg.mxu0
      %v2098 = vmax.f32 %v1930, %v2019
      %2099 = vmax.xlane.f32.xlu0 %v2098
      %v2100 = vpop.xlane.xlu0 %2099
      %v2101 = vmax.f32 %v1932, %v2021
      %2102 = vmax.xlane.f32.xlu0 %v2101
      %v2103 = vpop.xlane.xlu0 %2102
      %v2104 = vmax.f32 %v1935, %v2024
      %2105 = vmax.xlane.f32.xlu0 %v2104
      %v2106 = vpop.xlane.xlu0 %2105
      %v2107 = vmax.f32 %v1937, %v2026
      %2108 = vmax.xlane.f32.xlu0 %v2107
      %v2109 = vpop.xlane.xlu0 %2108
      %v2110 = vmax.f32 %v1940, %v2029
      %2111 = vmax.xlane.f32.xlu0 %v2110
      %v2112 = vpop.xlane.xlu0 %2111
      %v2113 = vmax.f32 %v1942, %v2031
      %2114 = vmax.xlane.f32.xlu0 %v2113
      %v2115 = vpop.xlane.xlu0 %2114
      %v2116 = vmax.f32 %v1945, %v2034
      %2117 = vmax.xlane.f32.xlu0 %v2116
      %v2118 = vpop.xlane.xlu0 %2117
      %v2119 = vmax.f32 %v1947, %v2036
      %2120 = vmax.xlane.f32.xlu0 %v2119
      %v2121 = vpop.xlane.xlu0 %2120
      %v2122 = vmax.f32 %v1950, %v2039
      %2123 = vmax.xlane.f32.xlu0 %v2122
      %v2124 = vpop.xlane.xlu0 %2123
      %v2125 = vmax.f32 %v1952, %v2041
      %2126 = vmax.xlane.f32.xlu0 %v2125
      %v2127 = vpop.xlane.xlu0 %2126
      %v2128 = vmax.f32 %v1955, %v2044
      %2129 = vmax.xlane.f32.xlu0 %v2128
      %v2130 = vpop.xlane.xlu0 %2129
      %v2131 = vmax.f32 %v1957, %v2046
      %2132 = vmax.xlane.f32.xlu0 %v2131
      %v2133 = vpop.xlane.xlu0 %2132
      %v2134 = vmax.f32 %v1960, %v2049
      %2135 = vmax.xlane.f32.xlu0 %v2134
      %v2136 = vpop.xlane.xlu0 %2135
      %v2137 = vmax.f32 %v1962, %v2051
      %2138 = vmax.xlane.f32.xlu0 %v2137
      %v2139 = vpop.xlane.xlu0 %2138
      %v2140 = vmax.f32 %v1965, %v2054
      %2141 = vmax.xlane.f32.xlu0 %v2140
      %v2142 = vpop.xlane.xlu0 %2141
      %v2143 = vmax.f32 %v1967, %v2056
      %2144 = vmax.xlane.f32.xlu0 %v2143
      %v2145 = vpop.xlane.xlu0 %2144
      %v2146 = vmax.f32 %v1970, %v2059
      %2147 = vmax.xlane.f32.xlu0 %v2146
      %v2148 = vpop.xlane.xlu0 %2147
      %v2149 = vmax.f32 %v1972, %v2061
      %2150 = vmax.xlane.f32.xlu0 %v2149
      %v2151 = vpop.xlane.xlu0 %2150
      %v2152 = vmax.f32 %v1975, %v2064
      %2153 = vmax.xlane.f32.xlu0 %v2152
      %v2154 = vpop.xlane.xlu0 %2153
      %v2155 = vmax.f32 %v1977, %v2066
      %2156 = vmax.xlane.f32.xlu0 %v2155
      %v2157 = vpop.xlane.xlu0 %2156
      %v2158 = vmax.f32 %v1980, %v2069
      %2159 = vmax.xlane.f32.xlu0 %v2158
      %v2160 = vpop.xlane.xlu0 %2159
      %v2161 = vmax.f32 %v1982, %v2071
      %2162 = vmax.xlane.f32.xlu0 %v2161
      %v2163 = vpop.xlane.xlu0 %2162
      %v2164 = vmax.f32 %v1985, %v2074
      %2165 = vmax.xlane.f32.xlu0 %v2164
      %v2166 = vpop.xlane.xlu0 %2165
      %v2167 = vmax.f32 %v1987, %v2076
      %2168 = vmax.xlane.f32.xlu0 %v2167
      %v2169 = vpop.xlane.xlu0 %2168
      %v2170 = vmax.f32 %v1990, %v2079
      %2171 = vmax.xlane.f32.xlu0 %v2170
      %v2172 = vpop.xlane.xlu0 %2171
      %v2173 = vmax.f32 %v1992, %v2081
      %2174 = vmax.xlane.f32.xlu0 %v2173
      %v2175 = vpop.xlane.xlu0 %2174
      %v2176 = vmax.f32 %v1995, %v2084
      %2177 = vmax.xlane.f32.xlu0 %v2176
      %v2178 = vpop.xlane.xlu0 %2177
      %v2179 = vmax.f32 %v1997, %v2086
      %2180 = vmax.xlane.f32.xlu0 %v2179
      %v2181 = vpop.xlane.xlu0 %2180
      %v2182 = vmax.f32 %v2000, %v2089
      %2183 = vmax.xlane.f32.xlu0 %v2182
      %v2184 = vpop.xlane.xlu0 %2183
      %v2185 = vmax.f32 %v2002, %v2091
      %2186 = vmax.xlane.f32.xlu0 %v2185
      %v2187 = vpop.xlane.xlu0 %2186
      %v2188 = vmax.f32 %v2005, %v2094
      %2189 = vmax.xlane.f32.xlu0 %v2188
      %v2190 = vpop.xlane.xlu0 %2189
      %v2191 = vmax.f32 %v2007, %v2096
      %2192 = vmax.xlane.f32.xlu0 %v2191
      %v2193 = vpop.xlane.xlu0 %2192
      %v2194 = vsub.f32 %v1930, %v2100
      %v2195 = vsub.f32 %v2019, %v2100
      %v2196 = vsub.f32 %v1932, %v2103
      %v2197 = vsub.f32 %v2021, %v2103
      %v2198 = vsub.f32 %v1935, %v2106
      %v2199 = vsub.f32 %v2024, %v2106
      %v2200 = vsub.f32 %v1937, %v2109
      %v2201 = vsub.f32 %v2026, %v2109
      %v2202 = vsub.f32 %v1940, %v2112
      %v2203 = vsub.f32 %v2029, %v2112
      %v2204 = vsub.f32 %v1942, %v2115
      %v2205 = vsub.f32 %v2031, %v2115
      %v2206 = vsub.f32 %v1945, %v2118
      %v2207 = vsub.f32 %v2034, %v2118
      %v2208 = vsub.f32 %v1947, %v2121
      %v2209 = vsub.f32 %v2036, %v2121
      %v2210 = vsub.f32 %v1950, %v2124
      %v2211 = vsub.f32 %v2039, %v2124
      %v2212 = vsub.f32 %v1952, %v2127
      %v2213 = vsub.f32 %v2041, %v2127
      %v2214 = vsub.f32 %v1955, %v2130
      %v2215 = vsub.f32 %v2044, %v2130
      %v2216 = vsub.f32 %v1957, %v2133
      %v2217 = vsub.f32 %v2046, %v2133
      %v2218 = vsub.f32 %v1960, %v2136
      %v2219 = vsub.f32 %v2049, %v2136
      %v2220 = vsub.f32 %v1962, %v2139
      %v2221 = vsub.f32 %v2051, %v2139
      %v2222 = vsub.f32 %v1965, %v2142
      %v2223 = vsub.f32 %v2054, %v2142
      %v2224 = vsub.f32 %v1967, %v2145
      %v2225 = vsub.f32 %v2056, %v2145
      %v2226 = vsub.f32 %v1970, %v2148
      %v2227 = vsub.f32 %v2059, %v2148
      %v2228 = vsub.f32 %v1972, %v2151
      %v2229 = vsub.f32 %v2061, %v2151
      %v2230 = vsub.f32 %v1975, %v2154
      %v2231 = vsub.f32 %v2064, %v2154
      %v2232 = vsub.f32 %v1977, %v2157
      %v2233 = vsub.f32 %v2066, %v2157
      %v2234 = vsub.f32 %v1980, %v2160
      %v2235 = vsub.f32 %v2069, %v2160
      %v2236 = vsub.f32 %v1982, %v2163
      %v2237 = vsub.f32 %v2071, %v2163
      %v2238 = vsub.f32 %v1985, %v2166
      %v2239 = vsub.f32 %v2074, %v2166
      %v2240 = vsub.f32 %v1987, %v2169
      %v2241 = vsub.f32 %v2076, %v2169
      %v2242 = vsub.f32 %v1990, %v2172
      %v2243 = vsub.f32 %v2079, %v2172
      %v2244 = vsub.f32 %v1992, %v2175
      %v2245 = vsub.f32 %v2081, %v2175
      %v2246 = vsub.f32 %v1995, %v2178
      %v2247 = vsub.f32 %v2084, %v2178
      %v2248 = vsub.f32 %v1997, %v2181
      %v2249 = vsub.f32 %v2086, %v2181
      %v2250 = vsub.f32 %v2000, %v2184
      %v2251 = vsub.f32 %v2089, %v2184
      %v2252 = vsub.f32 %v2002, %v2187
      %v2253 = vsub.f32 %v2091, %v2187
      %v2254 = vsub.f32 %v2005, %v2190
      %v2255 = vsub.f32 %v2094, %v2190
      %v2256 = vsub.f32 %v2007, %v2193
      %v2257 = vsub.f32 %v2096, %v2193
      %v2258 = vmul.f32 %v2194, 1.442695
      %v2259 = vpow.pop %v2258
      %v2260 = vmul.f32 %v2195, 1.442695
      %v2261 = vpow.pop %v2260
      %v2262 = vmul.f32 %v2196, 1.442695
      %v2263 = vpow.pop %v2262
      %v2264 = vmul.f32 %v2197, 1.442695
      %v2265 = vpow.pop %v2264
      %v2266 = vmul.f32 %v2198, 1.442695
      %v2267 = vpow.pop %v2266
      %v2268 = vmul.f32 %v2199, 1.442695
      %v2269 = vpow.pop %v2268
      %v2270 = vmul.f32 %v2200, 1.442695
      %v2271 = vpow.pop %v2270
      %v2272 = vmul.f32 %v2201, 1.442695
      %v2273 = vpow.pop %v2272
      %v2274 = vmul.f32 %v2202, 1.442695
      %v2275 = vpow.pop %v2274
      %v2276 = vmul.f32 %v2203, 1.442695
      %v2277 = vpow.pop %v2276
      %v2278 = vmul.f32 %v2204, 1.442695
      %v2279 = vpow.pop %v2278
      %v2280 = vmul.f32 %v2205, 1.442695
      %v2281 = vpow.pop %v2280
      %v2282 = vmul.f32 %v2206, 1.442695
      %v2283 = vpow.pop %v2282
      %v2284 = vmul.f32 %v2207, 1.442695
      %v2285 = vpow.pop %v2284
      %v2286 = vmul.f32 %v2208, 1.442695
      %v2287 = vpow.pop %v2286
      %v2288 = vmul.f32 %v2209, 1.442695
      %v2289 = vpow.pop %v2288
      %v2290 = vmul.f32 %v2210, 1.442695
      %v2291 = vpow.pop %v2290
      %v2292 = vmul.f32 %v2211, 1.442695
      %v2293 = vpow.pop %v2292
      %v2294 = vmul.f32 %v2212, 1.442695
      %v2295 = vpow.pop %v2294
      %v2296 = vmul.f32 %v2213, 1.442695
      %v2297 = vpow.pop %v2296
      %v2298 = vmul.f32 %v2214, 1.442695
      %v2299 = vpow.pop %v2298
      %v2300 = vmul.f32 %v2215, 1.442695
      %v2301 = vpow.pop %v2300
      %v2302 = vmul.f32 %v2216, 1.442695
      %v2303 = vpow.pop %v2302
      %v2304 = vmul.f32 %v2217, 1.442695
      %v2305 = vpow.pop %v2304
      %v2306 = vmul.f32 %v2218, 1.442695
      %v2307 = vpow.pop %v2306
      %v2308 = vmul.f32 %v2219, 1.442695
      %v2309 = vpow.pop %v2308
      %v2310 = vmul.f32 %v2220, 1.442695
      %v2311 = vpow.pop %v2310
      %v2312 = vmul.f32 %v2221, 1.442695
      %v2313 = vpow.pop %v2312
      %v2314 = vmul.f32 %v2222, 1.442695
      %v2315 = vpow.pop %v2314
      %v2316 = vmul.f32 %v2223, 1.442695
      %v2317 = vpow.pop %v2316
      %v2318 = vmul.f32 %v2224, 1.442695
      %v2319 = vpow.pop %v2318
      %v2320 = vmul.f32 %v2225, 1.442695
      %v2321 = vpow.pop %v2320
      %v2322 = vmul.f32 %v2226, 1.442695
      %v2323 = vpow.pop %v2322
      %v2324 = vmul.f32 %v2227, 1.442695
      %v2325 = vpow.pop %v2324
      %v2326 = vmul.f32 %v2228, 1.442695
      %v2327 = vpow.pop %v2326
      %v2328 = vmul.f32 %v2229, 1.442695
      %v2329 = vpow.pop %v2328
      %v2330 = vmul.f32 %v2230, 1.442695
      %v2331 = vpow.pop %v2330
      %v2332 = vmul.f32 %v2231, 1.442695
      %v2333 = vpow.pop %v2332
      %v2334 = vmul.f32 %v2232, 1.442695
      %v2335 = vpow.pop %v2334
      %v2336 = vmul.f32 %v2233, 1.442695
      %v2337 = vpow.pop %v2336
      %v2338 = vmul.f32 %v2234, 1.442695
      %v2339 = vpow.pop %v2338
      %v2340 = vmul.f32 %v2235, 1.442695
      %v2341 = vpow.pop %v2340
      %v2342 = vmul.f32 %v2236, 1.442695
      %v2343 = vpow.pop %v2342
      %v2344 = vmul.f32 %v2237, 1.442695
      %v2345 = vpow.pop %v2344
      %v2346 = vmul.f32 %v2238, 1.442695
      %v2347 = vpow.pop %v2346
      %v2348 = vmul.f32 %v2239, 1.442695
      %v2349 = vpow.pop %v2348
      %v2350 = vmul.f32 %v2240, 1.442695
      %v2351 = vpow.pop %v2350
      %v2352 = vmul.f32 %v2241, 1.442695
      %v2353 = vpow.pop %v2352
      %v2354 = vmul.f32 %v2242, 1.442695
      %v2355 = vpow.pop %v2354
      %v2356 = vmul.f32 %v2243, 1.442695
      %v2357 = vpow.pop %v2356
      %v2358 = vmul.f32 %v2244, 1.442695
      %v2359 = vpow.pop %v2358
      %v2360 = vmul.f32 %v2245, 1.442695
      %v2361 = vpow.pop %v2360
      %v2362 = vmul.f32 %v2246, 1.442695
      %v2363 = vpow.pop %v2362
      %v2364 = vmul.f32 %v2247, 1.442695
      %v2365 = vpow.pop %v2364
      %v2366 = vmul.f32 %v2248, 1.442695
      %v2367 = vpow.pop %v2366
      %v2368 = vmul.f32 %v2249, 1.442695
      %v2369 = vpow.pop %v2368
      %v2370 = vmul.f32 %v2250, 1.442695
      %v2371 = vpow.pop %v2370
      %v2372 = vmul.f32 %v2251, 1.442695
      %v2373 = vpow.pop %v2372
      %v2374 = vmul.f32 %v2252, 1.442695
      %v2375 = vpow.pop %v2374
      %v2376 = vmul.f32 %v2253, 1.442695
      %v2377 = vpow.pop %v2376
      %v2378 = vmul.f32 %v2254, 1.442695
      %v2379 = vpow.pop %v2378
      %v2380 = vmul.f32 %v2255, 1.442695
      %v2381 = vpow.pop %v2380
      %v2382 = vmul.f32 %v2256, 1.442695
      %v2383 = vpow.pop %v2382
      %v2384 = vmul.f32 %v2257, 1.442695
      %v2385 = vpow.pop %v2384
      %v2386 = vadd.f32 %v2259, %v2261
      %2387 = vadd.xlane.f32.xlu0 %v2386
      %v2388 = vpop.xlane.xlu0 %2387
      %v2389 = vadd.f32 %v2263, %v2265
      %2390 = vadd.xlane.f32.xlu0 %v2389
      %v2391 = vpop.xlane.xlu0 %2390
      %v2392 = vadd.f32 %v2267, %v2269
      %2393 = vadd.xlane.f32.xlu0 %v2392
      %v2394 = vpop.xlane.xlu0 %2393
      %v2395 = vadd.f32 %v2271, %v2273
      %2396 = vadd.xlane.f32.xlu0 %v2395
      %v2397 = vpop.xlane.xlu0 %2396
      %v2398 = vadd.f32 %v2275, %v2277
      %2399 = vadd.xlane.f32.xlu0 %v2398
      %v2400 = vpop.xlane.xlu0 %2399
      %v2401 = vadd.f32 %v2279, %v2281
      %2402 = vadd.xlane.f32.xlu0 %v2401
      %v2403 = vpop.xlane.xlu0 %2402
      %v2404 = vadd.f32 %v2283, %v2285
      %2405 = vadd.xlane.f32.xlu0 %v2404
      %v2406 = vpop.xlane.xlu0 %2405
      %v2407 = vadd.f32 %v2287, %v2289
      %2408 = vadd.xlane.f32.xlu0 %v2407
      %v2409 = vpop.xlane.xlu0 %2408
      %v2410 = vadd.f32 %v2291, %v2293
      %2411 = vadd.xlane.f32.xlu0 %v2410
      %v2412 = vpop.xlane.xlu0 %2411
      %v2413 = vadd.f32 %v2295, %v2297
      %2414 = vadd.xlane.f32.xlu0 %v2413
      %v2415 = vpop.xlane.xlu0 %2414
      %v2416 = vadd.f32 %v2299, %v2301
      %2417 = vadd.xlane.f32.xlu0 %v2416
      %v2418 = vpop.xlane.xlu0 %2417
      %v2419 = vadd.f32 %v2303, %v2305
      %2420 = vadd.xlane.f32.xlu0 %v2419
      %v2421 = vpop.xlane.xlu0 %2420
      %v2422 = vadd.f32 %v2307, %v2309
      %2423 = vadd.xlane.f32.xlu0 %v2422
      %v2424 = vpop.xlane.xlu0 %2423
      %v2425 = vadd.f32 %v2311, %v2313
      %2426 = vadd.xlane.f32.xlu0 %v2425
      %v2427 = vpop.xlane.xlu0 %2426
      %v2428 = vadd.f32 %v2315, %v2317
      %2429 = vadd.xlane.f32.xlu0 %v2428
      %v2430 = vpop.xlane.xlu0 %2429
      %v2431 = vadd.f32 %v2319, %v2321
      %2432 = vadd.xlane.f32.xlu0 %v2431
      %v2433 = vpop.xlane.xlu0 %2432
      %v2434 = vadd.f32 %v2323, %v2325
      %2435 = vadd.xlane.f32.xlu0 %v2434
      %v2436 = vpop.xlane.xlu0 %2435
      %v2437 = vadd.f32 %v2327, %v2329
      %2438 = vadd.xlane.f32.xlu0 %v2437
      %v2439 = vpop.xlane.xlu0 %2438
      %v2440 = vadd.f32 %v2331, %v2333
      %2441 = vadd.xlane.f32.xlu0 %v2440
      %v2442 = vpop.xlane.xlu0 %2441
      %v2443 = vadd.f32 %v2335, %v2337
      %2444 = vadd.xlane.f32.xlu0 %v2443
      %v2445 = vpop.xlane.xlu0 %2444
      %v2446 = vadd.f32 %v2339, %v2341
      %2447 = vadd.xlane.f32.xlu0 %v2446
      %v2448 = vpop.xlane.xlu0 %2447
      %v2449 = vadd.f32 %v2343, %v2345
      %2450 = vadd.xlane.f32.xlu0 %v2449
      %v2451 = vpop.xlane.xlu0 %2450
      %v2452 = vadd.f32 %v2347, %v2349
      %2453 = vadd.xlane.f32.xlu0 %v2452
      %v2454 = vpop.xlane.xlu0 %2453
      %v2455 = vadd.f32 %v2351, %v2353
      %2456 = vadd.xlane.f32.xlu0 %v2455
      %v2457 = vpop.xlane.xlu0 %2456
      %v2458 = vadd.f32 %v2355, %v2357
      %2459 = vadd.xlane.f32.xlu0 %v2458
      %v2460 = vpop.xlane.xlu0 %2459
      %v2461 = vadd.f32 %v2359, %v2361
      %2462 = vadd.xlane.f32.xlu0 %v2461
      %v2463 = vpop.xlane.xlu0 %2462
      %v2464 = vadd.f32 %v2363, %v2365
      %2465 = vadd.xlane.f32.xlu0 %v2464
      %v2466 = vpop.xlane.xlu0 %2465
      %v2467 = vadd.f32 %v2367, %v2369
      %2468 = vadd.xlane.f32.xlu0 %v2467
      %v2469 = vpop.xlane.xlu0 %2468
      %v2470 = vadd.f32 %v2371, %v2373
      %2471 = vadd.xlane.f32.xlu0 %v2470
      %v2472 = vpop.xlane.xlu0 %2471
      %v2473 = vadd.f32 %v2375, %v2377
      %2474 = vadd.xlane.f32.xlu0 %v2473
      %v2475 = vpop.xlane.xlu0 %2474
      %v2476 = vadd.f32 %v2379, %v2381
      %2477 = vadd.xlane.f32.xlu0 %v2476
      %v2478 = vpop.xlane.xlu0 %2477
      %v2479 = vadd.f32 %v2383, %v2385
      %2480 = vadd.xlane.f32.xlu0 %v2479
      %v2481 = vpop.xlane.xlu0 %2480
      %v2482 = vrcp.pop %v2388
      %v2483 = vrcp.pop %v2391
      %v2484 = vrcp.pop %v2394
      %v2485 = vrcp.pop %v2397
      %v2486 = vrcp.pop %v2400
      %v2487 = vrcp.pop %v2403
      %v2488 = vrcp.pop %v2406
      %v2489 = vrcp.pop %v2409
      %v2490 = vrcp.pop %v2412
      %v2491 = vrcp.pop %v2415
      %v2492 = vrcp.pop %v2418
      %v2493 = vrcp.pop %v2421
      %v2494 = vrcp.pop %v2424
      %v2495 = vrcp.pop %v2427
      %v2496 = vrcp.pop %v2430
      %v2497 = vrcp.pop %v2433
      %v2498 = vrcp.pop %v2436
      %v2499 = vrcp.pop %v2439
      %v2500 = vrcp.pop %v2442
      %v2501 = vrcp.pop %v2445
      %v2502 = vrcp.pop %v2448
      %v2503 = vrcp.pop %v2451
      %v2504 = vrcp.pop %v2454
      %v2505 = vrcp.pop %v2457
      %v2506 = vrcp.pop %v2460
      %v2507 = vrcp.pop %v2463
      %v2508 = vrcp.pop %v2466
      %v2509 = vrcp.pop %v2469
      %v2510 = vrcp.pop %v2472
      %v2511 = vrcp.pop %v2475
      %v2512 = vrcp.pop %v2478
      %v2513 = vrcp.pop %v2481
      %v2514 = vmul.f32 %v2259, %v2482
      %v2515 = vmul.f32 %v2261, %v2482
      %v2516 = vmul.f32 %v2263, %v2483
      %v2517 = vmul.f32 %v2265, %v2483
      %v2518 = vmul.f32 %v2267, %v2484
      %v2519 = vmul.f32 %v2269, %v2484
      %v2520 = vmul.f32 %v2271, %v2485
      %v2521 = vmul.f32 %v2273, %v2485
      %v2522 = vmul.f32 %v2275, %v2486
      %v2523 = vmul.f32 %v2277, %v2486
      %v2524 = vmul.f32 %v2279, %v2487
      %v2525 = vmul.f32 %v2281, %v2487
      %v2526 = vmul.f32 %v2283, %v2488
      %v2527 = vmul.f32 %v2285, %v2488
      %v2528 = vmul.f32 %v2287, %v2489
      %v2529 = vmul.f32 %v2289, %v2489
      %v2530 = vmul.f32 %v2291, %v2490
      %v2531 = vmul.f32 %v2293, %v2490
      %v2532 = vmul.f32 %v2295, %v2491
      %v2533 = vmul.f32 %v2297, %v2491
      %v2534 = vmul.f32 %v2299, %v2492
      %v2535 = vmul.f32 %v2301, %v2492
      %v2536 = vmul.f32 %v2303, %v2493
      %v2537 = vmul.f32 %v2305, %v2493
      %v2538 = vmul.f32 %v2307, %v2494
      %v2539 = vmul.f32 %v2309, %v2494
      %v2540 = vmul.f32 %v2311, %v2495
      %v2541 = vmul.f32 %v2313, %v2495
      %v2542 = vmul.f32 %v2315, %v2496
      %v2543 = vmul.f32 %v2317, %v2496
      %v2544 = vmul.f32 %v2319, %v2497
      %v2545 = vmul.f32 %v2321, %v2497
      %v2546 = vmul.f32 %v2323, %v2498
      %v2547 = vmul.f32 %v2325, %v2498
      %v2548 = vmul.f32 %v2327, %v2499
      %v2549 = vmul.f32 %v2329, %v2499
      %v2550 = vmul.f32 %v2331, %v2500
      %v2551 = vmul.f32 %v2333, %v2500
      %v2552 = vmul.f32 %v2335, %v2501
      %v2553 = vmul.f32 %v2337, %v2501
      %v2554 = vmul.f32 %v2339, %v2502
      %v2555 = vmul.f32 %v2341, %v2502
      %v2556 = vmul.f32 %v2343, %v2503
      %v2557 = vmul.f32 %v2345, %v2503
      %v2558 = vmul.f32 %v2347, %v2504
      %v2559 = vmul.f32 %v2349, %v2504
      %v2560 = vmul.f32 %v2351, %v2505
      %v2561 = vmul.f32 %v2353, %v2505
      %v2562 = vmul.f32 %v2355, %v2506
      %v2563 = vmul.f32 %v2357, %v2506
      %v2564 = vmul.f32 %v2359, %v2507
      %v2565 = vmul.f32 %v2361, %v2507
      %v2566 = vmul.f32 %v2363, %v2508
      %v2567 = vmul.f32 %v2365, %v2508
      %v2568 = vmul.f32 %v2367, %v2509
      %v2569 = vmul.f32 %v2369, %v2509
      %v2570 = vmul.f32 %v2371, %v2510
      %v2571 = vmul.f32 %v2373, %v2510
      %v2572 = vmul.f32 %v2375, %v2511
      %v2573 = vmul.f32 %v2377, %v2511
      %v2574 = vmul.f32 %v2379, %v2512
      %v2575 = vmul.f32 %v2381, %v2512
      %v2576 = vmul.f32 %v2383, %v2513
      %v2577 = vmul.f32 %v2385, %v2513
      %v2578 = vpack.c.bf16 %v2516, %v2514
      %v2579 = vpack.c.bf16 %v2517, %v2515
      %v2580 = vpack.c.bf16 %v2520, %v2518
      %v2581 = vpack.c.bf16 %v2521, %v2519
      %v2582 = vpack.c.bf16 %v2524, %v2522
      %v2583 = vpack.c.bf16 %v2525, %v2523
      %v2584 = vpack.c.bf16 %v2528, %v2526
      %v2585 = vpack.c.bf16 %v2529, %v2527
      %v2586 = vpack.c.bf16 %v2532, %v2530
      %v2587 = vpack.c.bf16 %v2533, %v2531
      %v2588 = vpack.c.bf16 %v2536, %v2534
      %v2589 = vpack.c.bf16 %v2537, %v2535
      %v2590 = vpack.c.bf16 %v2540, %v2538
      %v2591 = vpack.c.bf16 %v2541, %v2539
      %v2592 = vpack.c.bf16 %v2544, %v2542
      %v2593 = vpack.c.bf16 %v2545, %v2543
      %v2594 = vpack.c.bf16 %v2548, %v2546
      %v2595 = vpack.c.bf16 %v2549, %v2547
      %v2596 = vpack.c.bf16 %v2552, %v2550
      %v2597 = vpack.c.bf16 %v2553, %v2551
      %v2598 = vpack.c.bf16 %v2556, %v2554
      %v2599 = vpack.c.bf16 %v2557, %v2555
      %v2600 = vpack.c.bf16 %v2560, %v2558
      %v2601 = vpack.c.bf16 %v2561, %v2559
      %v2602 = vpack.c.bf16 %v2564, %v2562
      %v2603 = vpack.c.bf16 %v2565, %v2563
      %v2604 = vpack.c.bf16 %v2568, %v2566
      %v2605 = vpack.c.bf16 %v2569, %v2567
      %v2606 = vpack.c.bf16 %v2572, %v2570
      %v2607 = vpack.c.bf16 %v2573, %v2571
      %v2608 = vpack.c.bf16 %v2576, %v2574
      %v2609 = vpack.c.bf16 %v2577, %v2575
      %v2610 = vpack.c.bf16 %v1715, %v1713
      %v2611 = vpack.c.bf16 %v1720, %v1718
      %v2612 = vpack.c.bf16 %v1725, %v1723
      %v2613 = vpack.c.bf16 %v1730, %v1728
      %v2614 = vpack.c.bf16 %v1735, %v1733
      %v2615 = vpack.c.bf16 %v1740, %v1738
      %v2616 = vpack.c.bf16 %v1745, %v1743
      %v2617 = vpack.c.bf16 %v1750, %v1748
      %v2618 = vpack.c.bf16 %v1755, %v1753
      %v2619 = vpack.c.bf16 %v1760, %v1758
      %v2620 = vpack.c.bf16 %v1765, %v1763
      %v2621 = vpack.c.bf16 %v1770, %v1768
      %v2622 = vpack.c.bf16 %v1775, %v1773
      %v2623 = vpack.c.bf16 %v1780, %v1778
      %v2624 = vpack.c.bf16 %v1785, %v1783
      %v2625 = vpack.c.bf16 %v1790, %v1788
      %2626 = vmatpush.bf16.msra.mxu0 %v2617
      %2627 = vmatpush.bf16.msra.mxu0 %v2616
      %2628 = vmatpush.bf16.msra.mxu0 %v2615
      %2629 = vmatpush.bf16.msra.mxu0 %v2614
      %2630 = vmatpush.bf16.msra.mxu0 %v2613
      %2631 = vmatpush.bf16.msra.mxu0 %v2612
      %2632 = vmatpush.bf16.msra.mxu0 %v2611
      %2633 = vmatpush.bf16.msra.mxu0 %v2610
      %2634 = vmatmul.bf16.gmra.mxu0 %v2578
      %v2635 = vpop.f32.mrf.mxu0
      %v2636 = vadd.f32 %v597, %v2635
      %v2637 = vpop.f32.mrf.mxu0
      %v2638 = vadd.f32 %v598, %v2637
      %2639 = vmatmul.bf16.gmra.mxu0 %v2580
      %v2640 = vpop.f32.mrf.mxu0
      %v2641 = vadd.f32 %v599, %v2640
      %v2642 = vpop.f32.mrf.mxu0
      %v2643 = vadd.f32 %v600, %v2642
      %2644 = vmatmul.bf16.gmra.mxu0 %v2582
      %v2645 = vpop.f32.mrf.mxu0
      %v2646 = vadd.f32 %v601, %v2645
      %v2647 = vpop.f32.mrf.mxu0
      %v2648 = vadd.f32 %v602, %v2647
      %2649 = vmatmul.bf16.gmra.mxu0 %v2584
      %v2650 = vpop.f32.mrf.mxu0
      %v2651 = vadd.f32 %v603, %v2650
      %v2652 = vpop.f32.mrf.mxu0
      %v2653 = vadd.f32 %v604, %v2652
      %2654 = vmatmul.bf16.gmra.mxu0 %v2586
      %v2655 = vpop.f32.mrf.mxu0
      %v2656 = vadd.f32 %v605, %v2655
      %v2657 = vpop.f32.mrf.mxu0
      %v2658 = vadd.f32 %v606, %v2657
      %2659 = vmatmul.bf16.gmra.mxu0 %v2588
      %v2660 = vpop.f32.mrf.mxu0
      %v2661 = vadd.f32 %v607, %v2660
      %v2662 = vpop.f32.mrf.mxu0
      %v2663 = vadd.f32 %v608, %v2662
      %2664 = vmatmul.bf16.gmra.mxu0 %v2590
      %v2665 = vpop.f32.mrf.mxu0
      %v2666 = vadd.f32 %v609, %v2665
      %v2667 = vpop.f32.mrf.mxu0
      %v2668 = vadd.f32 %v610, %v2667
      %2669 = vmatmul.bf16.gmra.mxu0 %v2592
      %v2670 = vpop.f32.mrf.mxu0
      %v2671 = vadd.f32 %v611, %v2670
      %v2672 = vpop.f32.mrf.mxu0
      %v2673 = vadd.f32 %v612, %v2672
      %2674 = vmatmul.bf16.gmra.mxu0 %v2594
      %v2675 = vpop.f32.mrf.mxu0
      %v2676 = vadd.f32 %v613, %v2675
      %v2677 = vpop.f32.mrf.mxu0
      %v2678 = vadd.f32 %v614, %v2677
      %2679 = vmatmul.bf16.gmra.mxu0 %v2596
      %v2680 = vpop.f32.mrf.mxu0
      %v2681 = vadd.f32 %v615, %v2680
      %v2682 = vpop.f32.mrf.mxu0
      %v2683 = vadd.f32 %v616, %v2682
      %2684 = vmatmul.bf16.gmra.mxu0 %v2598
      %v2685 = vpop.f32.mrf.mxu0
      %v2686 = vadd.f32 %v617, %v2685
      %v2687 = vpop.f32.mrf.mxu0
      %v2688 = vadd.f32 %v618, %v2687
      %2689 = vmatmul.bf16.gmra.mxu0 %v2600
      %v2690 = vpop.f32.mrf.mxu0
      %v2691 = vadd.f32 %v619, %v2690
      %v2692 = vpop.f32.mrf.mxu0
      %v2693 = vadd.f32 %v620, %v2692
      %2694 = vmatmul.bf16.gmra.mxu0 %v2602
      %v2695 = vpop.f32.mrf.mxu0
      %v2696 = vadd.f32 %v621, %v2695
      %v2697 = vpop.f32.mrf.mxu0
      %v2698 = vadd.f32 %v622, %v2697
      %2699 = vmatmul.bf16.gmra.mxu0 %v2604
      %v2700 = vpop.f32.mrf.mxu0
      %v2701 = vadd.f32 %v623, %v2700
      %v2702 = vpop.f32.mrf.mxu0
      %v2703 = vadd.f32 %v624, %v2702
      %2704 = vmatmul.bf16.gmra.mxu0 %v2606
      %v2705 = vpop.f32.mrf.mxu0
      %v2706 = vadd.f32 %v625, %v2705
      %v2707 = vpop.f32.mrf.mxu0
      %v2708 = vadd.f32 %v626, %v2707
      %2709 = vmatmul.bf16.gmra.mxu0 %v2608
      %v2710 = vpop.f32.mrf.mxu0
      %v2711 = vadd.f32 %v627, %v2710
      %v2712 = vpop.f32.mrf.mxu0
      %v2713 = vadd.f32 %v628, %v2712
      %2714 = vdwg.mxu0
      %2715 = vmatpush.bf16.msra.mxu0 %v2625
      %2716 = vmatpush.bf16.msra.mxu0 %v2624
      %2717 = vmatpush.bf16.msra.mxu0 %v2623
      %2718 = vmatpush.bf16.msra.mxu0 %v2622
      %2719 = vmatpush.bf16.msra.mxu0 %v2621
      %2720 = vmatpush.bf16.msra.mxu0 %v2620
      %2721 = vmatpush.bf16.msra.mxu0 %v2619
      %2722 = vmatpush.bf16.msra.mxu0 %v2618
      %2723 = vmatmul.bf16.gmra.mxu0 %v2579
      %v2724 = vpop.f32.mrf.mxu0
      %v2725 = vadd.f32 %v2636, %v2724
      %v2726 = vpop.f32.mrf.mxu0
      %v2727 = vadd.f32 %v2638, %v2726
      %2728 = vmatmul.bf16.gmra.mxu0 %v2581
      %v2729 = vpop.f32.mrf.mxu0
      %v2730 = vadd.f32 %v2641, %v2729
      %v2731 = vpop.f32.mrf.mxu0
      %v2732 = vadd.f32 %v2643, %v2731
      %2733 = vmatmul.bf16.gmra.mxu0 %v2583
      %v2734 = vpop.f32.mrf.mxu0
      %v2735 = vadd.f32 %v2646, %v2734
      %v2736 = vpop.f32.mrf.mxu0
      %v2737 = vadd.f32 %v2648, %v2736
      %2738 = vmatmul.bf16.gmra.mxu0 %v2585
      %v2739 = vpop.f32.mrf.mxu0
      %v2740 = vadd.f32 %v2651, %v2739
      %v2741 = vpop.f32.mrf.mxu0
      %v2742 = vadd.f32 %v2653, %v2741
      %2743 = vmatmul.bf16.gmra.mxu0 %v2587
      %v2744 = vpop.f32.mrf.mxu0
      %v2745 = vadd.f32 %v2656, %v2744
      %v2746 = vpop.f32.mrf.mxu0
      %v2747 = vadd.f32 %v2658, %v2746
      %2748 = vmatmul.bf16.gmra.mxu0 %v2589
      %v2749 = vpop.f32.mrf.mxu0
      %v2750 = vadd.f32 %v2661, %v2749
      %v2751 = vpop.f32.mrf.mxu0
      %v2752 = vadd.f32 %v2663, %v2751
      %2753 = vmatmul.bf16.gmra.mxu0 %v2591
      %v2754 = vpop.f32.mrf.mxu0
      %v2755 = vadd.f32 %v2666, %v2754
      %v2756 = vpop.f32.mrf.mxu0
      %v2757 = vadd.f32 %v2668, %v2756
      %2758 = vmatmul.bf16.gmra.mxu0 %v2593
      %v2759 = vpop.f32.mrf.mxu0
      %v2760 = vadd.f32 %v2671, %v2759
      %v2761 = vpop.f32.mrf.mxu0
      %v2762 = vadd.f32 %v2673, %v2761
      %2763 = vmatmul.bf16.gmra.mxu0 %v2595
      %v2764 = vpop.f32.mrf.mxu0
      %v2765 = vadd.f32 %v2676, %v2764
      %v2766 = vpop.f32.mrf.mxu0
      %v2767 = vadd.f32 %v2678, %v2766
      %2768 = vmatmul.bf16.gmra.mxu0 %v2597
      %v2769 = vpop.f32.mrf.mxu0
      %v2770 = vadd.f32 %v2681, %v2769
      %v2771 = vpop.f32.mrf.mxu0
      %v2772 = vadd.f32 %v2683, %v2771
      %2773 = vmatmul.bf16.gmra.mxu0 %v2599
      %v2774 = vpop.f32.mrf.mxu0
      %v2775 = vadd.f32 %v2686, %v2774
      %v2776 = vpop.f32.mrf.mxu0
      %v2777 = vadd.f32 %v2688, %v2776
      %2778 = vmatmul.bf16.gmra.mxu0 %v2601
      %v2779 = vpop.f32.mrf.mxu0
      %v2780 = vadd.f32 %v2691, %v2779
      %v2781 = vpop.f32.mrf.mxu0
      %v2782 = vadd.f32 %v2693, %v2781
      %2783 = vmatmul.bf16.gmra.mxu0 %v2603
      %v2784 = vpop.f32.mrf.mxu0
      %v2785 = vadd.f32 %v2696, %v2784
      %v2786 = vpop.f32.mrf.mxu0
      %v2787 = vadd.f32 %v2698, %v2786
      %2788 = vmatmul.bf16.gmra.mxu0 %v2605
      %v2789 = vpop.f32.mrf.mxu0
      %v2790 = vadd.f32 %v2701, %v2789
      %v2791 = vpop.f32.mrf.mxu0
      %v2792 = vadd.f32 %v2703, %v2791
      %2793 = vmatmul.bf16.gmra.mxu0 %v2607
      %v2794 = vpop.f32.mrf.mxu0
      %v2795 = vadd.f32 %v2706, %v2794
      %v2796 = vpop.f32.mrf.mxu0
      %v2797 = vadd.f32 %v2708, %v2796
      %2798 = vmatmul.bf16.gmra.mxu0 %v2609
      %v2799 = vpop.f32.mrf.mxu0
      %v2800 = vadd.f32 %v2711, %v2799
      %v2801 = vpop.f32.mrf.mxu0
      %v2802 = vadd.f32 %v2713, %v2801
      %2803 = vdwg.mxu0
      %v2804 = vld [vmem:[%s14] sm:$0x1]
      %v2805 = vld [vmem:[%s15] sm:$0x1]
      %v2806 = vsel %vm631, %v2725, 0.0
      %2807 = vadd.xlane.f32.xlu0 %v2806
      %v2808 = vpop.xlane.xlu0 %2807
      %v2809 = vsel %vm631, %v2727, 0.0
      %2810 = vadd.xlane.f32.xlu0 %v2809
      %v2811 = vpop.xlane.xlu0 %2810
      %v2812 = vsel %vm631, %v2730, 0.0
      %2813 = vadd.xlane.f32.xlu0 %v2812
      %v2814 = vpop.xlane.xlu0 %2813
      %v2815 = vsel %vm631, %v2732, 0.0
      %2816 = vadd.xlane.f32.xlu0 %v2815
      %v2817 = vpop.xlane.xlu0 %2816
      %v2818 = vsel %vm631, %v2735, 0.0
      %2819 = vadd.xlane.f32.xlu0 %v2818
      %v2820 = vpop.xlane.xlu0 %2819
      %v2821 = vsel %vm631, %v2737, 0.0
      %2822 = vadd.xlane.f32.xlu0 %v2821
      %v2823 = vpop.xlane.xlu0 %2822
      %v2824 = vsel %vm631, %v2740, 0.0
      %2825 = vadd.xlane.f32.xlu0 %v2824
      %v2826 = vpop.xlane.xlu0 %2825
      %v2827 = vsel %vm631, %v2742, 0.0
      %2828 = vadd.xlane.f32.xlu0 %v2827
      %v2829 = vpop.xlane.xlu0 %2828
      %v2830 = vsel %vm631, %v2745, 0.0
      %2831 = vadd.xlane.f32.xlu0 %v2830
      %v2832 = vpop.xlane.xlu0 %2831
      %v2833 = vsel %vm631, %v2747, 0.0
      %2834 = vadd.xlane.f32.xlu0 %v2833
      %v2835 = vpop.xlane.xlu0 %2834
      %v2836 = vsel %vm631, %v2750, 0.0
      %2837 = vadd.xlane.f32.xlu0 %v2836
      %v2838 = vpop.xlane.xlu0 %2837
      %v2839 = vsel %vm631, %v2752, 0.0
      %2840 = vadd.xlane.f32.xlu0 %v2839
      %v2841 = vpop.xlane.xlu0 %2840
      %v2842 = vsel %vm631, %v2755, 0.0
      %2843 = vadd.xlane.f32.xlu0 %v2842
      %v2844 = vpop.xlane.xlu0 %2843
      %v2845 = vsel %vm631, %v2757, 0.0
      %2846 = vadd.xlane.f32.xlu0 %v2845
      %v2847 = vpop.xlane.xlu0 %2846
      %v2848 = vsel %vm631, %v2760, 0.0
      %2849 = vadd.xlane.f32.xlu0 %v2848
      %v2850 = vpop.xlane.xlu0 %2849
      %v2851 = vsel %vm631, %v2762, 0.0
      %2852 = vadd.xlane.f32.xlu0 %v2851
      %v2853 = vpop.xlane.xlu0 %2852
      %v2854 = vsel %vm631, %v2765, 0.0
      %2855 = vadd.xlane.f32.xlu0 %v2854
      %v2856 = vpop.xlane.xlu0 %2855
      %v2857 = vsel %vm631, %v2767, 0.0
      %2858 = vadd.xlane.f32.xlu0 %v2857
      %v2859 = vpop.xlane.xlu0 %2858
      %v2860 = vsel %vm631, %v2770, 0.0
      %2861 = vadd.xlane.f32.xlu0 %v2860
      %v2862 = vpop.xlane.xlu0 %2861
      %v2863 = vsel %vm631, %v2772, 0.0
      %2864 = vadd.xlane.f32.xlu0 %v2863
      %v2865 = vpop.xlane.xlu0 %2864
      %v2866 = vsel %vm631, %v2775, 0.0
      %2867 = vadd.xlane.f32.xlu0 %v2866
      %v2868 = vpop.xlane.xlu0 %2867
      %v2869 = vsel %vm631, %v2777, 0.0
      %2870 = vadd.xlane.f32.xlu0 %v2869
      %v2871 = vpop.xlane.xlu0 %2870
      %v2872 = vsel %vm631, %v2780, 0.0
      %2873 = vadd.xlane.f32.xlu0 %v2872
      %v2874 = vpop.xlane.xlu0 %2873
      %v2875 = vsel %vm631, %v2782, 0.0
      %2876 = vadd.xlane.f32.xlu0 %v2875
      %v2877 = vpop.xlane.xlu0 %2876
      %v2878 = vsel %vm631, %v2785, 0.0
      %2879 = vadd.xlane.f32.xlu0 %v2878
      %v2880 = vpop.xlane.xlu0 %2879
      %v2881 = vsel %vm631, %v2787, 0.0
      %2882 = vadd.xlane.f32.xlu0 %v2881
      %v2883 = vpop.xlane.xlu0 %2882
      %v2884 = vsel %vm631, %v2790, 0.0
      %2885 = vadd.xlane.f32.xlu0 %v2884
      %v2886 = vpop.xlane.xlu0 %2885
      %v2887 = vsel %vm631, %v2792, 0.0
      %2888 = vadd.xlane.f32.xlu0 %v2887
      %v2889 = vpop.xlane.xlu0 %2888
      %v2890 = vsel %vm631, %v2795, 0.0
      %2891 = vadd.xlane.f32.xlu0 %v2890
      %v2892 = vpop.xlane.xlu0 %2891
      %v2893 = vsel %vm631, %v2797, 0.0
      %2894 = vadd.xlane.f32.xlu0 %v2893
      %v2895 = vpop.xlane.xlu0 %2894
      %v2896 = vsel %vm631, %v2800, 0.0
      %2897 = vadd.xlane.f32.xlu0 %v2896
      %v2898 = vpop.xlane.xlu0 %2897
      %v2899 = vsel %vm631, %v2802, 0.0
      %2900 = vadd.xlane.f32.xlu0 %v2899
      %v2901 = vpop.xlane.xlu0 %2900
      %v2902 = vmul.f32 %v2808, %v734
      %v2903 = vmul.f32 %v2811, %v734
      %v2904 = vmul.f32 %v2814, %v734
      %v2905 = vmul.f32 %v2817, %v734
      %v2906 = vmul.f32 %v2820, %v734
      %v2907 = vmul.f32 %v2823, %v734
      %v2908 = vmul.f32 %v2826, %v734
      %v2909 = vmul.f32 %v2829, %v734
      %v2910 = vmul.f32 %v2832, %v734
      %v2911 = vmul.f32 %v2835, %v734
      %v2912 = vmul.f32 %v2838, %v734
      %v2913 = vmul.f32 %v2841, %v734
      %v2914 = vmul.f32 %v2844, %v734
      %v2915 = vmul.f32 %v2847, %v734
      %v2916 = vmul.f32 %v2850, %v734
      %v2917 = vmul.f32 %v2853, %v734
      %v2918 = vmul.f32 %v2856, %v734
      %v2919 = vmul.f32 %v2859, %v734
      %v2920 = vmul.f32 %v2862, %v734
      %v2921 = vmul.f32 %v2865, %v734
      %v2922 = vmul.f32 %v2868, %v734
      %v2923 = vmul.f32 %v2871, %v734
      %v2924 = vmul.f32 %v2874, %v734
      %v2925 = vmul.f32 %v2877, %v734
      %v2926 = vmul.f32 %v2880, %v734
      %v2927 = vmul.f32 %v2883, %v734
      %v2928 = vmul.f32 %v2886, %v734
      %v2929 = vmul.f32 %v2889, %v734
      %v2930 = vmul.f32 %v2892, %v734
      %v2931 = vmul.f32 %v2895, %v734
      %v2932 = vmul.f32 %v2898, %v734
      %v2933 = vmul.f32 %v2901, %v734
      %v2934 = vsub.f32 %v2725, %v2902
      %v2935 = vsub.f32 %v2727, %v2903
      %v2936 = vsub.f32 %v2730, %v2904
      %v2937 = vsub.f32 %v2732, %v2905
      %v2938 = vsub.f32 %v2735, %v2906
      %v2939 = vsub.f32 %v2737, %v2907
      %v2940 = vsub.f32 %v2740, %v2908
      %v2941 = vsub.f32 %v2742, %v2909
      %v2942 = vsub.f32 %v2745, %v2910
      %v2943 = vsub.f32 %v2747, %v2911
      %v2944 = vsub.f32 %v2750, %v2912
      %v2945 = vsub.f32 %v2752, %v2913
      %v2946 = vsub.f32 %v2755, %v2914
      %v2947 = vsub.f32 %v2757, %v2915
      %v2948 = vsub.f32 %v2760, %v2916
      %v2949 = vsub.f32 %v2762, %v2917
      %v2950 = vsub.f32 %v2765, %v2918
      %v2951 = vsub.f32 %v2767, %v2919
      %v2952 = vsub.f32 %v2770, %v2920
      %v2953 = vsub.f32 %v2772, %v2921
      %v2954 = vsub.f32 %v2775, %v2922
      %v2955 = vsub.f32 %v2777, %v2923
      %v2956 = vsub.f32 %v2780, %v2924
      %v2957 = vsub.f32 %v2782, %v2925
      %v2958 = vsub.f32 %v2785, %v2926
      %v2959 = vsub.f32 %v2787, %v2927
      %v2960 = vsub.f32 %v2790, %v2928
      %v2961 = vsub.f32 %v2792, %v2929
      %v2962 = vsub.f32 %v2795, %v2930
      %v2963 = vsub.f32 %v2797, %v2931
      %v2964 = vsub.f32 %v2800, %v2932
      %v2965 = vsub.f32 %v2802, %v2933
      %v2966 = vmul.f32 %v2934, %v2934
      %v2967 = vmul.f32 %v2935, %v2935
      %v2968 = vmul.f32 %v2936, %v2936
      %v2969 = vmul.f32 %v2937, %v2937
      %v2970 = vmul.f32 %v2938, %v2938
      %v2971 = vmul.f32 %v2939, %v2939
      %v2972 = vmul.f32 %v2940, %v2940
      %v2973 = vmul.f32 %v2941, %v2941
      %v2974 = vmul.f32 %v2942, %v2942
      %v2975 = vmul.f32 %v2943, %v2943
      %v2976 = vmul.f32 %v2944, %v2944
      %v2977 = vmul.f32 %v2945, %v2945
      %v2978 = vmul.f32 %v2946, %v2946
      %v2979 = vmul.f32 %v2947, %v2947
      %v2980 = vmul.f32 %v2948, %v2948
      %v2981 = vmul.f32 %v2949, %v2949
      %v2982 = vmul.f32 %v2950, %v2950
      %v2983 = vmul.f32 %v2951, %v2951
      %v2984 = vmul.f32 %v2952, %v2952
      %v2985 = vmul.f32 %v2953, %v2953
      %v2986 = vmul.f32 %v2954, %v2954
      %v2987 = vmul.f32 %v2955, %v2955
      %v2988 = vmul.f32 %v2956, %v2956
      %v2989 = vmul.f32 %v2957, %v2957
      %v2990 = vmul.f32 %v2958, %v2958
      %v2991 = vmul.f32 %v2959, %v2959
      %v2992 = vmul.f32 %v2960, %v2960
      %v2993 = vmul.f32 %v2961, %v2961
      %v2994 = vmul.f32 %v2962, %v2962
      %v2995 = vmul.f32 %v2963, %v2963
      %v2996 = vmul.f32 %v2964, %v2964
      %v2997 = vmul.f32 %v2965, %v2965
      %v2998 = vsel %vm631, %v2966, 0.0
      %2999 = vadd.xlane.f32.xlu0 %v2998
      %v3000 = vpop.xlane.xlu0 %2999
      %v3001 = vsel %vm631, %v2967, 0.0
      %3002 = vadd.xlane.f32.xlu0 %v3001
      %v3003 = vpop.xlane.xlu0 %3002
      %v3004 = vsel %vm631, %v2968, 0.0
      %3005 = vadd.xlane.f32.xlu0 %v3004
      %v3006 = vpop.xlane.xlu0 %3005
      %v3007 = vsel %vm631, %v2969, 0.0
      %3008 = vadd.xlane.f32.xlu0 %v3007
      %v3009 = vpop.xlane.xlu0 %3008
      %v3010 = vsel %vm631, %v2970, 0.0
      %3011 = vadd.xlane.f32.xlu0 %v3010
      %v3012 = vpop.xlane.xlu0 %3011
      %v3013 = vsel %vm631, %v2971, 0.0
      %3014 = vadd.xlane.f32.xlu0 %v3013
      %v3015 = vpop.xlane.xlu0 %3014
      %v3016 = vsel %vm631, %v2972, 0.0
      %3017 = vadd.xlane.f32.xlu0 %v3016
      %v3018 = vpop.xlane.xlu0 %3017
      %v3019 = vsel %vm631, %v2973, 0.0
      %3020 = vadd.xlane.f32.xlu0 %v3019
      %v3021 = vpop.xlane.xlu0 %3020
      %v3022 = vsel %vm631, %v2974, 0.0
      %3023 = vadd.xlane.f32.xlu0 %v3022
      %v3024 = vpop.xlane.xlu0 %3023
      %v3025 = vsel %vm631, %v2975, 0.0
      %3026 = vadd.xlane.f32.xlu0 %v3025
      %v3027 = vpop.xlane.xlu0 %3026
      %v3028 = vsel %vm631, %v2976, 0.0
      %3029 = vadd.xlane.f32.xlu0 %v3028
      %v3030 = vpop.xlane.xlu0 %3029
      %v3031 = vsel %vm631, %v2977, 0.0
      %3032 = vadd.xlane.f32.xlu0 %v3031
      %v3033 = vpop.xlane.xlu0 %3032
      %v3034 = vsel %vm631, %v2978, 0.0
      %3035 = vadd.xlane.f32.xlu0 %v3034
      %v3036 = vpop.xlane.xlu0 %3035
      %v3037 = vsel %vm631, %v2979, 0.0
      %3038 = vadd.xlane.f32.xlu0 %v3037
      %v3039 = vpop.xlane.xlu0 %3038
      %v3040 = vsel %vm631, %v2980, 0.0
      %3041 = vadd.xlane.f32.xlu0 %v3040
      %v3042 = vpop.xlane.xlu0 %3041
      %v3043 = vsel %vm631, %v2981, 0.0
      %3044 = vadd.xlane.f32.xlu0 %v3043
      %v3045 = vpop.xlane.xlu0 %3044
      %v3046 = vsel %vm631, %v2982, 0.0
      %3047 = vadd.xlane.f32.xlu0 %v3046
      %v3048 = vpop.xlane.xlu0 %3047
      %v3049 = vsel %vm631, %v2983, 0.0
      %3050 = vadd.xlane.f32.xlu0 %v3049
      %v3051 = vpop.xlane.xlu0 %3050
      %v3052 = vsel %vm631, %v2984, 0.0
      %3053 = vadd.xlane.f32.xlu0 %v3052
      %v3054 = vpop.xlane.xlu0 %3053
      %v3055 = vsel %vm631, %v2985, 0.0
      %3056 = vadd.xlane.f32.xlu0 %v3055
      %v3057 = vpop.xlane.xlu0 %3056
      %v3058 = vsel %vm631, %v2986, 0.0
      %3059 = vadd.xlane.f32.xlu0 %v3058
      %v3060 = vpop.xlane.xlu0 %3059
      %v3061 = vsel %vm631, %v2987, 0.0
      %3062 = vadd.xlane.f32.xlu0 %v3061
      %v3063 = vpop.xlane.xlu0 %3062
      %v3064 = vsel %vm631, %v2988, 0.0
      %3065 = vadd.xlane.f32.xlu0 %v3064
      %v3066 = vpop.xlane.xlu0 %3065
      %v3067 = vsel %vm631, %v2989, 0.0
      %3068 = vadd.xlane.f32.xlu0 %v3067
      %v3069 = vpop.xlane.xlu0 %3068
      %v3070 = vsel %vm631, %v2990, 0.0
      %3071 = vadd.xlane.f32.xlu0 %v3070
      %v3072 = vpop.xlane.xlu0 %3071
      %v3073 = vsel %vm631, %v2991, 0.0
      %3074 = vadd.xlane.f32.xlu0 %v3073
      %v3075 = vpop.xlane.xlu0 %3074
      %v3076 = vsel %vm631, %v2992, 0.0
      %3077 = vadd.xlane.f32.xlu0 %v3076
      %v3078 = vpop.xlane.xlu0 %3077
      %v3079 = vsel %vm631, %v2993, 0.0
      %3080 = vadd.xlane.f32.xlu0 %v3079
      %v3081 = vpop.xlane.xlu0 %3080
      %v3082 = vsel %vm631, %v2994, 0.0
      %3083 = vadd.xlane.f32.xlu0 %v3082
      %v3084 = vpop.xlane.xlu0 %3083
      %v3085 = vsel %vm631, %v2995, 0.0
      %3086 = vadd.xlane.f32.xlu0 %v3085
      %v3087 = vpop.xlane.xlu0 %3086
      %v3088 = vsel %vm631, %v2996, 0.0
      %3089 = vadd.xlane.f32.xlu0 %v3088
      %v3090 = vpop.xlane.xlu0 %3089
      %v3091 = vsel %vm631, %v2997, 0.0
      %3092 = vadd.xlane.f32.xlu0 %v3091
      %v3093 = vpop.xlane.xlu0 %3092
      %v3094 = vmul.f32 %v3000, %v734
      %v3095 = vmul.f32 %v3003, %v734
      %v3096 = vmul.f32 %v3006, %v734
      %v3097 = vmul.f32 %v3009, %v734
      %v3098 = vmul.f32 %v3012, %v734
      %v3099 = vmul.f32 %v3015, %v734
      %v3100 = vmul.f32 %v3018, %v734
      %v3101 = vmul.f32 %v3021, %v734
      %v3102 = vmul.f32 %v3024, %v734
      %v3103 = vmul.f32 %v3027, %v734
      %v3104 = vmul.f32 %v3030, %v734
      %v3105 = vmul.f32 %v3033, %v734
      %v3106 = vmul.f32 %v3036, %v734
      %v3107 = vmul.f32 %v3039, %v734
      %v3108 = vmul.f32 %v3042, %v734
      %v3109 = vmul.f32 %v3045, %v734
      %v3110 = vmul.f32 %v3048, %v734
      %v3111 = vmul.f32 %v3051, %v734
      %v3112 = vmul.f32 %v3054, %v734
      %v3113 = vmul.f32 %v3057, %v734
      %v3114 = vmul.f32 %v3060, %v734
      %v3115 = vmul.f32 %v3063, %v734
      %v3116 = vmul.f32 %v3066, %v734
      %v3117 = vmul.f32 %v3069, %v734
      %v3118 = vmul.f32 %v3072, %v734
      %v3119 = vmul.f32 %v3075, %v734
      %v3120 = vmul.f32 %v3078, %v734
      %v3121 = vmul.f32 %v3081, %v734
      %v3122 = vmul.f32 %v3084, %v734
      %v3123 = vmul.f32 %v3087, %v734
      %v3124 = vmul.f32 %v3090, %v734
      %v3125 = vmul.f32 %v3093, %v734
      %v3126 = vadd.f32 %v3094, 1e-05
      %v3127 = vadd.f32 %v3095, 1e-05
      %v3128 = vadd.f32 %v3096, 1e-05
      %v3129 = vadd.f32 %v3097, 1e-05
      %v3130 = vadd.f32 %v3098, 1e-05
      %v3131 = vadd.f32 %v3099, 1e-05
      %v3132 = vadd.f32 %v3100, 1e-05
      %v3133 = vadd.f32 %v3101, 1e-05
      %v3134 = vadd.f32 %v3102, 1e-05
      %v3135 = vadd.f32 %v3103, 1e-05
      %v3136 = vadd.f32 %v3104, 1e-05
      %v3137 = vadd.f32 %v3105, 1e-05
      %v3138 = vadd.f32 %v3106, 1e-05
      %v3139 = vadd.f32 %v3107, 1e-05
      %v3140 = vadd.f32 %v3108, 1e-05
      %v3141 = vadd.f32 %v3109, 1e-05
      %v3142 = vadd.f32 %v3110, 1e-05
      %v3143 = vadd.f32 %v3111, 1e-05
      %v3144 = vadd.f32 %v3112, 1e-05
      %v3145 = vadd.f32 %v3113, 1e-05
      %v3146 = vadd.f32 %v3114, 1e-05
      %v3147 = vadd.f32 %v3115, 1e-05
      %v3148 = vadd.f32 %v3116, 1e-05
      %v3149 = vadd.f32 %v3117, 1e-05
      %v3150 = vadd.f32 %v3118, 1e-05
      %v3151 = vadd.f32 %v3119, 1e-05
      %v3152 = vadd.f32 %v3120, 1e-05
      %v3153 = vadd.f32 %v3121, 1e-05
      %v3154 = vadd.f32 %v3122, 1e-05
      %v3155 = vadd.f32 %v3123, 1e-05
      %v3156 = vadd.f32 %v3124, 1e-05
      %v3157 = vadd.f32 %v3125, 1e-05
      %v3158 = vrsqrt.pop %v3126
      %v3159 = vmul.f32 %v3158, %v3126
      %v3160 = vmul.f32 %v3159, %v3158
      %v3161 = vmul.f32 0.5, %v3160
      %v3162 = vsub.f32 1.5, %v3161
      %v3163 = vmul.f32 %v3158, %v3162
      %vm3164 = vweird.f32 %v3126
      %vm3165 = vweird.f32 %v3158
      %vm3166 = vmor %vm3164, %vm3165
      %v3167 = vsel %vm3166, %v3158, %v3163
      %v3168 = vrsqrt.pop %v3127
      %v3169 = vmul.f32 %v3168, %v3127
      %v3170 = vmul.f32 %v3169, %v3168
      %v3171 = vmul.f32 0.5, %v3170
      %v3172 = vsub.f32 1.5, %v3171
      %v3173 = vmul.f32 %v3168, %v3172
      %vm3174 = vweird.f32 %v3127
      %vm3175 = vweird.f32 %v3168
      %vm3176 = vmor %vm3174, %vm3175
      %v3177 = vsel %vm3176, %v3168, %v3173
      %v3178 = vrsqrt.pop %v3128
      %v3179 = vmul.f32 %v3178, %v3128
      %v3180 = vmul.f32 %v3179, %v3178
      %v3181 = vmul.f32 0.5, %v3180
      %v3182 = vsub.f32 1.5, %v3181
      %v3183 = vmul.f32 %v3178, %v3182
      %vm3184 = vweird.f32 %v3128
      %vm3185 = vweird.f32 %v3178
      %vm3186 = vmor %vm3184, %vm3185
      %v3187 = vsel %vm3186, %v3178, %v3183
      %v3188 = vrsqrt.pop %v3129
      %v3189 = vmul.f32 %v3188, %v3129
      %v3190 = vmul.f32 %v3189, %v3188
      %v3191 = vmul.f32 0.5, %v3190
      %v3192 = vsub.f32 1.5, %v3191
      %v3193 = vmul.f32 %v3188, %v3192
      %vm3194 = vweird.f32 %v3129
      %vm3195 = vweird.f32 %v3188
      %vm3196 = vmor %vm3194, %vm3195
      %v3197 = vsel %vm3196, %v3188, %v3193
      %v3198 = vrsqrt.pop %v3130
      %v3199 = vmul.f32 %v3198, %v3130
      %v3200 = vmul.f32 %v3199, %v3198
      %v3201 = vmul.f32 0.5, %v3200
      %v3202 = vsub.f32 1.5, %v3201
      %v3203 = vmul.f32 %v3198, %v3202
      %vm3204 = vweird.f32 %v3130
      %vm3205 = vweird.f32 %v3198
      %vm3206 = vmor %vm3204, %vm3205
      %v3207 = vsel %vm3206, %v3198, %v3203
      %v3208 = vrsqrt.pop %v3131
      %v3209 = vmul.f32 %v3208, %v3131
      %v3210 = vmul.f32 %v3209, %v3208
      %v3211 = vmul.f32 0.5, %v3210
      %v3212 = vsub.f32 1.5, %v3211
      %v3213 = vmul.f32 %v3208, %v3212
      %vm3214 = vweird.f32 %v3131
      %vm3215 = vweird.f32 %v3208
      %vm3216 = vmor %vm3214, %vm3215
      %v3217 = vsel %vm3216, %v3208, %v3213
      %v3218 = vrsqrt.pop %v3132
      %v3219 = vmul.f32 %v3218, %v3132
      %v3220 = vmul.f32 %v3219, %v3218
      %v3221 = vmul.f32 0.5, %v3220
      %v3222 = vsub.f32 1.5, %v3221
      %v3223 = vmul.f32 %v3218, %v3222
      %vm3224 = vweird.f32 %v3132
      %vm3225 = vweird.f32 %v3218
      %vm3226 = vmor %vm3224, %vm3225
      %v3227 = vsel %vm3226, %v3218, %v3223
      %v3228 = vrsqrt.pop %v3133
      %v3229 = vmul.f32 %v3228, %v3133
      %v3230 = vmul.f32 %v3229, %v3228
      %v3231 = vmul.f32 0.5, %v3230
      %v3232 = vsub.f32 1.5, %v3231
      %v3233 = vmul.f32 %v3228, %v3232
      %vm3234 = vweird.f32 %v3133
      %vm3235 = vweird.f32 %v3228
      %vm3236 = vmor %vm3234, %vm3235
      %v3237 = vsel %vm3236, %v3228, %v3233
      %v3238 = vrsqrt.pop %v3134
      %v3239 = vmul.f32 %v3238, %v3134
      %v3240 = vmul.f32 %v3239, %v3238
      %v3241 = vmul.f32 0.5, %v3240
      %v3242 = vsub.f32 1.5, %v3241
      %v3243 = vmul.f32 %v3238, %v3242
      %vm3244 = vweird.f32 %v3134
      %vm3245 = vweird.f32 %v3238
      %vm3246 = vmor %vm3244, %vm3245
      %v3247 = vsel %vm3246, %v3238, %v3243
      %v3248 = vrsqrt.pop %v3135
      %v3249 = vmul.f32 %v3248, %v3135
      %v3250 = vmul.f32 %v3249, %v3248
      %v3251 = vmul.f32 0.5, %v3250
      %v3252 = vsub.f32 1.5, %v3251
      %v3253 = vmul.f32 %v3248, %v3252
      %vm3254 = vweird.f32 %v3135
      %vm3255 = vweird.f32 %v3248
      %vm3256 = vmor %vm3254, %vm3255
      %v3257 = vsel %vm3256, %v3248, %v3253
      %v3258 = vrsqrt.pop %v3136
      %v3259 = vmul.f32 %v3258, %v3136
      %v3260 = vmul.f32 %v3259, %v3258
      %v3261 = vmul.f32 0.5, %v3260
      %v3262 = vsub.f32 1.5, %v3261
      %v3263 = vmul.f32 %v3258, %v3262
      %vm3264 = vweird.f32 %v3136
      %vm3265 = vweird.f32 %v3258
      %vm3266 = vmor %vm3264, %vm3265
      %v3267 = vsel %vm3266, %v3258, %v3263
      %v3268 = vrsqrt.pop %v3137
      %v3269 = vmul.f32 %v3268, %v3137
      %v3270 = vmul.f32 %v3269, %v3268
      %v3271 = vmul.f32 0.5, %v3270
      %v3272 = vsub.f32 1.5, %v3271
      %v3273 = vmul.f32 %v3268, %v3272
      %vm3274 = vweird.f32 %v3137
      %vm3275 = vweird.f32 %v3268
      %vm3276 = vmor %vm3274, %vm3275
      %v3277 = vsel %vm3276, %v3268, %v3273
      %v3278 = vrsqrt.pop %v3138
      %v3279 = vmul.f32 %v3278, %v3138
      %v3280 = vmul.f32 %v3279, %v3278
      %v3281 = vmul.f32 0.5, %v3280
      %v3282 = vsub.f32 1.5, %v3281
      %v3283 = vmul.f32 %v3278, %v3282
      %vm3284 = vweird.f32 %v3138
      %vm3285 = vweird.f32 %v3278
      %vm3286 = vmor %vm3284, %vm3285
      %v3287 = vsel %vm3286, %v3278, %v3283
      %v3288 = vrsqrt.pop %v3139
      %v3289 = vmul.f32 %v3288, %v3139
      %v3290 = vmul.f32 %v3289, %v3288
      %v3291 = vmul.f32 0.5, %v3290
      %v3292 = vsub.f32 1.5, %v3291
      %v3293 = vmul.f32 %v3288, %v3292
      %vm3294 = vweird.f32 %v3139
      %vm3295 = vweird.f32 %v3288
      %vm3296 = vmor %vm3294, %vm3295
      %v3297 = vsel %vm3296, %v3288, %v3293
      %v3298 = vrsqrt.pop %v3140
      %v3299 = vmul.f32 %v3298, %v3140
      %v3300 = vmul.f32 %v3299, %v3298
      %v3301 = vmul.f32 0.5, %v3300
      %v3302 = vsub.f32 1.5, %v3301
      %v3303 = vmul.f32 %v3298, %v3302
      %vm3304 = vweird.f32 %v3140
      %vm3305 = vweird.f32 %v3298
      %vm3306 = vmor %vm3304, %vm3305
      %v3307 = vsel %vm3306, %v3298, %v3303
      %v3308 = vrsqrt.pop %v3141
      %v3309 = vmul.f32 %v3308, %v3141
      %v3310 = vmul.f32 %v3309, %v3308
      %v3311 = vmul.f32 0.5, %v3310
      %v3312 = vsub.f32 1.5, %v3311
      %v3313 = vmul.f32 %v3308, %v3312
      %vm3314 = vweird.f32 %v3141
      %vm3315 = vweird.f32 %v3308
      %vm3316 = vmor %vm3314, %vm3315
      %v3317 = vsel %vm3316, %v3308, %v3313
      %v3318 = vrsqrt.pop %v3142
      %v3319 = vmul.f32 %v3318, %v3142
      %v3320 = vmul.f32 %v3319, %v3318
      %v3321 = vmul.f32 0.5, %v3320
      %v3322 = vsub.f32 1.5, %v3321
      %v3323 = vmul.f32 %v3318, %v3322
      %vm3324 = vweird.f32 %v3142
      %vm3325 = vweird.f32 %v3318
      %vm3326 = vmor %vm3324, %vm3325
      %v3327 = vsel %vm3326, %v3318, %v3323
      %v3328 = vrsqrt.pop %v3143
      %v3329 = vmul.f32 %v3328, %v3143
      %v3330 = vmul.f32 %v3329, %v3328
      %v3331 = vmul.f32 0.5, %v3330
      %v3332 = vsub.f32 1.5, %v3331
      %v3333 = vmul.f32 %v3328, %v3332
      %vm3334 = vweird.f32 %v3143
      %vm3335 = vweird.f32 %v3328
      %vm3336 = vmor %vm3334, %vm3335
      %v3337 = vsel %vm3336, %v3328, %v3333
      %v3338 = vrsqrt.pop %v3144
      %v3339 = vmul.f32 %v3338, %v3144
      %v3340 = vmul.f32 %v3339, %v3338
      %v3341 = vmul.f32 0.5, %v3340
      %v3342 = vsub.f32 1.5, %v3341
      %v3343 = vmul.f32 %v3338, %v3342
      %vm3344 = vweird.f32 %v3144
      %vm3345 = vweird.f32 %v3338
      %vm3346 = vmor %vm3344, %vm3345
      %v3347 = vsel %vm3346, %v3338, %v3343
      %v3348 = vrsqrt.pop %v3145
      %v3349 = vmul.f32 %v3348, %v3145
      %v3350 = vmul.f32 %v3349, %v3348
      %v3351 = vmul.f32 0.5, %v3350
      %v3352 = vsub.f32 1.5, %v3351
      %v3353 = vmul.f32 %v3348, %v3352
      %vm3354 = vweird.f32 %v3145
      %vm3355 = vweird.f32 %v3348
      %vm3356 = vmor %vm3354, %vm3355
      %v3357 = vsel %vm3356, %v3348, %v3353
      %v3358 = vrsqrt.pop %v3146
      %v3359 = vmul.f32 %v3358, %v3146
      %v3360 = vmul.f32 %v3359, %v3358
      %v3361 = vmul.f32 0.5, %v3360
      %v3362 = vsub.f32 1.5, %v3361
      %v3363 = vmul.f32 %v3358, %v3362
      %vm3364 = vweird.f32 %v3146
      %vm3365 = vweird.f32 %v3358
      %vm3366 = vmor %vm3364, %vm3365
      %v3367 = vsel %vm3366, %v3358, %v3363
      %v3368 = vrsqrt.pop %v3147
      %v3369 = vmul.f32 %v3368, %v3147
      %v3370 = vmul.f32 %v3369, %v3368
      %v3371 = vmul.f32 0.5, %v3370
      %v3372 = vsub.f32 1.5, %v3371
      %v3373 = vmul.f32 %v3368, %v3372
      %vm3374 = vweird.f32 %v3147
      %vm3375 = vweird.f32 %v3368
      %vm3376 = vmor %vm3374, %vm3375
      %v3377 = vsel %vm3376, %v3368, %v3373
      %v3378 = vrsqrt.pop %v3148
      %v3379 = vmul.f32 %v3378, %v3148
      %v3380 = vmul.f32 %v3379, %v3378
      %v3381 = vmul.f32 0.5, %v3380
      %v3382 = vsub.f32 1.5, %v3381
      %v3383 = vmul.f32 %v3378, %v3382
      %vm3384 = vweird.f32 %v3148
      %vm3385 = vweird.f32 %v3378
      %vm3386 = vmor %vm3384, %vm3385
      %v3387 = vsel %vm3386, %v3378, %v3383
      %v3388 = vrsqrt.pop %v3149
      %v3389 = vmul.f32 %v3388, %v3149
      %v3390 = vmul.f32 %v3389, %v3388
      %v3391 = vmul.f32 0.5, %v3390
      %v3392 = vsub.f32 1.5, %v3391
      %v3393 = vmul.f32 %v3388, %v3392
      %vm3394 = vweird.f32 %v3149
      %vm3395 = vweird.f32 %v3388
      %vm3396 = vmor %vm3394, %vm3395
      %v3397 = vsel %vm3396, %v3388, %v3393
      %v3398 = vrsqrt.pop %v3150
      %v3399 = vmul.f32 %v3398, %v3150
      %v3400 = vmul.f32 %v3399, %v3398
      %v3401 = vmul.f32 0.5, %v3400
      %v3402 = vsub.f32 1.5, %v3401
      %v3403 = vmul.f32 %v3398, %v3402
      %vm3404 = vweird.f32 %v3150
      %vm3405 = vweird.f32 %v3398
      %vm3406 = vmor %vm3404, %vm3405
      %v3407 = vsel %vm3406, %v3398, %v3403
      %v3408 = vrsqrt.pop %v3151
      %v3409 = vmul.f32 %v3408, %v3151
      %v3410 = vmul.f32 %v3409, %v3408
      %v3411 = vmul.f32 0.5, %v3410
      %v3412 = vsub.f32 1.5, %v3411
      %v3413 = vmul.f32 %v3408, %v3412
      %vm3414 = vweird.f32 %v3151
      %vm3415 = vweird.f32 %v3408
      %vm3416 = vmor %vm3414, %vm3415
      %v3417 = vsel %vm3416, %v3408, %v3413
      %v3418 = vrsqrt.pop %v3152
      %v3419 = vmul.f32 %v3418, %v3152
      %v3420 = vmul.f32 %v3419, %v3418
      %v3421 = vmul.f32 0.5, %v3420
      %v3422 = vsub.f32 1.5, %v3421
      %v3423 = vmul.f32 %v3418, %v3422
      %vm3424 = vweird.f32 %v3152
      %vm3425 = vweird.f32 %v3418
      %vm3426 = vmor %vm3424, %vm3425
      %v3427 = vsel %vm3426, %v3418, %v3423
      %v3428 = vrsqrt.pop %v3153
      %v3429 = vmul.f32 %v3428, %v3153
      %v3430 = vmul.f32 %v3429, %v3428
      %v3431 = vmul.f32 0.5, %v3430
      %v3432 = vsub.f32 1.5, %v3431
      %v3433 = vmul.f32 %v3428, %v3432
      %vm3434 = vweird.f32 %v3153
      %vm3435 = vweird.f32 %v3428
      %vm3436 = vmor %vm3434, %vm3435
      %v3437 = vsel %vm3436, %v3428, %v3433
      %v3438 = vrsqrt.pop %v3154
      %v3439 = vmul.f32 %v3438, %v3154
      %v3440 = vmul.f32 %v3439, %v3438
      %v3441 = vmul.f32 0.5, %v3440
      %v3442 = vsub.f32 1.5, %v3441
      %v3443 = vmul.f32 %v3438, %v3442
      %vm3444 = vweird.f32 %v3154
      %vm3445 = vweird.f32 %v3438
      %vm3446 = vmor %vm3444, %vm3445
      %v3447 = vsel %vm3446, %v3438, %v3443
      %v3448 = vrsqrt.pop %v3155
      %v3449 = vmul.f32 %v3448, %v3155
      %v3450 = vmul.f32 %v3449, %v3448
      %v3451 = vmul.f32 0.5, %v3450
      %v3452 = vsub.f32 1.5, %v3451
      %v3453 = vmul.f32 %v3448, %v3452
      %vm3454 = vweird.f32 %v3155
      %vm3455 = vweird.f32 %v3448
      %vm3456 = vmor %vm3454, %vm3455
      %v3457 = vsel %vm3456, %v3448, %v3453
      %v3458 = vrsqrt.pop %v3156
      %v3459 = vmul.f32 %v3458, %v3156
      %v3460 = vmul.f32 %v3459, %v3458
      %v3461 = vmul.f32 0.5, %v3460
      %v3462 = vsub.f32 1.5, %v3461
      %v3463 = vmul.f32 %v3458, %v3462
      %vm3464 = vweird.f32 %v3156
      %vm3465 = vweird.f32 %v3458
      %vm3466 = vmor %vm3464, %vm3465
      %v3467 = vsel %vm3466, %v3458, %v3463
      %v3468 = vrsqrt.pop %v3157
      %v3469 = vmul.f32 %v3468, %v3157
      %v3470 = vmul.f32 %v3469, %v3468
      %v3471 = vmul.f32 0.5, %v3470
      %v3472 = vsub.f32 1.5, %v3471
      %v3473 = vmul.f32 %v3468, %v3472
      %vm3474 = vweird.f32 %v3157
      %vm3475 = vweird.f32 %v3468
      %vm3476 = vmor %vm3474, %vm3475
      %v3477 = vsel %vm3476, %v3468, %v3473
      %v3478 = vmul.f32 %v2934, %v3167
      %v3479 = vmul.f32 %v2935, %v3177
      %v3480 = vmul.f32 %v2936, %v3187
      %v3481 = vmul.f32 %v2937, %v3197
      %v3482 = vmul.f32 %v2938, %v3207
      %v3483 = vmul.f32 %v2939, %v3217
      %v3484 = vmul.f32 %v2940, %v3227
      %v3485 = vmul.f32 %v2941, %v3237
      %v3486 = vmul.f32 %v2942, %v3247
      %v3487 = vmul.f32 %v2943, %v3257
      %v3488 = vmul.f32 %v2944, %v3267
      %v3489 = vmul.f32 %v2945, %v3277
      %v3490 = vmul.f32 %v2946, %v3287
      %v3491 = vmul.f32 %v2947, %v3297
      %v3492 = vmul.f32 %v2948, %v3307
      %v3493 = vmul.f32 %v2949, %v3317
      %v3494 = vmul.f32 %v2950, %v3327
      %v3495 = vmul.f32 %v2951, %v3337
      %v3496 = vmul.f32 %v2952, %v3347
      %v3497 = vmul.f32 %v2953, %v3357
      %v3498 = vmul.f32 %v2954, %v3367
      %v3499 = vmul.f32 %v2955, %v3377
      %v3500 = vmul.f32 %v2956, %v3387
      %v3501 = vmul.f32 %v2957, %v3397
      %v3502 = vmul.f32 %v2958, %v3407
      %v3503 = vmul.f32 %v2959, %v3417
      %v3504 = vmul.f32 %v2960, %v3427
      %v3505 = vmul.f32 %v2961, %v3437
      %v3506 = vmul.f32 %v2962, %v3447
      %v3507 = vmul.f32 %v2963, %v3457
      %v3508 = vmul.f32 %v2964, %v3467
      %v3509 = vmul.f32 %v2965, %v3477
      %v3511 = vperm.slane %v2804, 0
      %v3513 = vmul.f32 %v3478, %v3511
      %v3514 = vmul.f32 %v3479, %v3511
      %v3515 = vmul.f32 %v3480, %v3511
      %v3516 = vmul.f32 %v3481, %v3511
      %v3517 = vmul.f32 %v3482, %v3511
      %v3518 = vmul.f32 %v3483, %v3511
      %v3519 = vmul.f32 %v3484, %v3511
      %v3520 = vmul.f32 %v3485, %v3511
      %v3521 = vmul.f32 %v3486, %v3511
      %v3522 = vmul.f32 %v3487, %v3511
      %v3523 = vmul.f32 %v3488, %v3511
      %v3524 = vmul.f32 %v3489, %v3511
      %v3525 = vmul.f32 %v3490, %v3511
      %v3526 = vmul.f32 %v3491, %v3511
      %v3527 = vmul.f32 %v3492, %v3511
      %v3528 = vmul.f32 %v3493, %v3511
      %v3529 = vmul.f32 %v3494, %v3511
      %v3530 = vmul.f32 %v3495, %v3511
      %v3531 = vmul.f32 %v3496, %v3511
      %v3532 = vmul.f32 %v3497, %v3511
      %v3533 = vmul.f32 %v3498, %v3511
      %v3534 = vmul.f32 %v3499, %v3511
      %v3535 = vmul.f32 %v3500, %v3511
      %v3536 = vmul.f32 %v3501, %v3511
      %v3537 = vmul.f32 %v3502, %v3511
      %v3538 = vmul.f32 %v3503, %v3511
      %v3539 = vmul.f32 %v3504, %v3511
      %v3540 = vmul.f32 %v3505, %v3511
      %v3541 = vmul.f32 %v3506, %v3511
      %v3542 = vmul.f32 %v3507, %v3511
      %v3543 = vmul.f32 %v3508, %v3511
      %v3544 = vmul.f32 %v3509, %v3511
      %v3546 = vperm.slane %v2805, 0
      %v3548 = vadd.f32 %v3513, %v3546
      %v3549 = vadd.f32 %v3514, %v3546
      %v3550 = vadd.f32 %v3515, %v3546
      %v3551 = vadd.f32 %v3516, %v3546
      %v3552 = vadd.f32 %v3517, %v3546
      %v3553 = vadd.f32 %v3518, %v3546
      %v3554 = vadd.f32 %v3519, %v3546
      %v3555 = vadd.f32 %v3520, %v3546
      %v3556 = vadd.f32 %v3521, %v3546
      %v3557 = vadd.f32 %v3522, %v3546
      %v3558 = vadd.f32 %v3523, %v3546
      %v3559 = vadd.f32 %v3524, %v3546
      %v3560 = vadd.f32 %v3525, %v3546
      %v3561 = vadd.f32 %v3526, %v3546
      %v3562 = vadd.f32 %v3527, %v3546
      %v3563 = vadd.f32 %v3528, %v3546
      %v3564 = vadd.f32 %v3529, %v3546
      %v3565 = vadd.f32 %v3530, %v3546
      %v3566 = vadd.f32 %v3531, %v3546
      %v3567 = vadd.f32 %v3532, %v3546
      %v3568 = vadd.f32 %v3533, %v3546
      %v3569 = vadd.f32 %v3534, %v3546
      %v3570 = vadd.f32 %v3535, %v3546
      %v3571 = vadd.f32 %v3536, %v3546
      %v3572 = vadd.f32 %v3537, %v3546
      %v3573 = vadd.f32 %v3538, %v3546
      %v3574 = vadd.f32 %v3539, %v3546
      %v3575 = vadd.f32 %v3540, %v3546
      %v3576 = vadd.f32 %v3541, %v3546
      %v3577 = vadd.f32 %v3542, %v3546
      %v3578 = vadd.f32 %v3543, %v3546
      %v3579 = vadd.f32 %v3544, %v3546
      %v3580 = vld [vmem:[%s590] sm:$0xff]
      %v3581 = vld [vmem:[%s590 + $0x8] sm:$0xff]
      %v3582 = vld [vmem:[%s590 + $0x10] sm:$0xff]
      %v3583 = vld [vmem:[%s590 + $0x18] sm:$0xff]
      %v3584 = vld [vmem:[%s590 + $0x20] sm:$0xff]
      %v3585 = vld [vmem:[%s590 + $0x28] sm:$0xff]
      %v3586 = vld [vmem:[%s590 + $0x30] sm:$0xff]
      %v3587 = vld [vmem:[%s590 + $0x38] sm:$0xff]
      %v3588 = vld [vmem:[%s590 + $0x40] sm:$0xff]
      %v3589 = vld [vmem:[%s590 + $0x48] sm:$0xff]
      %v3590 = vld [vmem:[%s590 + $0x50] sm:$0xff]
      %v3591 = vld [vmem:[%s590 + $0x58] sm:$0xff]
      %v3592 = vld [vmem:[%s590 + $0x60] sm:$0xff]
      %v3593 = vld [vmem:[%s590 + $0x68] sm:$0xff]
      %v3594 = vld [vmem:[%s590 + $0x70] sm:$0xff]
      %v3595 = vld [vmem:[%s590 + $0x78] sm:$0xff]
      %v3596 = vpack.c.bf16 %v3581, %v3580
      %v3597 = vpack.c.bf16 %v3583, %v3582
      %v3598 = vpack.c.bf16 %v3585, %v3584
      %v3599 = vpack.c.bf16 %v3587, %v3586
      %v3600 = vpack.c.bf16 %v3589, %v3588
      %v3601 = vpack.c.bf16 %v3591, %v3590
      %v3602 = vpack.c.bf16 %v3593, %v3592
      %v3603 = vpack.c.bf16 %v3595, %v3594
      %v3604 = vpack.c.bf16 %v3549, %v3548
      %v3605 = vpack.c.bf16 %v3551, %v3550
      %v3606 = vpack.c.bf16 %v3553, %v3552
      %v3607 = vpack.c.bf16 %v3555, %v3554
      %v3608 = vpack.c.bf16 %v3557, %v3556
      %v3609 = vpack.c.bf16 %v3559, %v3558
      %v3610 = vpack.c.bf16 %v3561, %v3560
      %v3611 = vpack.c.bf16 %v3563, %v3562
      %v3612 = vpack.c.bf16 %v3565, %v3564
      %v3613 = vpack.c.bf16 %v3567, %v3566
      %v3614 = vpack.c.bf16 %v3569, %v3568
      %v3615 = vpack.c.bf16 %v3571, %v3570
      %v3616 = vpack.c.bf16 %v3573, %v3572
      %v3617 = vpack.c.bf16 %v3575, %v3574
      %v3618 = vpack.c.bf16 %v3577, %v3576
      %v3619 = vpack.c.bf16 %v3579, %v3578
      %v3620 = vld [vmem:[%s5] sm:$0xf]
      %v3621 = vld [vmem:[%s5 + $0x4] sm:$0xf]
      %v3622 = vld [vmem:[%s5 + $0x8] sm:$0xf]
      %v3623 = vld [vmem:[%s5 + $0xc] sm:$0xf]
      %v3628 = vunpack.c.l.b16 %v3620
      %v3629 = vunpack.c.l.b16 %v3621
      %v3630 = vunpack.c.l.b16 %v3622
      %v3631 = vunpack.c.l.b16 %v3623
      %v3632 = vpack.c.b16 %v3629, %v3628
      %v3633 = vpack.c.b16 %v3631, %v3630
      %v3637 = vsel %vm631, %v3604, 0
      %v3640 = vsel %vm631, %v3605, 0
      %v3643 = vsel %vm631, %v3606, 0
      %v3646 = vsel %vm631, %v3607, 0
      %v3649 = vsel %vm631, %v3608, 0
      %v3652 = vsel %vm631, %v3609, 0
      %v3655 = vsel %vm631, %v3610, 0
      %v3658 = vsel %vm631, %v3611, 0
      %v3661 = vsel %vm631, %v3612, 0
      %v3664 = vsel %vm631, %v3613, 0
      %v3667 = vsel %vm631, %v3614, 0
      %v3670 = vsel %vm631, %v3615, 0
      %v3673 = vsel %vm631, %v3616, 0
      %v3676 = vsel %vm631, %v3617, 0
      %v3679 = vsel %vm631, %v3618, 0
      %v3682 = vsel %vm631, %v3619, 0
      %3684 = vmatpush.bf16.msra.mxu0 0
      %3685 = vmatpush.bf16.msra.mxu0 0
      %3686 = vmatpush.bf16.msra.mxu0 0
      %3687 = vmatpush.bf16.msra.mxu0 0
      %3688 = vmatpush.bf16.msra.mxu0 0
      %3689 = vmatpush.bf16.msra.mxu0 0
      %3690 = vmatpush.bf16.msra.mxu0 %v3633
      %3691 = vmatpush.bf16.msra.mxu0 %v3632
      %3692 = vmatmul.bf16.gmra.mxu0 %v3637
      %v3693 = vpop.f32.mrf.mxu0
      %v3694 = vadd.f32 0.0, %v3693
      %v3695 = vpop.f32.mrf.mxu0
      %v3696 = vadd.f32 0.0, %v3695
      %3697 = vmatmul.bf16.gmra.mxu0 %v3640
      %v3698 = vpop.f32.mrf.mxu0
      %v3699 = vadd.f32 0.0, %v3698
      %v3700 = vpop.f32.mrf.mxu0
      %v3701 = vadd.f32 0.0, %v3700
      %3702 = vmatmul.bf16.gmra.mxu0 %v3643
      %v3703 = vpop.f32.mrf.mxu0
      %v3704 = vadd.f32 0.0, %v3703
      %v3705 = vpop.f32.mrf.mxu0
      %v3706 = vadd.f32 0.0, %v3705
      %3707 = vmatmul.bf16.gmra.mxu0 %v3646
      %v3708 = vpop.f32.mrf.mxu0
      %v3709 = vadd.f32 0.0, %v3708
      %v3710 = vpop.f32.mrf.mxu0
      %v3711 = vadd.f32 0.0, %v3710
      %3712 = vmatmul.bf16.gmra.mxu0 %v3649
      %v3713 = vpop.f32.mrf.mxu0
      %v3714 = vadd.f32 0.0, %v3713
      %v3715 = vpop.f32.mrf.mxu0
      %v3716 = vadd.f32 0.0, %v3715
      %3717 = vmatmul.bf16.gmra.mxu0 %v3652
      %v3718 = vpop.f32.mrf.mxu0
      %v3719 = vadd.f32 0.0, %v3718
      %v3720 = vpop.f32.mrf.mxu0
      %v3721 = vadd.f32 0.0, %v3720
      %3722 = vmatmul.bf16.gmra.mxu0 %v3655
      %v3723 = vpop.f32.mrf.mxu0
      %v3724 = vadd.f32 0.0, %v3723
      %v3725 = vpop.f32.mrf.mxu0
      %v3726 = vadd.f32 0.0, %v3725
      %3727 = vmatmul.bf16.gmra.mxu0 %v3658
      %v3728 = vpop.f32.mrf.mxu0
      %v3729 = vadd.f32 0.0, %v3728
      %v3730 = vpop.f32.mrf.mxu0
      %v3731 = vadd.f32 0.0, %v3730
      %3732 = vmatmul.bf16.gmra.mxu0 %v3661
      %v3733 = vpop.f32.mrf.mxu0
      %v3734 = vadd.f32 0.0, %v3733
      %v3735 = vpop.f32.mrf.mxu0
      %v3736 = vadd.f32 0.0, %v3735
      %3737 = vmatmul.bf16.gmra.mxu0 %v3664
      %v3738 = vpop.f32.mrf.mxu0
      %v3739 = vadd.f32 0.0, %v3738
      %v3740 = vpop.f32.mrf.mxu0
      %v3741 = vadd.f32 0.0, %v3740
      %3742 = vmatmul.bf16.gmra.mxu0 %v3667
      %v3743 = vpop.f32.mrf.mxu0
      %v3744 = vadd.f32 0.0, %v3743
      %v3745 = vpop.f32.mrf.mxu0
      %v3746 = vadd.f32 0.0, %v3745
      %3747 = vmatmul.bf16.gmra.mxu0 %v3670
      %v3748 = vpop.f32.mrf.mxu0
      %v3749 = vadd.f32 0.0, %v3748
      %v3750 = vpop.f32.mrf.mxu0
      %v3751 = vadd.f32 0.0, %v3750
      %3752 = vmatmul.bf16.gmra.mxu0 %v3673
      %v3753 = vpop.f32.mrf.mxu0
      %v3754 = vadd.f32 0.0, %v3753
      %v3755 = vpop.f32.mrf.mxu0
      %v3756 = vadd.f32 0.0, %v3755
      %3757 = vmatmul.bf16.gmra.mxu0 %v3676
      %v3758 = vpop.f32.mrf.mxu0
      %v3759 = vadd.f32 0.0, %v3758
      %v3760 = vpop.f32.mrf.mxu0
      %v3761 = vadd.f32 0.0, %v3760
      %3762 = vmatmul.bf16.gmra.mxu0 %v3679
      %v3763 = vpop.f32.mrf.mxu0
      %v3764 = vadd.f32 0.0, %v3763
      %v3765 = vpop.f32.mrf.mxu0
      %v3766 = vadd.f32 0.0, %v3765
      %3767 = vmatmul.bf16.gmra.mxu0 %v3682
      %v3768 = vpop.f32.mrf.mxu0
      %v3769 = vadd.f32 0.0, %v3768
      %v3770 = vpop.f32.mrf.mxu0
      %v3771 = vadd.f32 0.0, %v3770
      %3772 = vdwg.mxu0
      %v3773 = vld [vmem:[%s6] sm:$0xf]
      %v3774 = vld [vmem:[%s6 + $0x4] sm:$0xf]
      %v3777 = vunpack.c.l.b16 %v3773
      %v3778 = vunpack.c.l.b16 %v3774
      %v3779 = vpack.c.b16 %v3778, %v3777
      %vm3781 = vcmask 130048
      %v3783 = vsel %vm3781, %v3596, 0
      %v3786 = vsel %vm3781, %v3597, 0
      %v3789 = vsel %vm3781, %v3598, 0
      %v3792 = vsel %vm3781, %v3599, 0
      %v3795 = vsel %vm3781, %v3600, 0
      %v3798 = vsel %vm3781, %v3601, 0
      %v3801 = vsel %vm3781, %v3602, 0
      %v3804 = vsel %vm3781, %v3603, 0
      %3806 = vmatpush.bf16.msra.mxu0 0
      %3807 = vmatpush.bf16.msra.mxu0 0
      %3808 = vmatpush.bf16.msra.mxu0 0
      %3809 = vmatpush.bf16.msra.mxu0 0
      %3810 = vmatpush.bf16.msra.mxu0 0
      %3811 = vmatpush.bf16.msra.mxu0 0
      %3812 = vmatpush.bf16.msra.mxu0 0
      %3813 = vmatpush.bf16.msra.mxu0 %v3779
      %3814 = vmatmul.bf16.gmra.mxu0 %v3783
      %v3815 = vpop.f32.mrf.mxu0
      %v3816 = vadd.f32 0.0, %v3815
      %v3817 = vpop.f32.mrf.mxu0
      %v3818 = vadd.f32 0.0, %v3817
      %3819 = vmatmul.bf16.gmra.mxu0 %v3786
      %v3820 = vpop.f32.mrf.mxu0
      %v3821 = vadd.f32 0.0, %v3820
      %v3822 = vpop.f32.mrf.mxu0
      %v3823 = vadd.f32 0.0, %v3822
      %3824 = vmatmul.bf16.gmra.mxu0 %v3789
      %v3825 = vpop.f32.mrf.mxu0
      %v3826 = vadd.f32 0.0, %v3825
      %v3827 = vpop.f32.mrf.mxu0
      %v3828 = vadd.f32 0.0, %v3827
      %3829 = vmatmul.bf16.gmra.mxu0 %v3792
      %v3830 = vpop.f32.mrf.mxu0
      %v3831 = vadd.f32 0.0, %v3830
      %v3832 = vpop.f32.mrf.mxu0
      %v3833 = vadd.f32 0.0, %v3832
      %3834 = vmatmul.bf16.gmra.mxu0 %v3795
      %v3835 = vpop.f32.mrf.mxu0
      %v3836 = vadd.f32 0.0, %v3835
      %v3837 = vpop.f32.mrf.mxu0
      %v3838 = vadd.f32 0.0, %v3837
      %3839 = vmatmul.bf16.gmra.mxu0 %v3798
      %v3840 = vpop.f32.mrf.mxu0
      %v3841 = vadd.f32 0.0, %v3840
      %v3842 = vpop.f32.mrf.mxu0
      %v3843 = vadd.f32 0.0, %v3842
      %3844 = vmatmul.bf16.gmra.mxu0 %v3801
      %v3845 = vpop.f32.mrf.mxu0
      %v3846 = vadd.f32 0.0, %v3845
      %v3847 = vpop.f32.mrf.mxu0
      %v3848 = vadd.f32 0.0, %v3847
      %3849 = vmatmul.bf16.gmra.mxu0 %v3804
      %v3850 = vpop.f32.mrf.mxu0
      %v3851 = vadd.f32 0.0, %v3850
      %v3852 = vpop.f32.mrf.mxu0
      %v3853 = vadd.f32 0.0, %v3852
      %3854 = vdwg.mxu0
      %v3855 = vld [vmem:[%s7] sm:$0xf]
      %v3856 = vld [vmem:[%s7 + $0x4] sm:$0xf]
      %v3859 = vunpack.c.l.b16 %v3855
      %v3860 = vunpack.c.l.b16 %v3856
      %v3861 = vpack.c.b16 %v3860, %v3859
      %3863 = vmatpush.bf16.msra.mxu0 0
      %3864 = vmatpush.bf16.msra.mxu0 0
      %3865 = vmatpush.bf16.msra.mxu0 0
      %3866 = vmatpush.bf16.msra.mxu0 0
      %3867 = vmatpush.bf16.msra.mxu0 0
      %3868 = vmatpush.bf16.msra.mxu0 0
      %3869 = vmatpush.bf16.msra.mxu0 0
      %3870 = vmatpush.bf16.msra.mxu0 %v3861
      %3871 = vmatmul.bf16.gmra.mxu0 %v3783
      %v3872 = vpop.f32.mrf.mxu0
      %v3873 = vadd.f32 0.0, %v3872
      %v3874 = vpop.f32.mrf.mxu0
      %v3875 = vadd.f32 0.0, %v3874
      %3876 = vmatmul.bf16.gmra.mxu0 %v3786
      %v3877 = vpop.f32.mrf.mxu0
      %v3878 = vadd.f32 0.0, %v3877
      %v3879 = vpop.f32.mrf.mxu0
      %v3880 = vadd.f32 0.0, %v3879
      %3881 = vmatmul.bf16.gmra.mxu0 %v3789
      %v3882 = vpop.f32.mrf.mxu0
      %v3883 = vadd.f32 0.0, %v3882
      %v3884 = vpop.f32.mrf.mxu0
      %v3885 = vadd.f32 0.0, %v3884
      %3886 = vmatmul.bf16.gmra.mxu0 %v3792
      %v3887 = vpop.f32.mrf.mxu0
      %v3888 = vadd.f32 0.0, %v3887
      %v3889 = vpop.f32.mrf.mxu0
      %v3890 = vadd.f32 0.0, %v3889
      %3891 = vmatmul.bf16.gmra.mxu0 %v3795
      %v3892 = vpop.f32.mrf.mxu0
      %v3893 = vadd.f32 0.0, %v3892
      %v3894 = vpop.f32.mrf.mxu0
      %v3895 = vadd.f32 0.0, %v3894
      %3896 = vmatmul.bf16.gmra.mxu0 %v3798
      %v3897 = vpop.f32.mrf.mxu0
      %v3898 = vadd.f32 0.0, %v3897
      %v3899 = vpop.f32.mrf.mxu0
      %v3900 = vadd.f32 0.0, %v3899
      %3901 = vmatmul.bf16.gmra.mxu0 %v3801
      %v3902 = vpop.f32.mrf.mxu0
      %v3903 = vadd.f32 0.0, %v3902
      %v3904 = vpop.f32.mrf.mxu0
      %v3905 = vadd.f32 0.0, %v3904
      %3906 = vmatmul.bf16.gmra.mxu0 %v3804
      %v3907 = vpop.f32.mrf.mxu0
      %v3908 = vadd.f32 0.0, %v3907
      %v3909 = vpop.f32.mrf.mxu0
      %v3910 = vadd.f32 0.0, %v3909
      %3911 = vdwg.mxu0
      %v3912 = vpack.c.bf16 %v3696, %v3694
      %v3913 = vpack.c.bf16 %v3701, %v3699
      %v3914 = vpack.c.bf16 %v3706, %v3704
      %v3915 = vpack.c.bf16 %v3711, %v3709
      %v3916 = vpack.c.bf16 %v3716, %v3714
      %v3917 = vpack.c.bf16 %v3721, %v3719
      %v3918 = vpack.c.bf16 %v3726, %v3724
      %v3919 = vpack.c.bf16 %v3731, %v3729
      %v3920 = vpack.c.bf16 %v3736, %v3734
      %v3921 = vpack.c.bf16 %v3741, %v3739
      %v3922 = vpack.c.bf16 %v3746, %v3744
      %v3923 = vpack.c.bf16 %v3751, %v3749
      %v3924 = vpack.c.bf16 %v3756, %v3754
      %v3925 = vpack.c.bf16 %v3761, %v3759
      %v3926 = vpack.c.bf16 %v3766, %v3764
      %v3927 = vpack.c.bf16 %v3771, %v3769
      %v3928 = vpack.c.bf16 %v3818, %v3816
      %v3929 = vpack.c.bf16 %v3823, %v3821
      %v3930 = vpack.c.bf16 %v3828, %v3826
      %v3931 = vpack.c.bf16 %v3833, %v3831
      %v3932 = vpack.c.bf16 %v3838, %v3836
      %v3933 = vpack.c.bf16 %v3843, %v3841
      %v3934 = vpack.c.bf16 %v3848, %v3846
      %v3935 = vpack.c.bf16 %v3853, %v3851
      %v3936 = vlaneseq
      %v3937 = vand.u32 %v3936, 127
      %vm3938 = vcmp.lt.s32.totalorder %v3937, 8
      %v3939 = vsel %vm3938, 0.0, -1e+30
      %v3941 = vsel %vm631, %v3912, 0
      %v3944 = vsel %vm631, %v3913, 0
      %v3947 = vsel %vm631, %v3914, 0
      %v3950 = vsel %vm631, %v3915, 0
      %v3953 = vsel %vm631, %v3916, 0
      %v3956 = vsel %vm631, %v3917, 0
      %v3959 = vsel %vm631, %v3918, 0
      %v3962 = vsel %vm631, %v3919, 0
      %v3965 = vsel %vm631, %v3920, 0
      %v3968 = vsel %vm631, %v3921, 0
      %v3971 = vsel %vm631, %v3922, 0
      %v3974 = vsel %vm631, %v3923, 0
      %v3977 = vsel %vm631, %v3924, 0
      %v3980 = vsel %vm631, %v3925, 0
      %v3983 = vsel %vm631, %v3926, 0
      %v3986 = vsel %vm631, %v3927, 0
      %v3989 = vsel %vm631, %v3928, 0
      %v3992 = vsel %vm631, %v3929, 0
      %v3995 = vsel %vm631, %v3930, 0
      %v3998 = vsel %vm631, %v3931, 0
      %v4001 = vsel %vm631, %v3932, 0
      %v4004 = vsel %vm631, %v3933, 0
      %v4007 = vsel %vm631, %v3934, 0
      %v4010 = vsel %vm631, %v3935, 0
      %4012 = vmatpush.bf16.xpose.msra.mxu0 %v4010
      %4013 = vmatpush.bf16.xpose.msra.mxu0 %v4007
      %4014 = vmatpush.bf16.xpose.msra.mxu0 %v4004
      %4015 = vmatpush.bf16.xpose.msra.mxu0 %v4001
      %4016 = vmatpush.bf16.xpose.msra.mxu0 %v3998
      %4017 = vmatpush.bf16.xpose.msra.mxu0 %v3995
      %4018 = vmatpush.bf16.xpose.msra.mxu0 %v3992
      %4019 = vmatpush.bf16.xpose.msra.mxu0 %v3989
      %4020 = vmatmul.bf16.gmra.mxu0 %v3941
      %v4021 = vpop.f32.mrf.mxu0
      %v4022 = vadd.f32 %v3939, %v4021
      %v4023 = vpop.f32.mrf.mxu0
      %v4024 = vadd.f32 %v3939, %v4023
      %4025 = vmatmul.bf16.gmra.mxu0 %v3944
      %v4026 = vpop.f32.mrf.mxu0
      %v4027 = vadd.f32 %v3939, %v4026
      %v4028 = vpop.f32.mrf.mxu0
      %v4029 = vadd.f32 %v3939, %v4028
      %4030 = vmatmul.bf16.gmra.mxu0 %v3947
      %v4031 = vpop.f32.mrf.mxu0
      %v4032 = vadd.f32 %v3939, %v4031
      %v4033 = vpop.f32.mrf.mxu0
      %v4034 = vadd.f32 %v3939, %v4033
      %4035 = vmatmul.bf16.gmra.mxu0 %v3950
      %v4036 = vpop.f32.mrf.mxu0
      %v4037 = vadd.f32 %v3939, %v4036
      %v4038 = vpop.f32.mrf.mxu0
      %v4039 = vadd.f32 %v3939, %v4038
      %4040 = vmatmul.bf16.gmra.mxu0 %v3953
      %v4041 = vpop.f32.mrf.mxu0
      %v4042 = vadd.f32 %v3939, %v4041
      %v4043 = vpop.f32.mrf.mxu0
      %v4044 = vadd.f32 %v3939, %v4043
      %4045 = vmatmul.bf16.gmra.mxu0 %v3956
      %v4046 = vpop.f32.mrf.mxu0
      %v4047 = vadd.f32 %v3939, %v4046
      %v4048 = vpop.f32.mrf.mxu0
      %v4049 = vadd.f32 %v3939, %v4048
      %4050 = vmatmul.bf16.gmra.mxu0 %v3959
      %v4051 = vpop.f32.mrf.mxu0
      %v4052 = vadd.f32 %v3939, %v4051
      %v4053 = vpop.f32.mrf.mxu0
      %v4054 = vadd.f32 %v3939, %v4053
      %4055 = vmatmul.bf16.gmra.mxu0 %v3962
      %v4056 = vpop.f32.mrf.mxu0
      %v4057 = vadd.f32 %v3939, %v4056
      %v4058 = vpop.f32.mrf.mxu0
      %v4059 = vadd.f32 %v3939, %v4058
      %4060 = vmatmul.bf16.gmra.mxu0 %v3965
      %v4061 = vpop.f32.mrf.mxu0
      %v4062 = vadd.f32 %v3939, %v4061
      %v4063 = vpop.f32.mrf.mxu0
      %v4064 = vadd.f32 %v3939, %v4063
      %4065 = vmatmul.bf16.gmra.mxu0 %v3968
      %v4066 = vpop.f32.mrf.mxu0
      %v4067 = vadd.f32 %v3939, %v4066
      %v4068 = vpop.f32.mrf.mxu0
      %v4069 = vadd.f32 %v3939, %v4068
      %4070 = vmatmul.bf16.gmra.mxu0 %v3971
      %v4071 = vpop.f32.mrf.mxu0
      %v4072 = vadd.f32 %v3939, %v4071
      %v4073 = vpop.f32.mrf.mxu0
      %v4074 = vadd.f32 %v3939, %v4073
      %4075 = vmatmul.bf16.gmra.mxu0 %v3974
      %v4076 = vpop.f32.mrf.mxu0
      %v4077 = vadd.f32 %v3939, %v4076
      %v4078 = vpop.f32.mrf.mxu0
      %v4079 = vadd.f32 %v3939, %v4078
      %4080 = vmatmul.bf16.gmra.mxu0 %v3977
      %v4081 = vpop.f32.mrf.mxu0
      %v4082 = vadd.f32 %v3939, %v4081
      %v4083 = vpop.f32.mrf.mxu0
      %v4084 = vadd.f32 %v3939, %v4083
      %4085 = vmatmul.bf16.gmra.mxu0 %v3980
      %v4086 = vpop.f32.mrf.mxu0
      %v4087 = vadd.f32 %v3939, %v4086
      %v4088 = vpop.f32.mrf.mxu0
      %v4089 = vadd.f32 %v3939, %v4088
      %4090 = vmatmul.bf16.gmra.mxu0 %v3983
      %v4091 = vpop.f32.mrf.mxu0
      %v4092 = vadd.f32 %v3939, %v4091
      %v4093 = vpop.f32.mrf.mxu0
      %v4094 = vadd.f32 %v3939, %v4093
      %4095 = vmatmul.bf16.gmra.mxu0 %v3986
      %v4096 = vpop.f32.mrf.mxu0
      %v4097 = vadd.f32 %v3939, %v4096
      %v4098 = vpop.f32.mrf.mxu0
      %v4099 = vadd.f32 %v3939, %v4098
      %4100 = vdwg.mxu0
      %4101 = vmax.xlane.f32.xlu0 %v4022
      %v4102 = vpop.xlane.xlu0 %4101
      %4103 = vmax.xlane.f32.xlu0 %v4024
      %v4104 = vpop.xlane.xlu0 %4103
      %4105 = vmax.xlane.f32.xlu0 %v4027
      %v4106 = vpop.xlane.xlu0 %4105
      %4107 = vmax.xlane.f32.xlu0 %v4029
      %v4108 = vpop.xlane.xlu0 %4107
      %4109 = vmax.xlane.f32.xlu0 %v4032
      %v4110 = vpop.xlane.xlu0 %4109
      %4111 = vmax.xlane.f32.xlu0 %v4034
      %v4112 = vpop.xlane.xlu0 %4111
      %4113 = vmax.xlane.f32.xlu0 %v4037
      %v4114 = vpop.xlane.xlu0 %4113
      %4115 = vmax.xlane.f32.xlu0 %v4039
      %v4116 = vpop.xlane.xlu0 %4115
      %4117 = vmax.xlane.f32.xlu0 %v4042
      %v4118 = vpop.xlane.xlu0 %4117
      %4119 = vmax.xlane.f32.xlu0 %v4044
      %v4120 = vpop.xlane.xlu0 %4119
      %4121 = vmax.xlane.f32.xlu0 %v4047
      %v4122 = vpop.xlane.xlu0 %4121
      %4123 = vmax.xlane.f32.xlu0 %v4049
      %v4124 = vpop.xlane.xlu0 %4123
      %4125 = vmax.xlane.f32.xlu0 %v4052
      %v4126 = vpop.xlane.xlu0 %4125
      %4127 = vmax.xlane.f32.xlu0 %v4054
      %v4128 = vpop.xlane.xlu0 %4127
      %4129 = vmax.xlane.f32.xlu0 %v4057
      %v4130 = vpop.xlane.xlu0 %4129
      %4131 = vmax.xlane.f32.xlu0 %v4059
      %v4132 = vpop.xlane.xlu0 %4131
      %4133 = vmax.xlane.f32.xlu0 %v4062
      %v4134 = vpop.xlane.xlu0 %4133
      %4135 = vmax.xlane.f32.xlu0 %v4064
      %v4136 = vpop.xlane.xlu0 %4135
      %4137 = vmax.xlane.f32.xlu0 %v4067
      %v4138 = vpop.xlane.xlu0 %4137
      %4139 = vmax.xlane.f32.xlu0 %v4069
      %v4140 = vpop.xlane.xlu0 %4139
      %4141 = vmax.xlane.f32.xlu0 %v4072
      %v4142 = vpop.xlane.xlu0 %4141
      %4143 = vmax.xlane.f32.xlu0 %v4074
      %v4144 = vpop.xlane.xlu0 %4143
      %4145 = vmax.xlane.f32.xlu0 %v4077
      %v4146 = vpop.xlane.xlu0 %4145
      %4147 = vmax.xlane.f32.xlu0 %v4079
      %v4148 = vpop.xlane.xlu0 %4147
      %4149 = vmax.xlane.f32.xlu0 %v4082
      %v4150 = vpop.xlane.xlu0 %4149
      %4151 = vmax.xlane.f32.xlu0 %v4084
      %v4152 = vpop.xlane.xlu0 %4151
      %4153 = vmax.xlane.f32.xlu0 %v4087
      %v4154 = vpop.xlane.xlu0 %4153
      %4155 = vmax.xlane.f32.xlu0 %v4089
      %v4156 = vpop.xlane.xlu0 %4155
      %4157 = vmax.xlane.f32.xlu0 %v4092
      %v4158 = vpop.xlane.xlu0 %4157
      %4159 = vmax.xlane.f32.xlu0 %v4094
      %v4160 = vpop.xlane.xlu0 %4159
      %4161 = vmax.xlane.f32.xlu0 %v4097
      %v4162 = vpop.xlane.xlu0 %4161
      %4163 = vmax.xlane.f32.xlu0 %v4099
      %v4164 = vpop.xlane.xlu0 %4163
      %v4165 = vsub.f32 %v4022, %v4102
      %v4166 = vsub.f32 %v4024, %v4104
      %v4167 = vsub.f32 %v4027, %v4106
      %v4168 = vsub.f32 %v4029, %v4108
      %v4169 = vsub.f32 %v4032, %v4110
      %v4170 = vsub.f32 %v4034, %v4112
      %v4171 = vsub.f32 %v4037, %v4114
      %v4172 = vsub.f32 %v4039, %v4116
      %v4173 = vsub.f32 %v4042, %v4118
      %v4174 = vsub.f32 %v4044, %v4120
      %v4175 = vsub.f32 %v4047, %v4122
      %v4176 = vsub.f32 %v4049, %v4124
      %v4177 = vsub.f32 %v4052, %v4126
      %v4178 = vsub.f32 %v4054, %v4128
      %v4179 = vsub.f32 %v4057, %v4130
      %v4180 = vsub.f32 %v4059, %v4132
      %v4181 = vsub.f32 %v4062, %v4134
      %v4182 = vsub.f32 %v4064, %v4136
      %v4183 = vsub.f32 %v4067, %v4138
      %v4184 = vsub.f32 %v4069, %v4140
      %v4185 = vsub.f32 %v4072, %v4142
      %v4186 = vsub.f32 %v4074, %v4144
      %v4187 = vsub.f32 %v4077, %v4146
      %v4188 = vsub.f32 %v4079, %v4148
      %v4189 = vsub.f32 %v4082, %v4150
      %v4190 = vsub.f32 %v4084, %v4152
      %v4191 = vsub.f32 %v4087, %v4154
      %v4192 = vsub.f32 %v4089, %v4156
      %v4193 = vsub.f32 %v4092, %v4158
      %v4194 = vsub.f32 %v4094, %v4160
      %v4195 = vsub.f32 %v4097, %v4162
      %v4196 = vsub.f32 %v4099, %v4164
      %v4197 = vmul.f32 %v4165, 1.442695
      %v4198 = vpow.pop %v4197
      %v4199 = vmul.f32 %v4166, 1.442695
      %v4200 = vpow.pop %v4199
      %v4201 = vmul.f32 %v4167, 1.442695
      %v4202 = vpow.pop %v4201
      %v4203 = vmul.f32 %v4168, 1.442695
      %v4204 = vpow.pop %v4203
      %v4205 = vmul.f32 %v4169, 1.442695
      %v4206 = vpow.pop %v4205
      %v4207 = vmul.f32 %v4170, 1.442695
      %v4208 = vpow.pop %v4207
      %v4209 = vmul.f32 %v4171, 1.442695
      %v4210 = vpow.pop %v4209
      %v4211 = vmul.f32 %v4172, 1.442695
      %v4212 = vpow.pop %v4211
      %v4213 = vmul.f32 %v4173, 1.442695
      %v4214 = vpow.pop %v4213
      %v4215 = vmul.f32 %v4174, 1.442695
      %v4216 = vpow.pop %v4215
      %v4217 = vmul.f32 %v4175, 1.442695
      %v4218 = vpow.pop %v4217
      %v4219 = vmul.f32 %v4176, 1.442695
      %v4220 = vpow.pop %v4219
      %v4221 = vmul.f32 %v4177, 1.442695
      %v4222 = vpow.pop %v4221
      %v4223 = vmul.f32 %v4178, 1.442695
      %v4224 = vpow.pop %v4223
      %v4225 = vmul.f32 %v4179, 1.442695
      %v4226 = vpow.pop %v4225
      %v4227 = vmul.f32 %v4180, 1.442695
      %v4228 = vpow.pop %v4227
      %v4229 = vmul.f32 %v4181, 1.442695
      %v4230 = vpow.pop %v4229
      %v4231 = vmul.f32 %v4182, 1.442695
      %v4232 = vpow.pop %v4231
      %v4233 = vmul.f32 %v4183, 1.442695
      %v4234 = vpow.pop %v4233
      %v4235 = vmul.f32 %v4184, 1.442695
      %v4236 = vpow.pop %v4235
      %v4237 = vmul.f32 %v4185, 1.442695
      %v4238 = vpow.pop %v4237
      %v4239 = vmul.f32 %v4186, 1.442695
      %v4240 = vpow.pop %v4239
      %v4241 = vmul.f32 %v4187, 1.442695
      %v4242 = vpow.pop %v4241
      %v4243 = vmul.f32 %v4188, 1.442695
      %v4244 = vpow.pop %v4243
      %v4245 = vmul.f32 %v4189, 1.442695
      %v4246 = vpow.pop %v4245
      %v4247 = vmul.f32 %v4190, 1.442695
      %v4248 = vpow.pop %v4247
      %v4249 = vmul.f32 %v4191, 1.442695
      %v4250 = vpow.pop %v4249
      %v4251 = vmul.f32 %v4192, 1.442695
      %v4252 = vpow.pop %v4251
      %v4253 = vmul.f32 %v4193, 1.442695
      %v4254 = vpow.pop %v4253
      %v4255 = vmul.f32 %v4194, 1.442695
      %v4256 = vpow.pop %v4255
      %v4257 = vmul.f32 %v4195, 1.442695
      %v4258 = vpow.pop %v4257
      %v4259 = vmul.f32 %v4196, 1.442695
      %v4260 = vpow.pop %v4259
      %4261 = vadd.xlane.f32.xlu0 %v4198
      %v4262 = vpop.xlane.xlu0 %4261
      %4263 = vadd.xlane.f32.xlu0 %v4200
      %v4264 = vpop.xlane.xlu0 %4263
      %4265 = vadd.xlane.f32.xlu0 %v4202
      %v4266 = vpop.xlane.xlu0 %4265
      %4267 = vadd.xlane.f32.xlu0 %v4204
      %v4268 = vpop.xlane.xlu0 %4267
      %4269 = vadd.xlane.f32.xlu0 %v4206
      %v4270 = vpop.xlane.xlu0 %4269
      %4271 = vadd.xlane.f32.xlu0 %v4208
      %v4272 = vpop.xlane.xlu0 %4271
      %4273 = vadd.xlane.f32.xlu0 %v4210
      %v4274 = vpop.xlane.xlu0 %4273
      %4275 = vadd.xlane.f32.xlu0 %v4212
      %v4276 = vpop.xlane.xlu0 %4275
      %4277 = vadd.xlane.f32.xlu0 %v4214
      %v4278 = vpop.xlane.xlu0 %4277
      %4279 = vadd.xlane.f32.xlu0 %v4216
      %v4280 = vpop.xlane.xlu0 %4279
      %4281 = vadd.xlane.f32.xlu0 %v4218
      %v4282 = vpop.xlane.xlu0 %4281
      %4283 = vadd.xlane.f32.xlu0 %v4220
      %v4284 = vpop.xlane.xlu0 %4283
      %4285 = vadd.xlane.f32.xlu0 %v4222
      %v4286 = vpop.xlane.xlu0 %4285
      %4287 = vadd.xlane.f32.xlu0 %v4224
      %v4288 = vpop.xlane.xlu0 %4287
      %4289 = vadd.xlane.f32.xlu0 %v4226
      %v4290 = vpop.xlane.xlu0 %4289
      %4291 = vadd.xlane.f32.xlu0 %v4228
      %v4292 = vpop.xlane.xlu0 %4291
      %4293 = vadd.xlane.f32.xlu0 %v4230
      %v4294 = vpop.xlane.xlu0 %4293
      %4295 = vadd.xlane.f32.xlu0 %v4232
      %v4296 = vpop.xlane.xlu0 %4295
      %4297 = vadd.xlane.f32.xlu0 %v4234
      %v4298 = vpop.xlane.xlu0 %4297
      %4299 = vadd.xlane.f32.xlu0 %v4236
      %v4300 = vpop.xlane.xlu0 %4299
      %4301 = vadd.xlane.f32.xlu0 %v4238
      %v4302 = vpop.xlane.xlu0 %4301
      %4303 = vadd.xlane.f32.xlu0 %v4240
      %v4304 = vpop.xlane.xlu0 %4303
      %4305 = vadd.xlane.f32.xlu0 %v4242
      %v4306 = vpop.xlane.xlu0 %4305
      %4307 = vadd.xlane.f32.xlu0 %v4244
      %v4308 = vpop.xlane.xlu0 %4307
      %4309 = vadd.xlane.f32.xlu0 %v4246
      %v4310 = vpop.xlane.xlu0 %4309
      %4311 = vadd.xlane.f32.xlu0 %v4248
      %v4312 = vpop.xlane.xlu0 %4311
      %4313 = vadd.xlane.f32.xlu0 %v4250
      %v4314 = vpop.xlane.xlu0 %4313
      %4315 = vadd.xlane.f32.xlu0 %v4252
      %v4316 = vpop.xlane.xlu0 %4315
      %4317 = vadd.xlane.f32.xlu0 %v4254
      %v4318 = vpop.xlane.xlu0 %4317
      %4319 = vadd.xlane.f32.xlu0 %v4256
      %v4320 = vpop.xlane.xlu0 %4319
      %4321 = vadd.xlane.f32.xlu0 %v4258
      %v4322 = vpop.xlane.xlu0 %4321
      %4323 = vadd.xlane.f32.xlu0 %v4260
      %v4324 = vpop.xlane.xlu0 %4323
      %v4325 = vrcp.pop %v4262
      %v4326 = vrcp.pop %v4264
      %v4327 = vrcp.pop %v4266
      %v4328 = vrcp.pop %v4268
      %v4329 = vrcp.pop %v4270
      %v4330 = vrcp.pop %v4272
      %v4331 = vrcp.pop %v4274
      %v4332 = vrcp.pop %v4276
      %v4333 = vrcp.pop %v4278
      %v4334 = vrcp.pop %v4280
      %v4335 = vrcp.pop %v4282
      %v4336 = vrcp.pop %v4284
      %v4337 = vrcp.pop %v4286
      %v4338 = vrcp.pop %v4288
      %v4339 = vrcp.pop %v4290
      %v4340 = vrcp.pop %v4292
      %v4341 = vrcp.pop %v4294
      %v4342 = vrcp.pop %v4296
      %v4343 = vrcp.pop %v4298
      %v4344 = vrcp.pop %v4300
      %v4345 = vrcp.pop %v4302
      %v4346 = vrcp.pop %v4304
      %v4347 = vrcp.pop %v4306
      %v4348 = vrcp.pop %v4308
      %v4349 = vrcp.pop %v4310
      %v4350 = vrcp.pop %v4312
      %v4351 = vrcp.pop %v4314
      %v4352 = vrcp.pop %v4316
      %v4353 = vrcp.pop %v4318
      %v4354 = vrcp.pop %v4320
      %v4355 = vrcp.pop %v4322
      %v4356 = vrcp.pop %v4324
      %v4357 = vmul.f32 %v4198, %v4325
      %v4358 = vmul.f32 %v4200, %v4326
      %v4359 = vmul.f32 %v4202, %v4327
      %v4360 = vmul.f32 %v4204, %v4328
      %v4361 = vmul.f32 %v4206, %v4329
      %v4362 = vmul.f32 %v4208, %v4330
      %v4363 = vmul.f32 %v4210, %v4331
      %v4364 = vmul.f32 %v4212, %v4332
      %v4365 = vmul.f32 %v4214, %v4333
      %v4366 = vmul.f32 %v4216, %v4334
      %v4367 = vmul.f32 %v4218, %v4335
      %v4368 = vmul.f32 %v4220, %v4336
      %v4369 = vmul.f32 %v4222, %v4337
      %v4370 = vmul.f32 %v4224, %v4338
      %v4371 = vmul.f32 %v4226, %v4339
      %v4372 = vmul.f32 %v4228, %v4340
      %v4373 = vmul.f32 %v4230, %v4341
      %v4374 = vmul.f32 %v4232, %v4342
      %v4375 = vmul.f32 %v4234, %v4343
      %v4376 = vmul.f32 %v4236, %v4344
      %v4377 = vmul.f32 %v4238, %v4345
      %v4378 = vmul.f32 %v4240, %v4346
      %v4379 = vmul.f32 %v4242, %v4347
      %v4380 = vmul.f32 %v4244, %v4348
      %v4381 = vmul.f32 %v4246, %v4349
      %v4382 = vmul.f32 %v4248, %v4350
      %v4383 = vmul.f32 %v4250, %v4351
      %v4384 = vmul.f32 %v4252, %v4352
      %v4385 = vmul.f32 %v4254, %v4353
      %v4386 = vmul.f32 %v4256, %v4354
      %v4387 = vmul.f32 %v4258, %v4355
      %v4388 = vmul.f32 %v4260, %v4356
      %v4389 = vpack.c.bf16 %v4358, %v4357
      %v4390 = vpack.c.bf16 %v4360, %v4359
      %v4391 = vpack.c.bf16 %v4362, %v4361
      %v4392 = vpack.c.bf16 %v4364, %v4363
      %v4393 = vpack.c.bf16 %v4366, %v4365
      %v4394 = vpack.c.bf16 %v4368, %v4367
      %v4395 = vpack.c.bf16 %v4370, %v4369
      %v4396 = vpack.c.bf16 %v4372, %v4371
      %v4397 = vpack.c.bf16 %v4374, %v4373
      %v4398 = vpack.c.bf16 %v4376, %v4375
      %v4399 = vpack.c.bf16 %v4378, %v4377
      %v4400 = vpack.c.bf16 %v4380, %v4379
      %v4401 = vpack.c.bf16 %v4382, %v4381
      %v4402 = vpack.c.bf16 %v4384, %v4383
      %v4403 = vpack.c.bf16 %v4386, %v4385
      %v4404 = vpack.c.bf16 %v4388, %v4387
      %v4405 = vpack.c.bf16 %v3875, %v3873
      %v4406 = vpack.c.bf16 %v3880, %v3878
      %v4407 = vpack.c.bf16 %v3885, %v3883
      %v4408 = vpack.c.bf16 %v3890, %v3888
      %v4409 = vpack.c.bf16 %v3895, %v3893
      %v4410 = vpack.c.bf16 %v3900, %v3898
      %v4411 = vpack.c.bf16 %v3905, %v3903
      %v4412 = vpack.c.bf16 %v3910, %v3908
      %4413 = vmatpush.bf16.msra.mxu0 %v4412
      %4414 = vmatpush.bf16.msra.mxu0 %v4411
      %4415 = vmatpush.bf16.msra.mxu0 %v4410
      %4416 = vmatpush.bf16.msra.mxu0 %v4409
      %4417 = vmatpush.bf16.msra.mxu0 %v4408
      %4418 = vmatpush.bf16.msra.mxu0 %v4407
      %4419 = vmatpush.bf16.msra.mxu0 %v4406
      %4420 = vmatpush.bf16.msra.mxu0 %v4405
      %4421 = vmatmul.bf16.gmra.mxu0 %v4389
      %v4422 = vpop.f32.mrf.mxu0
      %v4423 = vadd.f32 %v2725, %v4422
      %v4424 = vpop.f32.mrf.mxu0
      %v4425 = vadd.f32 %v2727, %v4424
      %4426 = vmatmul.bf16.gmra.mxu0 %v4390
      %v4427 = vpop.f32.mrf.mxu0
      %v4428 = vadd.f32 %v2730, %v4427
      %v4429 = vpop.f32.mrf.mxu0
      %v4430 = vadd.f32 %v2732, %v4429
      %4431 = vmatmul.bf16.gmra.mxu0 %v4391
      %v4432 = vpop.f32.mrf.mxu0
      %v4433 = vadd.f32 %v2735, %v4432
      %v4434 = vpop.f32.mrf.mxu0
      %v4435 = vadd.f32 %v2737, %v4434
      %4436 = vmatmul.bf16.gmra.mxu0 %v4392
      %v4437 = vpop.f32.mrf.mxu0
      %v4438 = vadd.f32 %v2740, %v4437
      %v4439 = vpop.f32.mrf.mxu0
      %v4440 = vadd.f32 %v2742, %v4439
      %4441 = vmatmul.bf16.gmra.mxu0 %v4393
      %v4442 = vpop.f32.mrf.mxu0
      %v4443 = vadd.f32 %v2745, %v4442
      %v4444 = vpop.f32.mrf.mxu0
      %v4445 = vadd.f32 %v2747, %v4444
      %4446 = vmatmul.bf16.gmra.mxu0 %v4394
      %v4447 = vpop.f32.mrf.mxu0
      %v4448 = vadd.f32 %v2750, %v4447
      %v4449 = vpop.f32.mrf.mxu0
      %v4450 = vadd.f32 %v2752, %v4449
      %4451 = vmatmul.bf16.gmra.mxu0 %v4395
      %v4452 = vpop.f32.mrf.mxu0
      %v4453 = vadd.f32 %v2755, %v4452
      %v4454 = vpop.f32.mrf.mxu0
      %v4455 = vadd.f32 %v2757, %v4454
      %4456 = vmatmul.bf16.gmra.mxu0 %v4396
      %v4457 = vpop.f32.mrf.mxu0
      %v4458 = vadd.f32 %v2760, %v4457
      %v4459 = vpop.f32.mrf.mxu0
      %v4460 = vadd.f32 %v2762, %v4459
      %4461 = vmatmul.bf16.gmra.mxu0 %v4397
      %v4462 = vpop.f32.mrf.mxu0
      %v4463 = vadd.f32 %v2765, %v4462
      %v4464 = vpop.f32.mrf.mxu0
      %v4465 = vadd.f32 %v2767, %v4464
      %4466 = vmatmul.bf16.gmra.mxu0 %v4398
      %v4467 = vpop.f32.mrf.mxu0
      %v4468 = vadd.f32 %v2770, %v4467
      %v4469 = vpop.f32.mrf.mxu0
      %v4470 = vadd.f32 %v2772, %v4469
      %4471 = vmatmul.bf16.gmra.mxu0 %v4399
      %v4472 = vpop.f32.mrf.mxu0
      %v4473 = vadd.f32 %v2775, %v4472
      %v4474 = vpop.f32.mrf.mxu0
      %v4475 = vadd.f32 %v2777, %v4474
      %4476 = vmatmul.bf16.gmra.mxu0 %v4400
      %v4477 = vpop.f32.mrf.mxu0
      %v4478 = vadd.f32 %v2780, %v4477
      %v4479 = vpop.f32.mrf.mxu0
      %v4480 = vadd.f32 %v2782, %v4479
      %4481 = vmatmul.bf16.gmra.mxu0 %v4401
      %v4482 = vpop.f32.mrf.mxu0
      %v4483 = vadd.f32 %v2785, %v4482
      %v4484 = vpop.f32.mrf.mxu0
      %v4485 = vadd.f32 %v2787, %v4484
      %4486 = vmatmul.bf16.gmra.mxu0 %v4402
      %v4487 = vpop.f32.mrf.mxu0
      %v4488 = vadd.f32 %v2790, %v4487
      %v4489 = vpop.f32.mrf.mxu0
      %v4490 = vadd.f32 %v2792, %v4489
      %4491 = vmatmul.bf16.gmra.mxu0 %v4403
      %v4492 = vpop.f32.mrf.mxu0
      %v4493 = vadd.f32 %v2795, %v4492
      %v4494 = vpop.f32.mrf.mxu0
      %v4495 = vadd.f32 %v2797, %v4494
      %4496 = vmatmul.bf16.gmra.mxu0 %v4404
      %v4497 = vpop.f32.mrf.mxu0
      %v4498 = vadd.f32 %v2800, %v4497
      %v4499 = vpop.f32.mrf.mxu0
      %v4500 = vadd.f32 %v2802, %v4499
      %4501 = vdwg.mxu0
      %v4502 = vld [vmem:[%s16] sm:$0x1]
      %v4503 = vld [vmem:[%s17] sm:$0x1]
      %v4504 = vsel %vm631, %v4423, 0.0
      %4505 = vadd.xlane.f32.xlu0 %v4504
      %v4506 = vpop.xlane.xlu0 %4505
      %v4507 = vsel %vm631, %v4425, 0.0
      %4508 = vadd.xlane.f32.xlu0 %v4507
      %v4509 = vpop.xlane.xlu0 %4508
      %v4510 = vsel %vm631, %v4428, 0.0
      %4511 = vadd.xlane.f32.xlu0 %v4510
      %v4512 = vpop.xlane.xlu0 %4511
      %v4513 = vsel %vm631, %v4430, 0.0
      %4514 = vadd.xlane.f32.xlu0 %v4513
      %v4515 = vpop.xlane.xlu0 %4514
      %v4516 = vsel %vm631, %v4433, 0.0
      %4517 = vadd.xlane.f32.xlu0 %v4516
      %v4518 = vpop.xlane.xlu0 %4517
      %v4519 = vsel %vm631, %v4435, 0.0
      %4520 = vadd.xlane.f32.xlu0 %v4519
      %v4521 = vpop.xlane.xlu0 %4520
      %v4522 = vsel %vm631, %v4438, 0.0
      %4523 = vadd.xlane.f32.xlu0 %v4522
      %v4524 = vpop.xlane.xlu0 %4523
      %v4525 = vsel %vm631, %v4440, 0.0
      %4526 = vadd.xlane.f32.xlu0 %v4525
      %v4527 = vpop.xlane.xlu0 %4526
      %v4528 = vsel %vm631, %v4443, 0.0
      %4529 = vadd.xlane.f32.xlu0 %v4528
      %v4530 = vpop.xlane.xlu0 %4529
      %v4531 = vsel %vm631, %v4445, 0.0
      %4532 = vadd.xlane.f32.xlu0 %v4531
      %v4533 = vpop.xlane.xlu0 %4532
      %v4534 = vsel %vm631, %v4448, 0.0
      %4535 = vadd.xlane.f32.xlu0 %v4534
      %v4536 = vpop.xlane.xlu0 %4535
      %v4537 = vsel %vm631, %v4450, 0.0
      %4538 = vadd.xlane.f32.xlu0 %v4537
      %v4539 = vpop.xlane.xlu0 %4538
      %v4540 = vsel %vm631, %v4453, 0.0
      %4541 = vadd.xlane.f32.xlu0 %v4540
      %v4542 = vpop.xlane.xlu0 %4541
      %v4543 = vsel %vm631, %v4455, 0.0
      %4544 = vadd.xlane.f32.xlu0 %v4543
      %v4545 = vpop.xlane.xlu0 %4544
      %v4546 = vsel %vm631, %v4458, 0.0
      %4547 = vadd.xlane.f32.xlu0 %v4546
      %v4548 = vpop.xlane.xlu0 %4547
      %v4549 = vsel %vm631, %v4460, 0.0
      %4550 = vadd.xlane.f32.xlu0 %v4549
      %v4551 = vpop.xlane.xlu0 %4550
      %v4552 = vsel %vm631, %v4463, 0.0
      %4553 = vadd.xlane.f32.xlu0 %v4552
      %v4554 = vpop.xlane.xlu0 %4553
      %v4555 = vsel %vm631, %v4465, 0.0
      %4556 = vadd.xlane.f32.xlu0 %v4555
      %v4557 = vpop.xlane.xlu0 %4556
      %v4558 = vsel %vm631, %v4468, 0.0
      %4559 = vadd.xlane.f32.xlu0 %v4558
      %v4560 = vpop.xlane.xlu0 %4559
      %v4561 = vsel %vm631, %v4470, 0.0
      %4562 = vadd.xlane.f32.xlu0 %v4561
      %v4563 = vpop.xlane.xlu0 %4562
      %v4564 = vsel %vm631, %v4473, 0.0
      %4565 = vadd.xlane.f32.xlu0 %v4564
      %v4566 = vpop.xlane.xlu0 %4565
      %v4567 = vsel %vm631, %v4475, 0.0
      %4568 = vadd.xlane.f32.xlu0 %v4567
      %v4569 = vpop.xlane.xlu0 %4568
      %v4570 = vsel %vm631, %v4478, 0.0
      %4571 = vadd.xlane.f32.xlu0 %v4570
      %v4572 = vpop.xlane.xlu0 %4571
      %v4573 = vsel %vm631, %v4480, 0.0
      %4574 = vadd.xlane.f32.xlu0 %v4573
      %v4575 = vpop.xlane.xlu0 %4574
      %v4576 = vsel %vm631, %v4483, 0.0
      %4577 = vadd.xlane.f32.xlu0 %v4576
      %v4578 = vpop.xlane.xlu0 %4577
      %v4579 = vsel %vm631, %v4485, 0.0
      %4580 = vadd.xlane.f32.xlu0 %v4579
      %v4581 = vpop.xlane.xlu0 %4580
      %v4582 = vsel %vm631, %v4488, 0.0
      %4583 = vadd.xlane.f32.xlu0 %v4582
      %v4584 = vpop.xlane.xlu0 %4583
      %v4585 = vsel %vm631, %v4490, 0.0
      %4586 = vadd.xlane.f32.xlu0 %v4585
      %v4587 = vpop.xlane.xlu0 %4586
      %v4588 = vsel %vm631, %v4493, 0.0
      %4589 = vadd.xlane.f32.xlu0 %v4588
      %v4590 = vpop.xlane.xlu0 %4589
      %v4591 = vsel %vm631, %v4495, 0.0
      %4592 = vadd.xlane.f32.xlu0 %v4591
      %v4593 = vpop.xlane.xlu0 %4592
      %v4594 = vsel %vm631, %v4498, 0.0
      %4595 = vadd.xlane.f32.xlu0 %v4594
      %v4596 = vpop.xlane.xlu0 %4595
      %v4597 = vsel %vm631, %v4500, 0.0
      %4598 = vadd.xlane.f32.xlu0 %v4597
      %v4599 = vpop.xlane.xlu0 %4598
      %v4600 = vmul.f32 %v4506, %v734
      %v4601 = vmul.f32 %v4509, %v734
      %v4602 = vmul.f32 %v4512, %v734
      %v4603 = vmul.f32 %v4515, %v734
      %v4604 = vmul.f32 %v4518, %v734
      %v4605 = vmul.f32 %v4521, %v734
      %v4606 = vmul.f32 %v4524, %v734
      %v4607 = vmul.f32 %v4527, %v734
      %v4608 = vmul.f32 %v4530, %v734
      %v4609 = vmul.f32 %v4533, %v734
      %v4610 = vmul.f32 %v4536, %v734
      %v4611 = vmul.f32 %v4539, %v734
      %v4612 = vmul.f32 %v4542, %v734
      %v4613 = vmul.f32 %v4545, %v734
      %v4614 = vmul.f32 %v4548, %v734
      %v4615 = vmul.f32 %v4551, %v734
      %v4616 = vmul.f32 %v4554, %v734
      %v4617 = vmul.f32 %v4557, %v734
      %v4618 = vmul.f32 %v4560, %v734
      %v4619 = vmul.f32 %v4563, %v734
      %v4620 = vmul.f32 %v4566, %v734
      %v4621 = vmul.f32 %v4569, %v734
      %v4622 = vmul.f32 %v4572, %v734
      %v4623 = vmul.f32 %v4575, %v734
      %v4624 = vmul.f32 %v4578, %v734
      %v4625 = vmul.f32 %v4581, %v734
      %v4626 = vmul.f32 %v4584, %v734
      %v4627 = vmul.f32 %v4587, %v734
      %v4628 = vmul.f32 %v4590, %v734
      %v4629 = vmul.f32 %v4593, %v734
      %v4630 = vmul.f32 %v4596, %v734
      %v4631 = vmul.f32 %v4599, %v734
      %v4632 = vsub.f32 %v4423, %v4600
      %v4633 = vsub.f32 %v4425, %v4601
      %v4634 = vsub.f32 %v4428, %v4602
      %v4635 = vsub.f32 %v4430, %v4603
      %v4636 = vsub.f32 %v4433, %v4604
      %v4637 = vsub.f32 %v4435, %v4605
      %v4638 = vsub.f32 %v4438, %v4606
      %v4639 = vsub.f32 %v4440, %v4607
      %v4640 = vsub.f32 %v4443, %v4608
      %v4641 = vsub.f32 %v4445, %v4609
      %v4642 = vsub.f32 %v4448, %v4610
      %v4643 = vsub.f32 %v4450, %v4611
      %v4644 = vsub.f32 %v4453, %v4612
      %v4645 = vsub.f32 %v4455, %v4613
      %v4646 = vsub.f32 %v4458, %v4614
      %v4647 = vsub.f32 %v4460, %v4615
      %v4648 = vsub.f32 %v4463, %v4616
      %v4649 = vsub.f32 %v4465, %v4617
      %v4650 = vsub.f32 %v4468, %v4618
      %v4651 = vsub.f32 %v4470, %v4619
      %v4652 = vsub.f32 %v4473, %v4620
      %v4653 = vsub.f32 %v4475, %v4621
      %v4654 = vsub.f32 %v4478, %v4622
      %v4655 = vsub.f32 %v4480, %v4623
      %v4656 = vsub.f32 %v4483, %v4624
      %v4657 = vsub.f32 %v4485, %v4625
      %v4658 = vsub.f32 %v4488, %v4626
      %v4659 = vsub.f32 %v4490, %v4627
      %v4660 = vsub.f32 %v4493, %v4628
      %v4661 = vsub.f32 %v4495, %v4629
      %v4662 = vsub.f32 %v4498, %v4630
      %v4663 = vsub.f32 %v4500, %v4631
      %v4664 = vmul.f32 %v4632, %v4632
      %v4665 = vmul.f32 %v4633, %v4633
      %v4666 = vmul.f32 %v4634, %v4634
      %v4667 = vmul.f32 %v4635, %v4635
      %v4668 = vmul.f32 %v4636, %v4636
      %v4669 = vmul.f32 %v4637, %v4637
      %v4670 = vmul.f32 %v4638, %v4638
      %v4671 = vmul.f32 %v4639, %v4639
      %v4672 = vmul.f32 %v4640, %v4640
      %v4673 = vmul.f32 %v4641, %v4641
      %v4674 = vmul.f32 %v4642, %v4642
      %v4675 = vmul.f32 %v4643, %v4643
      %v4676 = vmul.f32 %v4644, %v4644
      %v4677 = vmul.f32 %v4645, %v4645
      %v4678 = vmul.f32 %v4646, %v4646
      %v4679 = vmul.f32 %v4647, %v4647
      %v4680 = vmul.f32 %v4648, %v4648
      %v4681 = vmul.f32 %v4649, %v4649
      %v4682 = vmul.f32 %v4650, %v4650
      %v4683 = vmul.f32 %v4651, %v4651
      %v4684 = vmul.f32 %v4652, %v4652
      %v4685 = vmul.f32 %v4653, %v4653
      %v4686 = vmul.f32 %v4654, %v4654
      %v4687 = vmul.f32 %v4655, %v4655
      %v4688 = vmul.f32 %v4656, %v4656
      %v4689 = vmul.f32 %v4657, %v4657
      %v4690 = vmul.f32 %v4658, %v4658
      %v4691 = vmul.f32 %v4659, %v4659
      %v4692 = vmul.f32 %v4660, %v4660
      %v4693 = vmul.f32 %v4661, %v4661
      %v4694 = vmul.f32 %v4662, %v4662
      %v4695 = vmul.f32 %v4663, %v4663
      %v4696 = vsel %vm631, %v4664, 0.0
      %4697 = vadd.xlane.f32.xlu0 %v4696
      %v4698 = vpop.xlane.xlu0 %4697
      %v4699 = vsel %vm631, %v4665, 0.0
      %4700 = vadd.xlane.f32.xlu0 %v4699
      %v4701 = vpop.xlane.xlu0 %4700
      %v4702 = vsel %vm631, %v4666, 0.0
      %4703 = vadd.xlane.f32.xlu0 %v4702
      %v4704 = vpop.xlane.xlu0 %4703
      %v4705 = vsel %vm631, %v4667, 0.0
      %4706 = vadd.xlane.f32.xlu0 %v4705
      %v4707 = vpop.xlane.xlu0 %4706
      %v4708 = vsel %vm631, %v4668, 0.0
      %4709 = vadd.xlane.f32.xlu0 %v4708
      %v4710 = vpop.xlane.xlu0 %4709
      %v4711 = vsel %vm631, %v4669, 0.0
      %4712 = vadd.xlane.f32.xlu0 %v4711
      %v4713 = vpop.xlane.xlu0 %4712
      %v4714 = vsel %vm631, %v4670, 0.0
      %4715 = vadd.xlane.f32.xlu0 %v4714
      %v4716 = vpop.xlane.xlu0 %4715
      %v4717 = vsel %vm631, %v4671, 0.0
      %4718 = vadd.xlane.f32.xlu0 %v4717
      %v4719 = vpop.xlane.xlu0 %4718
      %v4720 = vsel %vm631, %v4672, 0.0
      %4721 = vadd.xlane.f32.xlu0 %v4720
      %v4722 = vpop.xlane.xlu0 %4721
      %v4723 = vsel %vm631, %v4673, 0.0
      %4724 = vadd.xlane.f32.xlu0 %v4723
      %v4725 = vpop.xlane.xlu0 %4724
      %v4726 = vsel %vm631, %v4674, 0.0
      %4727 = vadd.xlane.f32.xlu0 %v4726
      %v4728 = vpop.xlane.xlu0 %4727
      %v4729 = vsel %vm631, %v4675, 0.0
      %4730 = vadd.xlane.f32.xlu0 %v4729
      %v4731 = vpop.xlane.xlu0 %4730
      %v4732 = vsel %vm631, %v4676, 0.0
      %4733 = vadd.xlane.f32.xlu0 %v4732
      %v4734 = vpop.xlane.xlu0 %4733
      %v4735 = vsel %vm631, %v4677, 0.0
      %4736 = vadd.xlane.f32.xlu0 %v4735
      %v4737 = vpop.xlane.xlu0 %4736
      %v4738 = vsel %vm631, %v4678, 0.0
      %4739 = vadd.xlane.f32.xlu0 %v4738
      %v4740 = vpop.xlane.xlu0 %4739
      %v4741 = vsel %vm631, %v4679, 0.0
      %4742 = vadd.xlane.f32.xlu0 %v4741
      %v4743 = vpop.xlane.xlu0 %4742
      %v4744 = vsel %vm631, %v4680, 0.0
      %4745 = vadd.xlane.f32.xlu0 %v4744
      %v4746 = vpop.xlane.xlu0 %4745
      %v4747 = vsel %vm631, %v4681, 0.0
      %4748 = vadd.xlane.f32.xlu0 %v4747
      %v4749 = vpop.xlane.xlu0 %4748
      %v4750 = vsel %vm631, %v4682, 0.0
      %4751 = vadd.xlane.f32.xlu0 %v4750
      %v4752 = vpop.xlane.xlu0 %4751
      %v4753 = vsel %vm631, %v4683, 0.0
      %4754 = vadd.xlane.f32.xlu0 %v4753
      %v4755 = vpop.xlane.xlu0 %4754
      %v4756 = vsel %vm631, %v4684, 0.0
      %4757 = vadd.xlane.f32.xlu0 %v4756
      %v4758 = vpop.xlane.xlu0 %4757
      %v4759 = vsel %vm631, %v4685, 0.0
      %4760 = vadd.xlane.f32.xlu0 %v4759
      %v4761 = vpop.xlane.xlu0 %4760
      %v4762 = vsel %vm631, %v4686, 0.0
      %4763 = vadd.xlane.f32.xlu0 %v4762
      %v4764 = vpop.xlane.xlu0 %4763
      %v4765 = vsel %vm631, %v4687, 0.0
      %4766 = vadd.xlane.f32.xlu0 %v4765
      %v4767 = vpop.xlane.xlu0 %4766
      %v4768 = vsel %vm631, %v4688, 0.0
      %4769 = vadd.xlane.f32.xlu0 %v4768
      %v4770 = vpop.xlane.xlu0 %4769
      %v4771 = vsel %vm631, %v4689, 0.0
      %4772 = vadd.xlane.f32.xlu0 %v4771
      %v4773 = vpop.xlane.xlu0 %4772
      %v4774 = vsel %vm631, %v4690, 0.0
      %4775 = vadd.xlane.f32.xlu0 %v4774
      %v4776 = vpop.xlane.xlu0 %4775
      %v4777 = vsel %vm631, %v4691, 0.0
      %4778 = vadd.xlane.f32.xlu0 %v4777
      %v4779 = vpop.xlane.xlu0 %4778
      %v4780 = vsel %vm631, %v4692, 0.0
      %4781 = vadd.xlane.f32.xlu0 %v4780
      %v4782 = vpop.xlane.xlu0 %4781
      %v4783 = vsel %vm631, %v4693, 0.0
      %4784 = vadd.xlane.f32.xlu0 %v4783
      %v4785 = vpop.xlane.xlu0 %4784
      %v4786 = vsel %vm631, %v4694, 0.0
      %4787 = vadd.xlane.f32.xlu0 %v4786
      %v4788 = vpop.xlane.xlu0 %4787
      %v4789 = vsel %vm631, %v4695, 0.0
      %4790 = vadd.xlane.f32.xlu0 %v4789
      %v4791 = vpop.xlane.xlu0 %4790
      %v4792 = vmul.f32 %v4698, %v734
      %v4793 = vmul.f32 %v4701, %v734
      %v4794 = vmul.f32 %v4704, %v734
      %v4795 = vmul.f32 %v4707, %v734
      %v4796 = vmul.f32 %v4710, %v734
      %v4797 = vmul.f32 %v4713, %v734
      %v4798 = vmul.f32 %v4716, %v734
      %v4799 = vmul.f32 %v4719, %v734
      %v4800 = vmul.f32 %v4722, %v734
      %v4801 = vmul.f32 %v4725, %v734
      %v4802 = vmul.f32 %v4728, %v734
      %v4803 = vmul.f32 %v4731, %v734
      %v4804 = vmul.f32 %v4734, %v734
      %v4805 = vmul.f32 %v4737, %v734
      %v4806 = vmul.f32 %v4740, %v734
      %v4807 = vmul.f32 %v4743, %v734
      %v4808 = vmul.f32 %v4746, %v734
      %v4809 = vmul.f32 %v4749, %v734
      %v4810 = vmul.f32 %v4752, %v734
      %v4811 = vmul.f32 %v4755, %v734
      %v4812 = vmul.f32 %v4758, %v734
      %v4813 = vmul.f32 %v4761, %v734
      %v4814 = vmul.f32 %v4764, %v734
      %v4815 = vmul.f32 %v4767, %v734
      %v4816 = vmul.f32 %v4770, %v734
      %v4817 = vmul.f32 %v4773, %v734
      %v4818 = vmul.f32 %v4776, %v734
      %v4819 = vmul.f32 %v4779, %v734
      %v4820 = vmul.f32 %v4782, %v734
      %v4821 = vmul.f32 %v4785, %v734
      %v4822 = vmul.f32 %v4788, %v734
      %v4823 = vmul.f32 %v4791, %v734
      %v4824 = vadd.f32 %v4792, 1e-05
      %v4825 = vadd.f32 %v4793, 1e-05
      %v4826 = vadd.f32 %v4794, 1e-05
      %v4827 = vadd.f32 %v4795, 1e-05
      %v4828 = vadd.f32 %v4796, 1e-05
      %v4829 = vadd.f32 %v4797, 1e-05
      %v4830 = vadd.f32 %v4798, 1e-05
      %v4831 = vadd.f32 %v4799, 1e-05
      %v4832 = vadd.f32 %v4800, 1e-05
      %v4833 = vadd.f32 %v4801, 1e-05
      %v4834 = vadd.f32 %v4802, 1e-05
      %v4835 = vadd.f32 %v4803, 1e-05
      %v4836 = vadd.f32 %v4804, 1e-05
      %v4837 = vadd.f32 %v4805, 1e-05
      %v4838 = vadd.f32 %v4806, 1e-05
      %v4839 = vadd.f32 %v4807, 1e-05
      %v4840 = vadd.f32 %v4808, 1e-05
      %v4841 = vadd.f32 %v4809, 1e-05
      %v4842 = vadd.f32 %v4810, 1e-05
      %v4843 = vadd.f32 %v4811, 1e-05
      %v4844 = vadd.f32 %v4812, 1e-05
      %v4845 = vadd.f32 %v4813, 1e-05
      %v4846 = vadd.f32 %v4814, 1e-05
      %v4847 = vadd.f32 %v4815, 1e-05
      %v4848 = vadd.f32 %v4816, 1e-05
      %v4849 = vadd.f32 %v4817, 1e-05
      %v4850 = vadd.f32 %v4818, 1e-05
      %v4851 = vadd.f32 %v4819, 1e-05
      %v4852 = vadd.f32 %v4820, 1e-05
      %v4853 = vadd.f32 %v4821, 1e-05
      %v4854 = vadd.f32 %v4822, 1e-05
      %v4855 = vadd.f32 %v4823, 1e-05
      %v4856 = vrsqrt.pop %v4824
      %v4857 = vmul.f32 %v4856, %v4824
      %v4858 = vmul.f32 %v4857, %v4856
      %v4859 = vmul.f32 0.5, %v4858
      %v4860 = vsub.f32 1.5, %v4859
      %v4861 = vmul.f32 %v4856, %v4860
      %vm4862 = vweird.f32 %v4824
      %vm4863 = vweird.f32 %v4856
      %vm4864 = vmor %vm4862, %vm4863
      %v4865 = vsel %vm4864, %v4856, %v4861
      %v4866 = vrsqrt.pop %v4825
      %v4867 = vmul.f32 %v4866, %v4825
      %v4868 = vmul.f32 %v4867, %v4866
      %v4869 = vmul.f32 0.5, %v4868
      %v4870 = vsub.f32 1.5, %v4869
      %v4871 = vmul.f32 %v4866, %v4870
      %vm4872 = vweird.f32 %v4825
      %vm4873 = vweird.f32 %v4866
      %vm4874 = vmor %vm4872, %vm4873
      %v4875 = vsel %vm4874, %v4866, %v4871
      %v4876 = vrsqrt.pop %v4826
      %v4877 = vmul.f32 %v4876, %v4826
      %v4878 = vmul.f32 %v4877, %v4876
      %v4879 = vmul.f32 0.5, %v4878
      %v4880 = vsub.f32 1.5, %v4879
      %v4881 = vmul.f32 %v4876, %v4880
      %vm4882 = vweird.f32 %v4826
      %vm4883 = vweird.f32 %v4876
      %vm4884 = vmor %vm4882, %vm4883
      %v4885 = vsel %vm4884, %v4876, %v4881
      %v4886 = vrsqrt.pop %v4827
      %v4887 = vmul.f32 %v4886, %v4827
      %v4888 = vmul.f32 %v4887, %v4886
      %v4889 = vmul.f32 0.5, %v4888
      %v4890 = vsub.f32 1.5, %v4889
      %v4891 = vmul.f32 %v4886, %v4890
      %vm4892 = vweird.f32 %v4827
      %vm4893 = vweird.f32 %v4886
      %vm4894 = vmor %vm4892, %vm4893
      %v4895 = vsel %vm4894, %v4886, %v4891
      %v4896 = vrsqrt.pop %v4828
      %v4897 = vmul.f32 %v4896, %v4828
      %v4898 = vmul.f32 %v4897, %v4896
      %v4899 = vmul.f32 0.5, %v4898
      %v4900 = vsub.f32 1.5, %v4899
      %v4901 = vmul.f32 %v4896, %v4900
      %vm4902 = vweird.f32 %v4828
      %vm4903 = vweird.f32 %v4896
      %vm4904 = vmor %vm4902, %vm4903
      %v4905 = vsel %vm4904, %v4896, %v4901
      %v4906 = vrsqrt.pop %v4829
      %v4907 = vmul.f32 %v4906, %v4829
      %v4908 = vmul.f32 %v4907, %v4906
      %v4909 = vmul.f32 0.5, %v4908
      %v4910 = vsub.f32 1.5, %v4909
      %v4911 = vmul.f32 %v4906, %v4910
      %vm4912 = vweird.f32 %v4829
      %vm4913 = vweird.f32 %v4906
      %vm4914 = vmor %vm4912, %vm4913
      %v4915 = vsel %vm4914, %v4906, %v4911
      %v4916 = vrsqrt.pop %v4830
      %v4917 = vmul.f32 %v4916, %v4830
      %v4918 = vmul.f32 %v4917, %v4916
      %v4919 = vmul.f32 0.5, %v4918
      %v4920 = vsub.f32 1.5, %v4919
      %v4921 = vmul.f32 %v4916, %v4920
      %vm4922 = vweird.f32 %v4830
      %vm4923 = vweird.f32 %v4916
      %vm4924 = vmor %vm4922, %vm4923
      %v4925 = vsel %vm4924, %v4916, %v4921
      %v4926 = vrsqrt.pop %v4831
      %v4927 = vmul.f32 %v4926, %v4831
      %v4928 = vmul.f32 %v4927, %v4926
      %v4929 = vmul.f32 0.5, %v4928
      %v4930 = vsub.f32 1.5, %v4929
      %v4931 = vmul.f32 %v4926, %v4930
      %vm4932 = vweird.f32 %v4831
      %vm4933 = vweird.f32 %v4926
      %vm4934 = vmor %vm4932, %vm4933
      %v4935 = vsel %vm4934, %v4926, %v4931
      %v4936 = vrsqrt.pop %v4832
      %v4937 = vmul.f32 %v4936, %v4832
      %v4938 = vmul.f32 %v4937, %v4936
      %v4939 = vmul.f32 0.5, %v4938
      %v4940 = vsub.f32 1.5, %v4939
      %v4941 = vmul.f32 %v4936, %v4940
      %vm4942 = vweird.f32 %v4832
      %vm4943 = vweird.f32 %v4936
      %vm4944 = vmor %vm4942, %vm4943
      %v4945 = vsel %vm4944, %v4936, %v4941
      %v4946 = vrsqrt.pop %v4833
      %v4947 = vmul.f32 %v4946, %v4833
      %v4948 = vmul.f32 %v4947, %v4946
      %v4949 = vmul.f32 0.5, %v4948
      %v4950 = vsub.f32 1.5, %v4949
      %v4951 = vmul.f32 %v4946, %v4950
      %vm4952 = vweird.f32 %v4833
      %vm4953 = vweird.f32 %v4946
      %vm4954 = vmor %vm4952, %vm4953
      %v4955 = vsel %vm4954, %v4946, %v4951
      %v4956 = vrsqrt.pop %v4834
      %v4957 = vmul.f32 %v4956, %v4834
      %v4958 = vmul.f32 %v4957, %v4956
      %v4959 = vmul.f32 0.5, %v4958
      %v4960 = vsub.f32 1.5, %v4959
      %v4961 = vmul.f32 %v4956, %v4960
      %vm4962 = vweird.f32 %v4834
      %vm4963 = vweird.f32 %v4956
      %vm4964 = vmor %vm4962, %vm4963
      %v4965 = vsel %vm4964, %v4956, %v4961
      %v4966 = vrsqrt.pop %v4835
      %v4967 = vmul.f32 %v4966, %v4835
      %v4968 = vmul.f32 %v4967, %v4966
      %v4969 = vmul.f32 0.5, %v4968
      %v4970 = vsub.f32 1.5, %v4969
      %v4971 = vmul.f32 %v4966, %v4970
      %vm4972 = vweird.f32 %v4835
      %vm4973 = vweird.f32 %v4966
      %vm4974 = vmor %vm4972, %vm4973
      %v4975 = vsel %vm4974, %v4966, %v4971
      %v4976 = vrsqrt.pop %v4836
      %v4977 = vmul.f32 %v4976, %v4836
      %v4978 = vmul.f32 %v4977, %v4976
      %v4979 = vmul.f32 0.5, %v4978
      %v4980 = vsub.f32 1.5, %v4979
      %v4981 = vmul.f32 %v4976, %v4980
      %vm4982 = vweird.f32 %v4836
      %vm4983 = vweird.f32 %v4976
      %vm4984 = vmor %vm4982, %vm4983
      %v4985 = vsel %vm4984, %v4976, %v4981
      %v4986 = vrsqrt.pop %v4837
      %v4987 = vmul.f32 %v4986, %v4837
      %v4988 = vmul.f32 %v4987, %v4986
      %v4989 = vmul.f32 0.5, %v4988
      %v4990 = vsub.f32 1.5, %v4989
      %v4991 = vmul.f32 %v4986, %v4990
      %vm4992 = vweird.f32 %v4837
      %vm4993 = vweird.f32 %v4986
      %vm4994 = vmor %vm4992, %vm4993
      %v4995 = vsel %vm4994, %v4986, %v4991
      %v4996 = vrsqrt.pop %v4838
      %v4997 = vmul.f32 %v4996, %v4838
      %v4998 = vmul.f32 %v4997, %v4996
      %v4999 = vmul.f32 0.5, %v4998
      %v5000 = vsub.f32 1.5, %v4999
      %v5001 = vmul.f32 %v4996, %v5000
      %vm5002 = vweird.f32 %v4838
      %vm5003 = vweird.f32 %v4996
      %vm5004 = vmor %vm5002, %vm5003
      %v5005 = vsel %vm5004, %v4996, %v5001
      %v5006 = vrsqrt.pop %v4839
      %v5007 = vmul.f32 %v5006, %v4839
      %v5008 = vmul.f32 %v5007, %v5006
      %v5009 = vmul.f32 0.5, %v5008
      %v5010 = vsub.f32 1.5, %v5009
      %v5011 = vmul.f32 %v5006, %v5010
      %vm5012 = vweird.f32 %v4839
      %vm5013 = vweird.f32 %v5006
      %vm5014 = vmor %vm5012, %vm5013
      %v5015 = vsel %vm5014, %v5006, %v5011
      %v5016 = vrsqrt.pop %v4840
      %v5017 = vmul.f32 %v5016, %v4840
      %v5018 = vmul.f32 %v5017, %v5016
      %v5019 = vmul.f32 0.5, %v5018
      %v5020 = vsub.f32 1.5, %v5019
      %v5021 = vmul.f32 %v5016, %v5020
      %vm5022 = vweird.f32 %v4840
      %vm5023 = vweird.f32 %v5016
      %vm5024 = vmor %vm5022, %vm5023
      %v5025 = vsel %vm5024, %v5016, %v5021
      %v5026 = vrsqrt.pop %v4841
      %v5027 = vmul.f32 %v5026, %v4841
      %v5028 = vmul.f32 %v5027, %v5026
      %v5029 = vmul.f32 0.5, %v5028
      %v5030 = vsub.f32 1.5, %v5029
      %v5031 = vmul.f32 %v5026, %v5030
      %vm5032 = vweird.f32 %v4841
      %vm5033 = vweird.f32 %v5026
      %vm5034 = vmor %vm5032, %vm5033
      %v5035 = vsel %vm5034, %v5026, %v5031
      %v5036 = vrsqrt.pop %v4842
      %v5037 = vmul.f32 %v5036, %v4842
      %v5038 = vmul.f32 %v5037, %v5036
      %v5039 = vmul.f32 0.5, %v5038
      %v5040 = vsub.f32 1.5, %v5039
      %v5041 = vmul.f32 %v5036, %v5040
      %vm5042 = vweird.f32 %v4842
      %vm5043 = vweird.f32 %v5036
      %vm5044 = vmor %vm5042, %vm5043
      %v5045 = vsel %vm5044, %v5036, %v5041
      %v5046 = vrsqrt.pop %v4843
      %v5047 = vmul.f32 %v5046, %v4843
      %v5048 = vmul.f32 %v5047, %v5046
      %v5049 = vmul.f32 0.5, %v5048
      %v5050 = vsub.f32 1.5, %v5049
      %v5051 = vmul.f32 %v5046, %v5050
      %vm5052 = vweird.f32 %v4843
      %vm5053 = vweird.f32 %v5046
      %vm5054 = vmor %vm5052, %vm5053
      %v5055 = vsel %vm5054, %v5046, %v5051
      %v5056 = vrsqrt.pop %v4844
      %v5057 = vmul.f32 %v5056, %v4844
      %v5058 = vmul.f32 %v5057, %v5056
      %v5059 = vmul.f32 0.5, %v5058
      %v5060 = vsub.f32 1.5, %v5059
      %v5061 = vmul.f32 %v5056, %v5060
      %vm5062 = vweird.f32 %v4844
      %vm5063 = vweird.f32 %v5056
      %vm5064 = vmor %vm5062, %vm5063
      %v5065 = vsel %vm5064, %v5056, %v5061
      %v5066 = vrsqrt.pop %v4845
      %v5067 = vmul.f32 %v5066, %v4845
      %v5068 = vmul.f32 %v5067, %v5066
      %v5069 = vmul.f32 0.5, %v5068
      %v5070 = vsub.f32 1.5, %v5069
      %v5071 = vmul.f32 %v5066, %v5070
      %vm5072 = vweird.f32 %v4845
      %vm5073 = vweird.f32 %v5066
      %vm5074 = vmor %vm5072, %vm5073
      %v5075 = vsel %vm5074, %v5066, %v5071
      %v5076 = vrsqrt.pop %v4846
      %v5077 = vmul.f32 %v5076, %v4846
      %v5078 = vmul.f32 %v5077, %v5076
      %v5079 = vmul.f32 0.5, %v5078
      %v5080 = vsub.f32 1.5, %v5079
      %v5081 = vmul.f32 %v5076, %v5080
      %vm5082 = vweird.f32 %v4846
      %vm5083 = vweird.f32 %v5076
      %vm5084 = vmor %vm5082, %vm5083
      %v5085 = vsel %vm5084, %v5076, %v5081
      %v5086 = vrsqrt.pop %v4847
      %v5087 = vmul.f32 %v5086, %v4847
      %v5088 = vmul.f32 %v5087, %v5086
      %v5089 = vmul.f32 0.5, %v5088
      %v5090 = vsub.f32 1.5, %v5089
      %v5091 = vmul.f32 %v5086, %v5090
      %vm5092 = vweird.f32 %v4847
      %vm5093 = vweird.f32 %v5086
      %vm5094 = vmor %vm5092, %vm5093
      %v5095 = vsel %vm5094, %v5086, %v5091
      %v5096 = vrsqrt.pop %v4848
      %v5097 = vmul.f32 %v5096, %v4848
      %v5098 = vmul.f32 %v5097, %v5096
      %v5099 = vmul.f32 0.5, %v5098
      %v5100 = vsub.f32 1.5, %v5099
      %v5101 = vmul.f32 %v5096, %v5100
      %vm5102 = vweird.f32 %v4848
      %vm5103 = vweird.f32 %v5096
      %vm5104 = vmor %vm5102, %vm5103
      %v5105 = vsel %vm5104, %v5096, %v5101
      %v5106 = vrsqrt.pop %v4849
      %v5107 = vmul.f32 %v5106, %v4849
      %v5108 = vmul.f32 %v5107, %v5106
      %v5109 = vmul.f32 0.5, %v5108
      %v5110 = vsub.f32 1.5, %v5109
      %v5111 = vmul.f32 %v5106, %v5110
      %vm5112 = vweird.f32 %v4849
      %vm5113 = vweird.f32 %v5106
      %vm5114 = vmor %vm5112, %vm5113
      %v5115 = vsel %vm5114, %v5106, %v5111
      %v5116 = vrsqrt.pop %v4850
      %v5117 = vmul.f32 %v5116, %v4850
      %v5118 = vmul.f32 %v5117, %v5116
      %v5119 = vmul.f32 0.5, %v5118
      %v5120 = vsub.f32 1.5, %v5119
      %v5121 = vmul.f32 %v5116, %v5120
      %vm5122 = vweird.f32 %v4850
      %vm5123 = vweird.f32 %v5116
      %vm5124 = vmor %vm5122, %vm5123
      %v5125 = vsel %vm5124, %v5116, %v5121
      %v5126 = vrsqrt.pop %v4851
      %v5127 = vmul.f32 %v5126, %v4851
      %v5128 = vmul.f32 %v5127, %v5126
      %v5129 = vmul.f32 0.5, %v5128
      %v5130 = vsub.f32 1.5, %v5129
      %v5131 = vmul.f32 %v5126, %v5130
      %vm5132 = vweird.f32 %v4851
      %vm5133 = vweird.f32 %v5126
      %vm5134 = vmor %vm5132, %vm5133
      %v5135 = vsel %vm5134, %v5126, %v5131
      %v5136 = vrsqrt.pop %v4852
      %v5137 = vmul.f32 %v5136, %v4852
      %v5138 = vmul.f32 %v5137, %v5136
      %v5139 = vmul.f32 0.5, %v5138
      %v5140 = vsub.f32 1.5, %v5139
      %v5141 = vmul.f32 %v5136, %v5140
      %vm5142 = vweird.f32 %v4852
      %vm5143 = vweird.f32 %v5136
      %vm5144 = vmor %vm5142, %vm5143
      %v5145 = vsel %vm5144, %v5136, %v5141
      %v5146 = vrsqrt.pop %v4853
      %v5147 = vmul.f32 %v5146, %v4853
      %v5148 = vmul.f32 %v5147, %v5146
      %v5149 = vmul.f32 0.5, %v5148
      %v5150 = vsub.f32 1.5, %v5149
      %v5151 = vmul.f32 %v5146, %v5150
      %vm5152 = vweird.f32 %v4853
      %vm5153 = vweird.f32 %v5146
      %vm5154 = vmor %vm5152, %vm5153
      %v5155 = vsel %vm5154, %v5146, %v5151
      %v5156 = vrsqrt.pop %v4854
      %v5157 = vmul.f32 %v5156, %v4854
      %v5158 = vmul.f32 %v5157, %v5156
      %v5159 = vmul.f32 0.5, %v5158
      %v5160 = vsub.f32 1.5, %v5159
      %v5161 = vmul.f32 %v5156, %v5160
      %vm5162 = vweird.f32 %v4854
      %vm5163 = vweird.f32 %v5156
      %vm5164 = vmor %vm5162, %vm5163
      %v5165 = vsel %vm5164, %v5156, %v5161
      %v5166 = vrsqrt.pop %v4855
      %v5167 = vmul.f32 %v5166, %v4855
      %v5168 = vmul.f32 %v5167, %v5166
      %v5169 = vmul.f32 0.5, %v5168
      %v5170 = vsub.f32 1.5, %v5169
      %v5171 = vmul.f32 %v5166, %v5170
      %vm5172 = vweird.f32 %v4855
      %vm5173 = vweird.f32 %v5166
      %vm5174 = vmor %vm5172, %vm5173
      %v5175 = vsel %vm5174, %v5166, %v5171
      %v5176 = vmul.f32 %v4632, %v4865
      %v5177 = vmul.f32 %v4633, %v4875
      %v5178 = vmul.f32 %v4634, %v4885
      %v5179 = vmul.f32 %v4635, %v4895
      %v5180 = vmul.f32 %v4636, %v4905
      %v5181 = vmul.f32 %v4637, %v4915
      %v5182 = vmul.f32 %v4638, %v4925
      %v5183 = vmul.f32 %v4639, %v4935
      %v5184 = vmul.f32 %v4640, %v4945
      %v5185 = vmul.f32 %v4641, %v4955
      %v5186 = vmul.f32 %v4642, %v4965
      %v5187 = vmul.f32 %v4643, %v4975
      %v5188 = vmul.f32 %v4644, %v4985
      %v5189 = vmul.f32 %v4645, %v4995
      %v5190 = vmul.f32 %v4646, %v5005
      %v5191 = vmul.f32 %v4647, %v5015
      %v5192 = vmul.f32 %v4648, %v5025
      %v5193 = vmul.f32 %v4649, %v5035
      %v5194 = vmul.f32 %v4650, %v5045
      %v5195 = vmul.f32 %v4651, %v5055
      %v5196 = vmul.f32 %v4652, %v5065
      %v5197 = vmul.f32 %v4653, %v5075
      %v5198 = vmul.f32 %v4654, %v5085
      %v5199 = vmul.f32 %v4655, %v5095
      %v5200 = vmul.f32 %v4656, %v5105
      %v5201 = vmul.f32 %v4657, %v5115
      %v5202 = vmul.f32 %v4658, %v5125
      %v5203 = vmul.f32 %v4659, %v5135
      %v5204 = vmul.f32 %v4660, %v5145
      %v5205 = vmul.f32 %v4661, %v5155
      %v5206 = vmul.f32 %v4662, %v5165
      %v5207 = vmul.f32 %v4663, %v5175
      %v5209 = vperm.slane %v4502, 0
      %v5211 = vmul.f32 %v5176, %v5209
      %v5212 = vmul.f32 %v5177, %v5209
      %v5213 = vmul.f32 %v5178, %v5209
      %v5214 = vmul.f32 %v5179, %v5209
      %v5215 = vmul.f32 %v5180, %v5209
      %v5216 = vmul.f32 %v5181, %v5209
      %v5217 = vmul.f32 %v5182, %v5209
      %v5218 = vmul.f32 %v5183, %v5209
      %v5219 = vmul.f32 %v5184, %v5209
      %v5220 = vmul.f32 %v5185, %v5209
      %v5221 = vmul.f32 %v5186, %v5209
      %v5222 = vmul.f32 %v5187, %v5209
      %v5223 = vmul.f32 %v5188, %v5209
      %v5224 = vmul.f32 %v5189, %v5209
      %v5225 = vmul.f32 %v5190, %v5209
      %v5226 = vmul.f32 %v5191, %v5209
      %v5227 = vmul.f32 %v5192, %v5209
      %v5228 = vmul.f32 %v5193, %v5209
      %v5229 = vmul.f32 %v5194, %v5209
      %v5230 = vmul.f32 %v5195, %v5209
      %v5231 = vmul.f32 %v5196, %v5209
      %v5232 = vmul.f32 %v5197, %v5209
      %v5233 = vmul.f32 %v5198, %v5209
      %v5234 = vmul.f32 %v5199, %v5209
      %v5235 = vmul.f32 %v5200, %v5209
      %v5236 = vmul.f32 %v5201, %v5209
      %v5237 = vmul.f32 %v5202, %v5209
      %v5238 = vmul.f32 %v5203, %v5209
      %v5239 = vmul.f32 %v5204, %v5209
      %v5240 = vmul.f32 %v5205, %v5209
      %v5241 = vmul.f32 %v5206, %v5209
      %v5242 = vmul.f32 %v5207, %v5209
      %v5244 = vperm.slane %v4503, 0
      %v5246 = vadd.f32 %v5211, %v5244
      %v5247 = vadd.f32 %v5212, %v5244
      %v5248 = vadd.f32 %v5213, %v5244
      %v5249 = vadd.f32 %v5214, %v5244
      %v5250 = vadd.f32 %v5215, %v5244
      %v5251 = vadd.f32 %v5216, %v5244
      %v5252 = vadd.f32 %v5217, %v5244
      %v5253 = vadd.f32 %v5218, %v5244
      %v5254 = vadd.f32 %v5219, %v5244
      %v5255 = vadd.f32 %v5220, %v5244
      %v5256 = vadd.f32 %v5221, %v5244
      %v5257 = vadd.f32 %v5222, %v5244
      %v5258 = vadd.f32 %v5223, %v5244
      %v5259 = vadd.f32 %v5224, %v5244
      %v5260 = vadd.f32 %v5225, %v5244
      %v5261 = vadd.f32 %v5226, %v5244
      %v5262 = vadd.f32 %v5227, %v5244
      %v5263 = vadd.f32 %v5228, %v5244
      %v5264 = vadd.f32 %v5229, %v5244
      %v5265 = vadd.f32 %v5230, %v5244
      %v5266 = vadd.f32 %v5231, %v5244
      %v5267 = vadd.f32 %v5232, %v5244
      %v5268 = vadd.f32 %v5233, %v5244
      %v5269 = vadd.f32 %v5234, %v5244
      %v5270 = vadd.f32 %v5235, %v5244
      %v5271 = vadd.f32 %v5236, %v5244
      %v5272 = vadd.f32 %v5237, %v5244
      %v5273 = vadd.f32 %v5238, %v5244
      %v5274 = vadd.f32 %v5239, %v5244
      %v5275 = vadd.f32 %v5240, %v5244
      %v5276 = vadd.f32 %v5241, %v5244
      %v5277 = vadd.f32 %v5242, %v5244
      %v5278 = vpack.c.bf16 %v5247, %v5246
      %v5279 = vpack.c.bf16 %v5249, %v5248
      %v5280 = vpack.c.bf16 %v5251, %v5250
      %v5281 = vpack.c.bf16 %v5253, %v5252
      %v5282 = vpack.c.bf16 %v5255, %v5254
      %v5283 = vpack.c.bf16 %v5257, %v5256
      %v5284 = vpack.c.bf16 %v5259, %v5258
      %v5285 = vpack.c.bf16 %v5261, %v5260
      %v5286 = vpack.c.bf16 %v5263, %v5262
      %v5287 = vpack.c.bf16 %v5265, %v5264
      %v5288 = vpack.c.bf16 %v5267, %v5266
      %v5289 = vpack.c.bf16 %v5269, %v5268
      %v5290 = vpack.c.bf16 %v5271, %v5270
      %v5291 = vpack.c.bf16 %v5273, %v5272
      %v5292 = vpack.c.bf16 %v5275, %v5274
      %v5293 = vpack.c.bf16 %v5277, %v5276
      %v5294 = vld [vmem:[%s8] sm:$0xf]
      %v5295 = vld [vmem:[%s8 + $0x4] sm:$0xf]
      %v5296 = vld [vmem:[%s8 + $0x8] sm:$0xf]
      %v5297 = vld [vmem:[%s8 + $0xc] sm:$0xf]
      %v5298 = vld [vmem:[%s9] sm:$0x1]
      %v5300 = vperm.slane %v5298, 0
      %v5306 = vunpack.c.l.b16 %v5294
      %v5307 = vunpack.c.l.b16 %v5295
      %v5308 = vunpack.c.l.b16 %v5296
      %v5309 = vunpack.c.l.b16 %v5297
      %v5310 = vpack.c.b16 %v5307, %v5306
      %v5311 = vpack.c.b16 %v5309, %v5308
      %v5315 = vsel %vm631, %v5278, 0
      %v5318 = vsel %vm631, %v5279, 0
      %v5321 = vsel %vm631, %v5280, 0
      %v5324 = vsel %vm631, %v5281, 0
      %v5327 = vsel %vm631, %v5282, 0
      %v5330 = vsel %vm631, %v5283, 0
      %v5333 = vsel %vm631, %v5284, 0
      %v5336 = vsel %vm631, %v5285, 0
      %v5339 = vsel %vm631, %v5286, 0
      %v5342 = vsel %vm631, %v5287, 0
      %v5345 = vsel %vm631, %v5288, 0
      %v5348 = vsel %vm631, %v5289, 0
      %v5351 = vsel %vm631, %v5290, 0
      %v5354 = vsel %vm631, %v5291, 0
      %v5357 = vsel %vm631, %v5292, 0
      %v5360 = vsel %vm631, %v5293, 0
      %5362 = vmatpush.bf16.msra.mxu0 0
      %5363 = vmatpush.bf16.msra.mxu0 0
      %5364 = vmatpush.bf16.msra.mxu0 0
      %5365 = vmatpush.bf16.msra.mxu0 0
      %5366 = vmatpush.bf16.msra.mxu0 0
      %5367 = vmatpush.bf16.msra.mxu0 0
      %5368 = vmatpush.bf16.msra.mxu0 %v5311
      %5369 = vmatpush.bf16.msra.mxu0 %v5310
      %5370 = vmatmul.bf16.gmra.mxu0 %v5315
      %v5371 = vpop.f32.mrf.mxu0
      %v5372 = vadd.f32 %v5300, %v5371
      %v5373 = vpop.f32.mrf.mxu0
      %v5374 = vadd.f32 %v5300, %v5373
      %5375 = vmatmul.bf16.gmra.mxu0 %v5318
      %v5376 = vpop.f32.mrf.mxu0
      %v5377 = vadd.f32 %v5300, %v5376
      %v5378 = vpop.f32.mrf.mxu0
      %v5379 = vadd.f32 %v5300, %v5378
      %5380 = vmatmul.bf16.gmra.mxu0 %v5321
      %v5381 = vpop.f32.mrf.mxu0
      %v5382 = vadd.f32 %v5300, %v5381
      %v5383 = vpop.f32.mrf.mxu0
      %v5384 = vadd.f32 %v5300, %v5383
      %5385 = vmatmul.bf16.gmra.mxu0 %v5324
      %v5386 = vpop.f32.mrf.mxu0
      %v5387 = vadd.f32 %v5300, %v5386
      %v5388 = vpop.f32.mrf.mxu0
      %v5389 = vadd.f32 %v5300, %v5388
      %5390 = vmatmul.bf16.gmra.mxu0 %v5327
      %v5391 = vpop.f32.mrf.mxu0
      %v5392 = vadd.f32 %v5300, %v5391
      %v5393 = vpop.f32.mrf.mxu0
      %v5394 = vadd.f32 %v5300, %v5393
      %5395 = vmatmul.bf16.gmra.mxu0 %v5330
      %v5396 = vpop.f32.mrf.mxu0
      %v5397 = vadd.f32 %v5300, %v5396
      %v5398 = vpop.f32.mrf.mxu0
      %v5399 = vadd.f32 %v5300, %v5398
      %5400 = vmatmul.bf16.gmra.mxu0 %v5333
      %v5401 = vpop.f32.mrf.mxu0
      %v5402 = vadd.f32 %v5300, %v5401
      %v5403 = vpop.f32.mrf.mxu0
      %v5404 = vadd.f32 %v5300, %v5403
      %5405 = vmatmul.bf16.gmra.mxu0 %v5336
      %v5406 = vpop.f32.mrf.mxu0
      %v5407 = vadd.f32 %v5300, %v5406
      %v5408 = vpop.f32.mrf.mxu0
      %v5409 = vadd.f32 %v5300, %v5408
      %5410 = vmatmul.bf16.gmra.mxu0 %v5339
      %v5411 = vpop.f32.mrf.mxu0
      %v5412 = vadd.f32 %v5300, %v5411
      %v5413 = vpop.f32.mrf.mxu0
      %v5414 = vadd.f32 %v5300, %v5413
      %5415 = vmatmul.bf16.gmra.mxu0 %v5342
      %v5416 = vpop.f32.mrf.mxu0
      %v5417 = vadd.f32 %v5300, %v5416
      %v5418 = vpop.f32.mrf.mxu0
      %v5419 = vadd.f32 %v5300, %v5418
      %5420 = vmatmul.bf16.gmra.mxu0 %v5345
      %v5421 = vpop.f32.mrf.mxu0
      %v5422 = vadd.f32 %v5300, %v5421
      %v5423 = vpop.f32.mrf.mxu0
      %v5424 = vadd.f32 %v5300, %v5423
      %5425 = vmatmul.bf16.gmra.mxu0 %v5348
      %v5426 = vpop.f32.mrf.mxu0
      %v5427 = vadd.f32 %v5300, %v5426
      %v5428 = vpop.f32.mrf.mxu0
      %v5429 = vadd.f32 %v5300, %v5428
      %5430 = vmatmul.bf16.gmra.mxu0 %v5351
      %v5431 = vpop.f32.mrf.mxu0
      %v5432 = vadd.f32 %v5300, %v5431
      %v5433 = vpop.f32.mrf.mxu0
      %v5434 = vadd.f32 %v5300, %v5433
      %5435 = vmatmul.bf16.gmra.mxu0 %v5354
      %v5436 = vpop.f32.mrf.mxu0
      %v5437 = vadd.f32 %v5300, %v5436
      %v5438 = vpop.f32.mrf.mxu0
      %v5439 = vadd.f32 %v5300, %v5438
      %5440 = vmatmul.bf16.gmra.mxu0 %v5357
      %v5441 = vpop.f32.mrf.mxu0
      %v5442 = vadd.f32 %v5300, %v5441
      %v5443 = vpop.f32.mrf.mxu0
      %v5444 = vadd.f32 %v5300, %v5443
      %5445 = vmatmul.bf16.gmra.mxu0 %v5360
      %v5446 = vpop.f32.mrf.mxu0
      %v5447 = vadd.f32 %v5300, %v5446
      %v5448 = vpop.f32.mrf.mxu0
      %v5449 = vadd.f32 %v5300, %v5448
      %5450 = vdwg.mxu0
      %v5451 = vmul.f32 %v5372, 0.5
      %v5452 = vmul.f32 %v5374, 0.5
      %v5453 = vmul.f32 %v5377, 0.5
      %v5454 = vmul.f32 %v5379, 0.5
      %v5455 = vmul.f32 %v5382, 0.5
      %v5456 = vmul.f32 %v5384, 0.5
      %v5457 = vmul.f32 %v5387, 0.5
      %v5458 = vmul.f32 %v5389, 0.5
      %v5459 = vmul.f32 %v5392, 0.5
      %v5460 = vmul.f32 %v5394, 0.5
      %v5461 = vmul.f32 %v5397, 0.5
      %v5462 = vmul.f32 %v5399, 0.5
      %v5463 = vmul.f32 %v5402, 0.5
      %v5464 = vmul.f32 %v5404, 0.5
      %v5465 = vmul.f32 %v5407, 0.5
      %v5466 = vmul.f32 %v5409, 0.5
      %v5467 = vmul.f32 %v5412, 0.5
      %v5468 = vmul.f32 %v5414, 0.5
      %v5469 = vmul.f32 %v5417, 0.5
      %v5470 = vmul.f32 %v5419, 0.5
      %v5471 = vmul.f32 %v5422, 0.5
      %v5472 = vmul.f32 %v5424, 0.5
      %v5473 = vmul.f32 %v5427, 0.5
      %v5474 = vmul.f32 %v5429, 0.5
      %v5475 = vmul.f32 %v5432, 0.5
      %v5476 = vmul.f32 %v5434, 0.5
      %v5477 = vmul.f32 %v5437, 0.5
      %v5478 = vmul.f32 %v5439, 0.5
      %v5479 = vmul.f32 %v5442, 0.5
      %v5480 = vmul.f32 %v5444, 0.5
      %v5481 = vmul.f32 %v5447, 0.5
      %v5482 = vmul.f32 %v5449, 0.5
      %v5483 = vmul.f32 %v5372, 0.044715
      %v5484 = vmul.f32 %v5374, 0.044715
      %v5485 = vmul.f32 %v5377, 0.044715
      %v5486 = vmul.f32 %v5379, 0.044715
      %v5487 = vmul.f32 %v5382, 0.044715
      %v5488 = vmul.f32 %v5384, 0.044715
      %v5489 = vmul.f32 %v5387, 0.044715
      %v5490 = vmul.f32 %v5389, 0.044715
      %v5491 = vmul.f32 %v5392, 0.044715
      %v5492 = vmul.f32 %v5394, 0.044715
      %v5493 = vmul.f32 %v5397, 0.044715
      %v5494 = vmul.f32 %v5399, 0.044715
      %v5495 = vmul.f32 %v5402, 0.044715
      %v5496 = vmul.f32 %v5404, 0.044715
      %v5497 = vmul.f32 %v5407, 0.044715
      %v5498 = vmul.f32 %v5409, 0.044715
      %v5499 = vmul.f32 %v5412, 0.044715
      %v5500 = vmul.f32 %v5414, 0.044715
      %v5501 = vmul.f32 %v5417, 0.044715
      %v5502 = vmul.f32 %v5419, 0.044715
      %v5503 = vmul.f32 %v5422, 0.044715
      %v5504 = vmul.f32 %v5424, 0.044715
      %v5505 = vmul.f32 %v5427, 0.044715
      %v5506 = vmul.f32 %v5429, 0.044715
      %v5507 = vmul.f32 %v5432, 0.044715
      %v5508 = vmul.f32 %v5434, 0.044715
      %v5509 = vmul.f32 %v5437, 0.044715
      %v5510 = vmul.f32 %v5439, 0.044715
      %v5511 = vmul.f32 %v5442, 0.044715
      %v5512 = vmul.f32 %v5444, 0.044715
      %v5513 = vmul.f32 %v5447, 0.044715
      %v5514 = vmul.f32 %v5449, 0.044715
      %v5515 = vmul.f32 %v5483, %v5372
      %v5516 = vmul.f32 %v5484, %v5374
      %v5517 = vmul.f32 %v5485, %v5377
      %v5518 = vmul.f32 %v5486, %v5379
      %v5519 = vmul.f32 %v5487, %v5382
      %v5520 = vmul.f32 %v5488, %v5384
      %v5521 = vmul.f32 %v5489, %v5387
      %v5522 = vmul.f32 %v5490, %v5389
      %v5523 = vmul.f32 %v5491, %v5392
      %v5524 = vmul.f32 %v5492, %v5394
      %v5525 = vmul.f32 %v5493, %v5397
      %v5526 = vmul.f32 %v5494, %v5399
      %v5527 = vmul.f32 %v5495, %v5402
      %v5528 = vmul.f32 %v5496, %v5404
      %v5529 = vmul.f32 %v5497, %v5407
      %v5530 = vmul.f32 %v5498, %v5409
      %v5531 = vmul.f32 %v5499, %v5412
      %v5532 = vmul.f32 %v5500, %v5414
      %v5533 = vmul.f32 %v5501, %v5417
      %v5534 = vmul.f32 %v5502, %v5419
      %v5535 = vmul.f32 %v5503, %v5422
      %v5536 = vmul.f32 %v5504, %v5424
      %v5537 = vmul.f32 %v5505, %v5427
      %v5538 = vmul.f32 %v5506, %v5429
      %v5539 = vmul.f32 %v5507, %v5432
      %v5540 = vmul.f32 %v5508, %v5434
      %v5541 = vmul.f32 %v5509, %v5437
      %v5542 = vmul.f32 %v5510, %v5439
      %v5543 = vmul.f32 %v5511, %v5442
      %v5544 = vmul.f32 %v5512, %v5444
      %v5545 = vmul.f32 %v5513, %v5447
      %v5546 = vmul.f32 %v5514, %v5449
      %v5547 = vmul.f32 %v5515, %v5372
      %v5548 = vmul.f32 %v5516, %v5374
      %v5549 = vmul.f32 %v5517, %v5377
      %v5550 = vmul.f32 %v5518, %v5379
      %v5551 = vmul.f32 %v5519, %v5382
      %v5552 = vmul.f32 %v5520, %v5384
      %v5553 = vmul.f32 %v5521, %v5387
      %v5554 = vmul.f32 %v5522, %v5389
      %v5555 = vmul.f32 %v5523, %v5392
      %v5556 = vmul.f32 %v5524, %v5394
      %v5557 = vmul.f32 %v5525, %v5397
      %v5558 = vmul.f32 %v5526, %v5399
      %v5559 = vmul.f32 %v5527, %v5402
      %v5560 = vmul.f32 %v5528, %v5404
      %v5561 = vmul.f32 %v5529, %v5407
      %v5562 = vmul.f32 %v5530, %v5409
      %v5563 = vmul.f32 %v5531, %v5412
      %v5564 = vmul.f32 %v5532, %v5414
      %v5565 = vmul.f32 %v5533, %v5417
      %v5566 = vmul.f32 %v5534, %v5419
      %v5567 = vmul.f32 %v5535, %v5422
      %v5568 = vmul.f32 %v5536, %v5424
      %v5569 = vmul.f32 %v5537, %v5427
      %v5570 = vmul.f32 %v5538, %v5429
      %v5571 = vmul.f32 %v5539, %v5432
      %v5572 = vmul.f32 %v5540, %v5434
      %v5573 = vmul.f32 %v5541, %v5437
      %v5574 = vmul.f32 %v5542, %v5439
      %v5575 = vmul.f32 %v5543, %v5442
      %v5576 = vmul.f32 %v5544, %v5444
      %v5577 = vmul.f32 %v5545, %v5447
      %v5578 = vmul.f32 %v5546, %v5449
      %v5579 = vadd.f32 %v5372, %v5547
      %v5580 = vadd.f32 %v5374, %v5548
      %v5581 = vadd.f32 %v5377, %v5549
      %v5582 = vadd.f32 %v5379, %v5550
      %v5583 = vadd.f32 %v5382, %v5551
      %v5584 = vadd.f32 %v5384, %v5552
      %v5585 = vadd.f32 %v5387, %v5553
      %v5586 = vadd.f32 %v5389, %v5554
      %v5587 = vadd.f32 %v5392, %v5555
      %v5588 = vadd.f32 %v5394, %v5556
      %v5589 = vadd.f32 %v5397, %v5557
      %v5590 = vadd.f32 %v5399, %v5558
      %v5591 = vadd.f32 %v5402, %v5559
      %v5592 = vadd.f32 %v5404, %v5560
      %v5593 = vadd.f32 %v5407, %v5561
      %v5594 = vadd.f32 %v5409, %v5562
      %v5595 = vadd.f32 %v5412, %v5563
      %v5596 = vadd.f32 %v5414, %v5564
      %v5597 = vadd.f32 %v5417, %v5565
      %v5598 = vadd.f32 %v5419, %v5566
      %v5599 = vadd.f32 %v5422, %v5567
      %v5600 = vadd.f32 %v5424, %v5568
      %v5601 = vadd.f32 %v5427, %v5569
      %v5602 = vadd.f32 %v5429, %v5570
      %v5603 = vadd.f32 %v5432, %v5571
      %v5604 = vadd.f32 %v5434, %v5572
      %v5605 = vadd.f32 %v5437, %v5573
      %v5606 = vadd.f32 %v5439, %v5574
      %v5607 = vadd.f32 %v5442, %v5575
      %v5608 = vadd.f32 %v5444, %v5576
      %v5609 = vadd.f32 %v5447, %v5577
      %v5610 = vadd.f32 %v5449, %v5578
      %v5611 = vmul.f32 %v5579, 0.7978846
      %v5612 = vmul.f32 %v5580, 0.7978846
      %v5613 = vmul.f32 %v5581, 0.7978846
      %v5614 = vmul.f32 %v5582, 0.7978846
      %v5615 = vmul.f32 %v5583, 0.7978846
      %v5616 = vmul.f32 %v5584, 0.7978846
      %v5617 = vmul.f32 %v5585, 0.7978846
      %v5618 = vmul.f32 %v5586, 0.7978846
      %v5619 = vmul.f32 %v5587, 0.7978846
      %v5620 = vmul.f32 %v5588, 0.7978846
      %v5621 = vmul.f32 %v5589, 0.7978846
      %v5622 = vmul.f32 %v5590, 0.7978846
      %v5623 = vmul.f32 %v5591, 0.7978846
      %v5624 = vmul.f32 %v5592, 0.7978846
      %v5625 = vmul.f32 %v5593, 0.7978846
      %v5626 = vmul.f32 %v5594, 0.7978846
      %v5627 = vmul.f32 %v5595, 0.7978846
      %v5628 = vmul.f32 %v5596, 0.7978846
      %v5629 = vmul.f32 %v5597, 0.7978846
      %v5630 = vmul.f32 %v5598, 0.7978846
      %v5631 = vmul.f32 %v5599, 0.7978846
      %v5632 = vmul.f32 %v5600, 0.7978846
      %v5633 = vmul.f32 %v5601, 0.7978846
      %v5634 = vmul.f32 %v5602, 0.7978846
      %v5635 = vmul.f32 %v5603, 0.7978846
      %v5636 = vmul.f32 %v5604, 0.7978846
      %v5637 = vmul.f32 %v5605, 0.7978846
      %v5638 = vmul.f32 %v5606, 0.7978846
      %v5639 = vmul.f32 %v5607, 0.7978846
      %v5640 = vmul.f32 %v5608, 0.7978846
      %v5641 = vmul.f32 %v5609, 0.7978846
      %v5642 = vmul.f32 %v5610, 0.7978846
      %v5643 = vtanh.pop %v5611
      %v5644 = vtanh.pop %v5612
      %v5645 = vtanh.pop %v5613
      %v5646 = vtanh.pop %v5614
      %v5647 = vtanh.pop %v5615
      %v5648 = vtanh.pop %v5616
      %v5649 = vtanh.pop %v5617
      %v5650 = vtanh.pop %v5618
      %v5651 = vtanh.pop %v5619
      %v5652 = vtanh.pop %v5620
      %v5653 = vtanh.pop %v5621
      %v5654 = vtanh.pop %v5622
      %v5655 = vtanh.pop %v5623
      %v5656 = vtanh.pop %v5624
      %v5657 = vtanh.pop %v5625
      %v5658 = vtanh.pop %v5626
      %v5659 = vtanh.pop %v5627
      %v5660 = vtanh.pop %v5628
      %v5661 = vtanh.pop %v5629
      %v5662 = vtanh.pop %v5630
      %v5663 = vtanh.pop %v5631
      %v5664 = vtanh.pop %v5632
      %v5665 = vtanh.pop %v5633
      %v5666 = vtanh.pop %v5634
      %v5667 = vtanh.pop %v5635
      %v5668 = vtanh.pop %v5636
      %v5669 = vtanh.pop %v5637
      %v5670 = vtanh.pop %v5638
      %v5671 = vtanh.pop %v5639
      %v5672 = vtanh.pop %v5640
      %v5673 = vtanh.pop %v5641
      %v5674 = vtanh.pop %v5642
      %v5675 = vadd.f32 %v5643, 1.0
      %v5676 = vadd.f32 %v5644, 1.0
      %v5677 = vadd.f32 %v5645, 1.0
      %v5678 = vadd.f32 %v5646, 1.0
      %v5679 = vadd.f32 %v5647, 1.0
      %v5680 = vadd.f32 %v5648, 1.0
      %v5681 = vadd.f32 %v5649, 1.0
      %v5682 = vadd.f32 %v5650, 1.0
      %v5683 = vadd.f32 %v5651, 1.0
      %v5684 = vadd.f32 %v5652, 1.0
      %v5685 = vadd.f32 %v5653, 1.0
      %v5686 = vadd.f32 %v5654, 1.0
      %v5687 = vadd.f32 %v5655, 1.0
      %v5688 = vadd.f32 %v5656, 1.0
      %v5689 = vadd.f32 %v5657, 1.0
      %v5690 = vadd.f32 %v5658, 1.0
      %v5691 = vadd.f32 %v5659, 1.0
      %v5692 = vadd.f32 %v5660, 1.0
      %v5693 = vadd.f32 %v5661, 1.0
      %v5694 = vadd.f32 %v5662, 1.0
      %v5695 = vadd.f32 %v5663, 1.0
      %v5696 = vadd.f32 %v5664, 1.0
      %v5697 = vadd.f32 %v5665, 1.0
      %v5698 = vadd.f32 %v5666, 1.0
      %v5699 = vadd.f32 %v5667, 1.0
      %v5700 = vadd.f32 %v5668, 1.0
      %v5701 = vadd.f32 %v5669, 1.0
      %v5702 = vadd.f32 %v5670, 1.0
      %v5703 = vadd.f32 %v5671, 1.0
      %v5704 = vadd.f32 %v5672, 1.0
      %v5705 = vadd.f32 %v5673, 1.0
      %v5706 = vadd.f32 %v5674, 1.0
      %v5707 = vmul.f32 %v5451, %v5675
      %v5708 = vmul.f32 %v5452, %v5676
      %v5709 = vmul.f32 %v5453, %v5677
      %v5710 = vmul.f32 %v5454, %v5678
      %v5711 = vmul.f32 %v5455, %v5679
      %v5712 = vmul.f32 %v5456, %v5680
      %v5713 = vmul.f32 %v5457, %v5681
      %v5714 = vmul.f32 %v5458, %v5682
      %v5715 = vmul.f32 %v5459, %v5683
      %v5716 = vmul.f32 %v5460, %v5684
      %v5717 = vmul.f32 %v5461, %v5685
      %v5718 = vmul.f32 %v5462, %v5686
      %v5719 = vmul.f32 %v5463, %v5687
      %v5720 = vmul.f32 %v5464, %v5688
      %v5721 = vmul.f32 %v5465, %v5689
      %v5722 = vmul.f32 %v5466, %v5690
      %v5723 = vmul.f32 %v5467, %v5691
      %v5724 = vmul.f32 %v5468, %v5692
      %v5725 = vmul.f32 %v5469, %v5693
      %v5726 = vmul.f32 %v5470, %v5694
      %v5727 = vmul.f32 %v5471, %v5695
      %v5728 = vmul.f32 %v5472, %v5696
      %v5729 = vmul.f32 %v5473, %v5697
      %v5730 = vmul.f32 %v5474, %v5698
      %v5731 = vmul.f32 %v5475, %v5699
      %v5732 = vmul.f32 %v5476, %v5700
      %v5733 = vmul.f32 %v5477, %v5701
      %v5734 = vmul.f32 %v5478, %v5702
      %v5735 = vmul.f32 %v5479, %v5703
      %v5736 = vmul.f32 %v5480, %v5704
      %v5737 = vmul.f32 %v5481, %v5705
      %v5738 = vmul.f32 %v5482, %v5706
      %v5739 = vpack.c.bf16 %v5708, %v5707
      %v5740 = vpack.c.bf16 %v5710, %v5709
      %v5741 = vpack.c.bf16 %v5712, %v5711
      %v5742 = vpack.c.bf16 %v5714, %v5713
      %v5743 = vpack.c.bf16 %v5716, %v5715
      %v5744 = vpack.c.bf16 %v5718, %v5717
      %v5745 = vpack.c.bf16 %v5720, %v5719
      %v5746 = vpack.c.bf16 %v5722, %v5721
      %v5747 = vpack.c.bf16 %v5724, %v5723
      %v5748 = vpack.c.bf16 %v5726, %v5725
      %v5749 = vpack.c.bf16 %v5728, %v5727
      %v5750 = vpack.c.bf16 %v5730, %v5729
      %v5751 = vpack.c.bf16 %v5732, %v5731
      %v5752 = vpack.c.bf16 %v5734, %v5733
      %v5753 = vpack.c.bf16 %v5736, %v5735
      %v5754 = vpack.c.bf16 %v5738, %v5737
      %v5755 = vld [vmem:[%s10] sm:$0xf]
      %v5756 = vld [vmem:[%s10 + $0x4] sm:$0xf]
      %v5757 = vld [vmem:[%s10 + $0x8] sm:$0xf]
      %v5758 = vld [vmem:[%s10 + $0xc] sm:$0xf]
      %v5759 = vld [vmem:[%s10 + $0x10] sm:$0xf]
      %v5760 = vld [vmem:[%s10 + $0x14] sm:$0xf]
      %v5761 = vld [vmem:[%s10 + $0x18] sm:$0xf]
      %v5762 = vld [vmem:[%s10 + $0x1c] sm:$0xf]
      %v5763 = vld [vmem:[%s10 + $0x20] sm:$0xf]
      %v5764 = vld [vmem:[%s10 + $0x24] sm:$0xf]
      %v5765 = vld [vmem:[%s10 + $0x28] sm:$0xf]
      %v5766 = vld [vmem:[%s10 + $0x2c] sm:$0xf]
      %v5767 = vld [vmem:[%s10 + $0x30] sm:$0xf]
      %v5768 = vld [vmem:[%s10 + $0x34] sm:$0xf]
      %v5769 = vld [vmem:[%s10 + $0x38] sm:$0xf]
      %v5770 = vld [vmem:[%s10 + $0x3c] sm:$0xf]
      %v5771 = vld [vmem:[%s11] sm:$0x1]
      %v5773 = vperm.slane %v5771, 0
      %v5791 = vunpack.c.l.b16 %v5755
      %v5792 = vunpack.c.l.b16 %v5756
      %v5793 = vunpack.c.l.b16 %v5757
      %v5794 = vunpack.c.l.b16 %v5758
      %v5795 = vunpack.c.l.b16 %v5759
      %v5796 = vunpack.c.l.b16 %v5760
      %v5797 = vunpack.c.l.b16 %v5761
      %v5798 = vunpack.c.l.b16 %v5762
      %v5799 = vunpack.c.l.b16 %v5763
      %v5800 = vunpack.c.l.b16 %v5764
      %v5801 = vunpack.c.l.b16 %v5765
      %v5802 = vunpack.c.l.b16 %v5766
      %v5803 = vunpack.c.l.b16 %v5767
      %v5804 = vunpack.c.l.b16 %v5768
      %v5805 = vunpack.c.l.b16 %v5769
      %v5806 = vunpack.c.l.b16 %v5770
      %v5807 = vpack.c.b16 %v5792, %v5791
      %v5808 = vpack.c.b16 %v5794, %v5793
      %v5809 = vpack.c.b16 %v5796, %v5795
      %v5810 = vpack.c.b16 %v5798, %v5797
      %v5811 = vpack.c.b16 %v5800, %v5799
      %v5812 = vpack.c.b16 %v5802, %v5801
      %v5813 = vpack.c.b16 %v5804, %v5803
      %v5814 = vpack.c.b16 %v5806, %v5805
      %5823 = vmatpush.bf16.msra.mxu0 %v5814
      %5824 = vmatpush.bf16.msra.mxu0 %v5813
      %5825 = vmatpush.bf16.msra.mxu0 %v5812
      %5826 = vmatpush.bf16.msra.mxu0 %v5811
      %5827 = vmatpush.bf16.msra.mxu0 %v5810
      %5828 = vmatpush.bf16.msra.mxu0 %v5809
      %5829 = vmatpush.bf16.msra.mxu0 %v5808
      %5830 = vmatpush.bf16.msra.mxu0 %v5807
      %5831 = vmatmul.bf16.gmra.mxu0 %v5739
      %v5832 = vpop.f32.mrf.mxu0
      %v5833 = vadd.f32 %v5773, %v5832
      %v5834 = vpop.f32.mrf.mxu0
      %v5835 = vadd.f32 %v5773, %v5834
      %5836 = vmatmul.bf16.gmra.mxu0 %v5740
      %v5837 = vpop.f32.mrf.mxu0
      %v5838 = vadd.f32 %v5773, %v5837
      %v5839 = vpop.f32.mrf.mxu0
      %v5840 = vadd.f32 %v5773, %v5839
      %5841 = vmatmul.bf16.gmra.mxu0 %v5741
      %v5842 = vpop.f32.mrf.mxu0
      %v5843 = vadd.f32 %v5773, %v5842
      %v5844 = vpop.f32.mrf.mxu0
      %v5845 = vadd.f32 %v5773, %v5844
      %5846 = vmatmul.bf16.gmra.mxu0 %v5742
      %v5847 = vpop.f32.mrf.mxu0
      %v5848 = vadd.f32 %v5773, %v5847
      %v5849 = vpop.f32.mrf.mxu0
      %v5850 = vadd.f32 %v5773, %v5849
      %5851 = vmatmul.bf16.gmra.mxu0 %v5743
      %v5852 = vpop.f32.mrf.mxu0
      %v5853 = vadd.f32 %v5773, %v5852
      %v5854 = vpop.f32.mrf.mxu0
      %v5855 = vadd.f32 %v5773, %v5854
      %5856 = vmatmul.bf16.gmra.mxu0 %v5744
      %v5857 = vpop.f32.mrf.mxu0
      %v5858 = vadd.f32 %v5773, %v5857
      %v5859 = vpop.f32.mrf.mxu0
      %v5860 = vadd.f32 %v5773, %v5859
      %5861 = vmatmul.bf16.gmra.mxu0 %v5745
      %v5862 = vpop.f32.mrf.mxu0
      %v5863 = vadd.f32 %v5773, %v5862
      %v5864 = vpop.f32.mrf.mxu0
      %v5865 = vadd.f32 %v5773, %v5864
      %5866 = vmatmul.bf16.gmra.mxu0 %v5746
      %v5867 = vpop.f32.mrf.mxu0
      %v5868 = vadd.f32 %v5773, %v5867
      %v5869 = vpop.f32.mrf.mxu0
      %v5870 = vadd.f32 %v5773, %v5869
      %5871 = vmatmul.bf16.gmra.mxu0 %v5747
      %v5872 = vpop.f32.mrf.mxu0
      %v5873 = vadd.f32 %v5773, %v5872
      %v5874 = vpop.f32.mrf.mxu0
      %v5875 = vadd.f32 %v5773, %v5874
      %5876 = vmatmul.bf16.gmra.mxu0 %v5748
      %v5877 = vpop.f32.mrf.mxu0
      %v5878 = vadd.f32 %v5773, %v5877
      %v5879 = vpop.f32.mrf.mxu0
      %v5880 = vadd.f32 %v5773, %v5879
      %5881 = vmatmul.bf16.gmra.mxu0 %v5749
      %v5882 = vpop.f32.mrf.mxu0
      %v5883 = vadd.f32 %v5773, %v5882
      %v5884 = vpop.f32.mrf.mxu0
      %v5885 = vadd.f32 %v5773, %v5884
      %5886 = vmatmul.bf16.gmra.mxu0 %v5750
      %v5887 = vpop.f32.mrf.mxu0
      %v5888 = vadd.f32 %v5773, %v5887
      %v5889 = vpop.f32.mrf.mxu0
      %v5890 = vadd.f32 %v5773, %v5889
      %5891 = vmatmul.bf16.gmra.mxu0 %v5751
      %v5892 = vpop.f32.mrf.mxu0
      %v5893 = vadd.f32 %v5773, %v5892
      %v5894 = vpop.f32.mrf.mxu0
      %v5895 = vadd.f32 %v5773, %v5894
      %5896 = vmatmul.bf16.gmra.mxu0 %v5752
      %v5897 = vpop.f32.mrf.mxu0
      %v5898 = vadd.f32 %v5773, %v5897
      %v5899 = vpop.f32.mrf.mxu0
      %v5900 = vadd.f32 %v5773, %v5899
      %5901 = vmatmul.bf16.gmra.mxu0 %v5753
      %v5902 = vpop.f32.mrf.mxu0
      %v5903 = vadd.f32 %v5773, %v5902
      %v5904 = vpop.f32.mrf.mxu0
      %v5905 = vadd.f32 %v5773, %v5904
      %5906 = vmatmul.bf16.gmra.mxu0 %v5754
      %v5907 = vpop.f32.mrf.mxu0
      %v5908 = vadd.f32 %v5773, %v5907
      %v5909 = vpop.f32.mrf.mxu0
      %v5910 = vadd.f32 %v5773, %v5909
      %5911 = vdwg.mxu0
      %v5912 = vadd.f32 %v5833, %v4423
      %v5913 = vadd.f32 %v5835, %v4425
      %v5914 = vadd.f32 %v5838, %v4428
      %v5915 = vadd.f32 %v5840, %v4430
      %v5916 = vadd.f32 %v5843, %v4433
      %v5917 = vadd.f32 %v5845, %v4435
      %v5918 = vadd.f32 %v5848, %v4438
      %v5919 = vadd.f32 %v5850, %v4440
      %v5920 = vadd.f32 %v5853, %v4443
      %v5921 = vadd.f32 %v5855, %v4445
      %v5922 = vadd.f32 %v5858, %v4448
      %v5923 = vadd.f32 %v5860, %v4450
      %v5924 = vadd.f32 %v5863, %v4453
      %v5925 = vadd.f32 %v5865, %v4455
      %v5926 = vadd.f32 %v5868, %v4458
      %v5927 = vadd.f32 %v5870, %v4460
      %v5928 = vadd.f32 %v5873, %v4463
      %v5929 = vadd.f32 %v5875, %v4465
      %v5930 = vadd.f32 %v5878, %v4468
      %v5931 = vadd.f32 %v5880, %v4470
      %v5932 = vadd.f32 %v5883, %v4473
      %v5933 = vadd.f32 %v5885, %v4475
      %v5934 = vadd.f32 %v5888, %v4478
      %v5935 = vadd.f32 %v5890, %v4480
      %v5936 = vadd.f32 %v5893, %v4483
      %v5937 = vadd.f32 %v5895, %v4485
      %v5938 = vadd.f32 %v5898, %v4488
      %v5939 = vadd.f32 %v5900, %v4490
      %v5940 = vadd.f32 %v5903, %v4493
      %v5941 = vadd.f32 %v5905, %v4495
      %v5942 = vadd.f32 %v5908, %v4498
      %v5943 = vadd.f32 %v5910, %v4500
      %v5944 = vadd.f32 %v5912, %v597
      %v5945 = vadd.f32 %v5913, %v598
      %v5946 = vadd.f32 %v5914, %v599
      %v5947 = vadd.f32 %v5915, %v600
      %v5948 = vadd.f32 %v5916, %v601
      %v5949 = vadd.f32 %v5917, %v602
      %v5950 = vadd.f32 %v5918, %v603
      %v5951 = vadd.f32 %v5919, %v604
      %v5952 = vadd.f32 %v5920, %v605
      %v5953 = vadd.f32 %v5921, %v606
      %v5954 = vadd.f32 %v5922, %v607
      %v5955 = vadd.f32 %v5923, %v608
      %v5956 = vadd.f32 %v5924, %v609
      %v5957 = vadd.f32 %v5925, %v610
      %v5958 = vadd.f32 %v5926, %v611
      %v5959 = vadd.f32 %v5927, %v612
      %v5960 = vadd.f32 %v5928, %v613
      %v5961 = vadd.f32 %v5929, %v614
      %v5962 = vadd.f32 %v5930, %v615
      %v5963 = vadd.f32 %v5931, %v616
      %v5964 = vadd.f32 %v5932, %v617
      %v5965 = vadd.f32 %v5933, %v618
      %v5966 = vadd.f32 %v5934, %v619
      %v5967 = vadd.f32 %v5935, %v620
      %v5968 = vadd.f32 %v5936, %v621
      %v5969 = vadd.f32 %v5937, %v622
      %v5970 = vadd.f32 %v5938, %v623
      %v5971 = vadd.f32 %v5939, %v624
      %v5972 = vadd.f32 %v5940, %v625
      %v5973 = vadd.f32 %v5941, %v626
      %v5974 = vadd.f32 %v5942, %v627
      %v5975 = vadd.f32 %v5943, %v628
      %5976 = vst.msk [vmem:[%s595] sm:$0xff] %vm631, %v5944
      %5977 = vst.msk [vmem:[%s595 + $0x8] sm:$0xff] %vm631, %v5945
      %5978 = vst.msk [vmem:[%s595 + $0x10] sm:$0xff] %vm631, %v5946
      %5979 = vst.msk [vmem:[%s595 + $0x18] sm:$0xff] %vm631, %v5947
      %5980 = vst.msk [vmem:[%s595 + $0x20] sm:$0xff] %vm631, %v5948
      %5981 = vst.msk [vmem:[%s595 + $0x28] sm:$0xff] %vm631, %v5949
      %5982 = vst.msk [vmem:[%s595 + $0x30] sm:$0xff] %vm631, %v5950
      %5983 = vst.msk [vmem:[%s595 + $0x38] sm:$0xff] %vm631, %v5951
      %5984 = vst.msk [vmem:[%s595 + $0x40] sm:$0xff] %vm631, %v5952
      %5985 = vst.msk [vmem:[%s595 + $0x48] sm:$0xff] %vm631, %v5953
      %5986 = vst.msk [vmem:[%s595 + $0x50] sm:$0xff] %vm631, %v5954
      %5987 = vst.msk [vmem:[%s595 + $0x58] sm:$0xff] %vm631, %v5955
      %5988 = vst.msk [vmem:[%s595 + $0x60] sm:$0xff] %vm631, %v5956
      %5989 = vst.msk [vmem:[%s595 + $0x68] sm:$0xff] %vm631, %v5957
      %5990 = vst.msk [vmem:[%s595 + $0x70] sm:$0xff] %vm631, %v5958
      %5991 = vst.msk [vmem:[%s595 + $0x78] sm:$0xff] %vm631, %v5959
      %5992 = vst.msk [vmem:[%s595 + $0x80] sm:$0xff] %vm631, %v5960
      %5993 = vst.msk [vmem:[%s595 + $0x88] sm:$0xff] %vm631, %v5961
      %5994 = vst.msk [vmem:[%s595 + $0x90] sm:$0xff] %vm631, %v5962
      %5995 = vst.msk [vmem:[%s595 + $0x98] sm:$0xff] %vm631, %v5963
      %5996 = vst.msk [vmem:[%s595 + $0xa0] sm:$0xff] %vm631, %v5964
      %5997 = vst.msk [vmem:[%s595 + $0xa8] sm:$0xff] %vm631, %v5965
      %5998 = vst.msk [vmem:[%s595 + $0xb0] sm:$0xff] %vm631, %v5966
      %5999 = vst.msk [vmem:[%s595 + $0xb8] sm:$0xff] %vm631, %v5967
      %6000 = vst.msk [vmem:[%s595 + $0xc0] sm:$0xff] %vm631, %v5968
      %6001 = vst.msk [vmem:[%s595 + $0xc8] sm:$0xff] %vm631, %v5969
      %6002 = vst.msk [vmem:[%s595 + $0xd0] sm:$0xff] %vm631, %v5970
      %6003 = vst.msk [vmem:[%s595 + $0xd8] sm:$0xff] %vm631, %v5971
      %6004 = vst.msk [vmem:[%s595 + $0xe0] sm:$0xff] %vm631, %v5972
      %6005 = vst.msk [vmem:[%s595 + $0xe8] sm:$0xff] %vm631, %v5973
      %6006 = vst.msk [vmem:[%s595 + $0xf0] sm:$0xff] %vm631, %v5974
      %6007 = vst.msk [vmem:[%s595 + $0xf8] sm:$0xff] %vm631, %v5975
      %p6008 = scmp.lt.s32.totalorder %s29, 1
      %s6009 = scalar_select %p6008, %s29, 1
      %s6010 = smul.addr %s6009, 32
      %s6011 = smul.addr %s6010, 8
      %s6012 = scalar_lea.vmem %s18, %s6011
      // Predicated region
      $region93: #{tpu_custom_call.1} parent=91 // pred_check
        %p6013 = pneg %p435
      $region94: #{tpu_custom_call.1} parent=91 // pred_check_branch
        %6015 = sbr.rel (%p6013) target = $region96
      $region95: #{tpu_custom_call.1} parent=91 // pred_region
        _
      $region96: #{tpu_custom_call.1} parent=91 // pred_fallthru
        _
    $region92: #{tpu_custom_call.1} parent=5 // pred_fallthru
      _
    %p6016 = scmp.le.s32.totalorder 2, %s24
    // Predicated region
    $region97: #{tpu_custom_call.1} parent=5 // pred_check
      %p6017 = pneg %p6016
    $region98: #{tpu_custom_call.1} parent=5 // pred_check_branch
      %6019 = sbr.rel (%p6017) target = $region100
    $region99: #{tpu_custom_call.1} parent=5 // pred_region
      %s6020 = ssub.s32 %s24, 2
      // Predicated region
      $region101: #{tpu_custom_call.1} parent=99 // pred_check
        %p6021 = pneg %p441
      $region102: #{tpu_custom_call.1} parent=99 // pred_check_branch
        %6023 = sbr.rel (%p6021) target = $region104
      $region103: #{tpu_custom_call.1} parent=99 // pred_region
        %p6024 = scmp.lt.s32.totalorder %s30, 1
        %s6025 = scalar_select %p6024, %s30, 1
        %s6026 = smul.addr %s6025, 32
        %s6027 = smul.addr %s6026, 8
        %s6028 = scalar_lea.vmem %s18, %s6027
      $region104: #{tpu_custom_call.1} parent=99 // pred_fallthru
        _
    $region100: #{tpu_custom_call.1} parent=5 // pred_fallthru
      _
  $region6: #{tpu_custom_call.1} parent=0 // loop_footer
    %s28 = sadd.s32 1, %s24
  $region7: #{tpu_custom_call.1} parent=0 // loop_footer_branch
    %23 = sbr.rel target = $region3
  $region8: #{tpu_custom_call.1} parent=0 // loop_exit
    _

</llo_original>
